<compile_context>
chip_gen: v7x
topology: tpu7x:2x2x1
jax: 0.10.0
libtpu: 0.0.40
codegen_flags: <defaults>
</compile_context>

<pallas_src>
import functools

import numpy as np
import jax
import jax.numpy as jnp
from jax.experimental import pallas as pl
from jax.experimental.pallas import tpu as pltpu

_WSCALE_GAIN = float(np.sqrt(2.0))


# ----------------------------------------------------------------------------
# Pallas kernel: fused 3x3 conv (9-tap accumulated matmul) + bias + LeakyReLU
# ----------------------------------------------------------------------------
def _conv3x3_bias_lrelu_kernel(x_ref, w_ref, b_ref, o_ref, *, tile_h, out_w):
    # x_ref: (TH+2, W+2, C)   bf16 halo tile (NHWC, spatially zero-padded)
    # w_ref: (9, C, O_pad)    bf16 per-tap weight slices (kh*3+kw, c, o)
    # b_ref: (1, O_pad)       f32 bias (already bscale-scaled, lane-padded)
    # o_ref: (TH*W, O_pad)    f32 output rows (lane-dense)
    c = x_ref.shape[-1]
    o_pad = o_ref.shape[-1]

    acc = jnp.zeros((tile_h * out_w, o_pad), jnp.float32)
    for kh in range(3):
        for kw in range(3):
            # Shifted activation window for this tap: (TH, W, C) -> (TH*W, C).
            patch = x_ref[kh:kh + tile_h, kw:kw + out_w, :]
            patch2d = patch.reshape(tile_h * out_w, c)
            acc = acc + jnp.dot(
                patch2d, w_ref[kh * 3 + kw],
                preferred_element_type=jnp.float32)

    acc = acc + b_ref[...]                 # (1, O_pad) broadcast over rows
    acc = jnp.maximum(acc, 0.2 * acc)      # LeakyReLU(0.2), single select path
    o_ref[...] = acc.astype(o_ref.dtype)


def _round_up(x, m):
    return ((x + m - 1) // m) * m


def _choose_tile_h(H, W, C, o_pad, vmem_budget_bytes=24 * 1024 * 1024):
    """Largest divisor of H whose double-buffered tiles fit the VMEM budget."""
    for th in range(H, 0, -1):
        if H % th != 0:
            continue
        if th * W > 4096:                      # keep matmul row-tile reasonable
            continue
        in_tile = (th + 2) * (W + 2) * C * 2   # bf16 halo tile
        out_tile = th * W * o_pad * 4          # f32 output tile
        resident = 9 * C * o_pad * 2 + o_pad * 4
        if 2 * (in_tile + out_tile) + resident <= vmem_budget_bytes:
            return th
    return 1


# ----------------------------------------------------------------------------
# Forward wrapper (JAX glue + pallas_call)
# ----------------------------------------------------------------------------
def conv_block_forward(x, weight, bias, *, wscale, bscale):
    """ConvBlock forward (default config): conv3x3 s1 p1 + bias + lrelu(0.2).

    x:      (B, C, H, W)  float32, NCHW
    weight: (O, C, 3, 3)  float32
    bias:   (O,)          float32
    """
    B, C, H, W = x.shape
    O, Cw, KH, KW = weight.shape
    assert Cw == C and KH == 3 and KW == 3

    o_pad = _round_up(O, 128)                      # lane-dense output
    tile_h = _choose_tile_h(H, W, C, o_pad)
    n_hb = H // tile_h

    # --- parameters: wscale trick, per-tap layout, lane padding, bf16 -------
    w_scaled = (weight * wscale).astype(jnp.float32)          # (O, C, 3, 3)
    b_scaled = (bias * bscale).astype(jnp.float32)             # (O,)
    # (kh, kw, c, o) -> (9, C, O) -> pad O -> bf16
    w_taps = jnp.transpose(w_scaled, (2, 3, 1, 0)).reshape(9, C, O)
    w_taps = jnp.pad(w_taps, ((0, 0), (0, 0), (0, o_pad - O))).astype(jnp.bfloat16)
    b_lane = jnp.pad(b_scaled, (0, o_pad - O)).reshape(1, o_pad)

    # --- activations: NCHW -> NHWC, pad=1, bf16, H row-blocks with halo -----
    x_nhwc = jnp.transpose(x, (0, 2, 3, 1))                    # (B, H, W, C)
    x_padded = jnp.pad(x_nhwc, ((0, 0), (1, 1), (1, 1), (0, 0))).astype(jnp.bfloat16)
    if n_hb == 1:
        x_blocks = x_padded[:, None]                           # (B, 1, H+2, W+2, C)
    else:
        # Overlapping halo row-blocks; inflation is (TH+2)/TH (vs 9x im2col).
        x_blocks = jnp.stack(
            [x_padded[:, i * tile_h:i * tile_h + tile_h + 2] for i in range(n_hb)],
            axis=1)                                            # (B, nHB, TH+2, W+2, C)

    kernel = functools.partial(_conv3x3_bias_lrelu_kernel, tile_h=tile_h, out_w=W)

    flops = 2 * B * H * W * 9 * C * o_pad
    bytes_accessed = (B * n_hb * (tile_h + 2) * (W + 2) * C * 2
                      + 9 * C * o_pad * 2 + o_pad * 4
                      + B * H * W * o_pad * 4)

    out = pl.pallas_call(
        kernel,
        out_shape=jax.ShapeDtypeStruct((B, n_hb, tile_h * W, o_pad), jnp.float32),
        grid=(B, n_hb),
        in_specs=[
            pl.BlockSpec((None, None, tile_h + 2, W + 2, C),
                         lambda b, i: (b, i, 0, 0, 0)),
            pl.BlockSpec((9, C, o_pad), lambda b, i: (0, 0, 0)),   # resident
            pl.BlockSpec((1, o_pad), lambda b, i: (0, 0)),         # resident
        ],
        out_specs=pl.BlockSpec((None, None, tile_h * W, o_pad),
                               lambda b, i: (b, i, 0, 0)),
        compiler_params=pltpu.CompilerParams(
            dimension_semantics=("parallel", "parallel"),
            vmem_limit_bytes=32 * 1024 * 1024,
        ),
        cost_estimate=pl.CostEstimate(
            flops=flops, transcendentals=0, bytes_accessed=bytes_accessed),
    )(x_blocks, w_taps, b_lane)

    # --- glue: strip lane padding, back to NCHW ------------------------------
    out = out.reshape(B, H, W, o_pad)[..., :O]                 # (B, H, W, O)
    return jnp.transpose(out, (0, 3, 1, 2))                    # (B, O, H, W)


# ----------------------------------------------------------------------------
# Reference (pure JAX) for correctness check
# ----------------------------------------------------------------------------
def _reference_forward(x, w_scaled, b_scaled):
    y = jax.lax.conv_general_dilated(
        x, w_scaled, window_strides=(1, 1), padding=((1, 1), (1, 1)),
        dimension_numbers=("NCHW", "OIHW", "NCHW"))
    y = y + b_scaled[None, :, None, None]
    return jnp.where(y >= 0.0, y, 0.2 * y)


if __name__ == "__main__":
    # Module config: ConvBlock(in_channels=4, out_channels=8) with defaults.
    # TODO(synk): mbstd / blur / downsample branches are nn.Identity for the
    # default config and are therefore not lowered here.
    in_channels, out_channels, kernel_size = 4, 8, 3
    lr_mul = 1.0
    fan_in = kernel_size * kernel_size * in_channels
    wscale = _WSCALE_GAIN / np.sqrt(fan_in) * lr_mul   # use_wscale=True
    bscale = lr_mul

    key = jax.random.PRNGKey(0)
    kx, kw_key, kb_key = jax.random.split(key, 3)

    # Parameters mirroring __init__ (weight = randn/lr_mul); small random bias
    # so the bias path is actually exercised.
    weight = jax.random.normal(
        kw_key, (out_channels, in_channels, kernel_size, kernel_size), jnp.float32
    ) / lr_mul
    bias = 0.1 * jax.random.normal(kb_key, (out_channels,), jnp.float32)

    # Input (NCHW).
    x = jax.random.normal(kx, (2, 4, 16, 16), jnp.float32)

    fwd = jax.jit(functools.partial(conv_block_forward, wscale=wscale, bscale=bscale))
    y = fwd(x, weight, bias)
    y = jax.block_until_ready(y)
    assert y.shape == (2, 8, 16, 16)

    w_scaled = weight * wscale
    b_scaled = bias * bscale

    # Strict check: reference fed the same bf16-quantized activations/weights
    # (validates the kernel math, f32 accumulation, bias, LeakyReLU).
    xq = x.astype(jnp.bfloat16).astype(jnp.float32)
    wq = w_scaled.astype(jnp.bfloat16).astype(jnp.float32)
    y_ref_q = _reference_forward(xq, wq, b_scaled)
    assert jnp.allclose(y, y_ref_q, atol=2e-3, rtol=2e-3), \
        "mismatch vs bf16-quantized reference"

    # Loose check vs full-f32 module semantics (bf16 input quantization error).
    y_ref = _reference_forward(x, w_scaled, b_scaled)
    assert jnp.allclose(y, y_ref, atol=5e-2, rtol=5e-2), "mismatch vs f32 reference"

    print("KERNEL_OK")
</pallas_src>

<mosaic_0001>
module attributes {stable_mosaic.version = 11 : i64} {
  func.func @_conv3x3_bias_lrelu_kernel(%arg0: i32, %arg1: i32, %arg2: memref<1x1x18x18x4xbf16, #tpu.memory_space<vmem>>, %arg3: memref<9x4x128xbf16, #tpu.memory_space<vmem>>, %arg4: memref<1x128xf32, #tpu.memory_space<vmem>>, %arg5: memref<1x1x256x128xf32, #tpu.memory_space<vmem>>) attributes {dimension_semantics = [#tpu.dimension_semantics<parallel>, #tpu.dimension_semantics<parallel>], iteration_bounds = array<i64: 2, 1>, scalar_prefetch = 0 : i64, scratch_operands = 0 : i64, tpu.core_type = #tpu.core_type<tc>, window_params = [{transform_indices = @transform_0, window_bounds = array<i64: 1, 1, 18, 18, 4>}, {pipeline_mode = #tpu.pipeline_mode<synchronous>, transform_indices = @transform_1, window_bounds = array<i64: 9, 4, 128>}, {pipeline_mode = #tpu.pipeline_mode<synchronous>, transform_indices = @transform_2, window_bounds = array<i64: 1, 128>}, {transform_indices = @transform_3, window_bounds = array<i64: 1, 1, 256, 128>}]} {
    %cst = arith.constant 0.000000e+00 : f32
    %0 = vector.broadcast %cst : f32 to vector<256x128xf32>
    %c0 = arith.constant 0 : index
    %c0_0 = arith.constant 0 : index
    %c0_1 = arith.constant 0 : index
    %c0_2 = arith.constant 0 : index
    %c0_3 = arith.constant 0 : index
    %1 = vector.load %arg2[%c0, %c0_0, %c0_1, %c0_2, %c0_3] : memref<1x1x18x18x4xbf16, #tpu.memory_space<vmem>>, vector<1x1x16x16x4xbf16>
    %2 = vector.shape_cast %1 : vector<1x1x16x16x4xbf16> to vector<16x16x4xbf16>
    %3 = vector.shape_cast %2 : vector<16x16x4xbf16> to vector<256x4xbf16>
    %c0_4 = arith.constant 0 : index
    %c0_5 = arith.constant 0 : index
    %c0_6 = arith.constant 0 : index
    %4 = vector.load %arg3[%c0_4, %c0_5, %c0_6] : memref<9x4x128xbf16, #tpu.memory_space<vmem>>, vector<1x4x128xbf16>
    %5 = vector.shape_cast %4 : vector<1x4x128xbf16> to vector<4x128xbf16>
    %cst_7 = arith.constant dense<0.000000e+00> : vector<256x128xf32>
    %6 = tpu.matmul %3, %5, %cst_7 {dimension_numbers = #tpu.dot_dimension_numbers<[1], [0], [0], [1], [0, 0, 1, 1], [], []>} : vector<256x4xbf16>, vector<4x128xbf16>, vector<256x128xf32> -> vector<256x128xf32>
    %7 = arith.addf %0, %6 : vector<256x128xf32>
    %c0_8 = arith.constant 0 : index
    %c0_9 = arith.constant 0 : index
    %c0_10 = arith.constant 0 : index
    %c1 = arith.constant 1 : index
    %c0_11 = arith.constant 0 : index
    %8 = vector.load %arg2[%c0_8, %c0_9, %c0_10, %c1, %c0_11] : memref<1x1x18x18x4xbf16, #tpu.memory_space<vmem>>, vector<1x1x16x16x4xbf16>
    %9 = vector.shape_cast %8 : vector<1x1x16x16x4xbf16> to vector<16x16x4xbf16>
    %10 = vector.shape_cast %9 : vector<16x16x4xbf16> to vector<256x4xbf16>
    %c1_12 = arith.constant 1 : index
    %c0_13 = arith.constant 0 : index
    %c0_14 = arith.constant 0 : index
    %11 = vector.load %arg3[%c1_12, %c0_13, %c0_14] : memref<9x4x128xbf16, #tpu.memory_space<vmem>>, vector<1x4x128xbf16>
    %12 = vector.shape_cast %11 : vector<1x4x128xbf16> to vector<4x128xbf16>
    %cst_15 = arith.constant dense<0.000000e+00> : vector<256x128xf32>
    %13 = tpu.matmul %10, %12, %cst_15 {dimension_numbers = #tpu.dot_dimension_numbers<[1], [0], [0], [1], [0, 0, 1, 1], [], []>} : vector<256x4xbf16>, vector<4x128xbf16>, vector<256x128xf32> -> vector<256x128xf32>
    %14 = arith.addf %7, %13 : vector<256x128xf32>
    %c0_16 = arith.constant 0 : index
    %c0_17 = arith.constant 0 : index
    %c0_18 = arith.constant 0 : index
    %c2 = arith.constant 2 : index
    %c0_19 = arith.constant 0 : index
    %15 = vector.load %arg2[%c0_16, %c0_17, %c0_18, %c2, %c0_19] : memref<1x1x18x18x4xbf16, #tpu.memory_space<vmem>>, vector<1x1x16x16x4xbf16>
    %16 = vector.shape_cast %15 : vector<1x1x16x16x4xbf16> to vector<16x16x4xbf16>
    %17 = vector.shape_cast %16 : vector<16x16x4xbf16> to vector<256x4xbf16>
    %c2_20 = arith.constant 2 : index
    %c0_21 = arith.constant 0 : index
    %c0_22 = arith.constant 0 : index
    %18 = vector.load %arg3[%c2_20, %c0_21, %c0_22] : memref<9x4x128xbf16, #tpu.memory_space<vmem>>, vector<1x4x128xbf16>
    %19 = vector.shape_cast %18 : vector<1x4x128xbf16> to vector<4x128xbf16>
    %cst_23 = arith.constant dense<0.000000e+00> : vector<256x128xf32>
    %20 = tpu.matmul %17, %19, %cst_23 {dimension_numbers = #tpu.dot_dimension_numbers<[1], [0], [0], [1], [0, 0, 1, 1], [], []>} : vector<256x4xbf16>, vector<4x128xbf16>, vector<256x128xf32> -> vector<256x128xf32>
    %21 = arith.addf %14, %20 : vector<256x128xf32>
    %c0_24 = arith.constant 0 : index
    %c0_25 = arith.constant 0 : index
    %c1_26 = arith.constant 1 : index
    %c0_27 = arith.constant 0 : index
    %c0_28 = arith.constant 0 : index
    %22 = vector.load %arg2[%c0_24, %c0_25, %c1_26, %c0_27, %c0_28] : memref<1x1x18x18x4xbf16, #tpu.memory_space<vmem>>, vector<1x1x16x16x4xbf16>
    %23 = vector.shape_cast %22 : vector<1x1x16x16x4xbf16> to vector<16x16x4xbf16>
    %24 = vector.shape_cast %23 : vector<16x16x4xbf16> to vector<256x4xbf16>
    %c3 = arith.constant 3 : index
    %c0_29 = arith.constant 0 : index
    %c0_30 = arith.constant 0 : index
    %25 = vector.load %arg3[%c3, %c0_29, %c0_30] : memref<9x4x128xbf16, #tpu.memory_space<vmem>>, vector<1x4x128xbf16>
    %26 = vector.shape_cast %25 : vector<1x4x128xbf16> to vector<4x128xbf16>
    %cst_31 = arith.constant dense<0.000000e+00> : vector<256x128xf32>
    %27 = tpu.matmul %24, %26, %cst_31 {dimension_numbers = #tpu.dot_dimension_numbers<[1], [0], [0], [1], [0, 0, 1, 1], [], []>} : vector<256x4xbf16>, vector<4x128xbf16>, vector<256x128xf32> -> vector<256x128xf32>
    %28 = arith.addf %21, %27 : vector<256x128xf32>
    %c0_32 = arith.constant 0 : index
    %c0_33 = arith.constant 0 : index
    %c1_34 = arith.constant 1 : index
    %c1_35 = arith.constant 1 : index
    %c0_36 = arith.constant 0 : index
    %29 = vector.load %arg2[%c0_32, %c0_33, %c1_34, %c1_35, %c0_36] : memref<1x1x18x18x4xbf16, #tpu.memory_space<vmem>>, vector<1x1x16x16x4xbf16>
    %30 = vector.shape_cast %29 : vector<1x1x16x16x4xbf16> to vector<16x16x4xbf16>
    %31 = vector.shape_cast %30 : vector<16x16x4xbf16> to vector<256x4xbf16>
    %c4 = arith.constant 4 : index
    %c0_37 = arith.constant 0 : index
    %c0_38 = arith.constant 0 : index
    %32 = vector.load %arg3[%c4, %c0_37, %c0_38] : memref<9x4x128xbf16, #tpu.memory_space<vmem>>, vector<1x4x128xbf16>
    %33 = vector.shape_cast %32 : vector<1x4x128xbf16> to vector<4x128xbf16>
    %cst_39 = arith.constant dense<0.000000e+00> : vector<256x128xf32>
    %34 = tpu.matmul %31, %33, %cst_39 {dimension_numbers = #tpu.dot_dimension_numbers<[1], [0], [0], [1], [0, 0, 1, 1], [], []>} : vector<256x4xbf16>, vector<4x128xbf16>, vector<256x128xf32> -> vector<256x128xf32>
    %35 = arith.addf %28, %34 : vector<256x128xf32>
    %c0_40 = arith.constant 0 : index
    %c0_41 = arith.constant 0 : index
    %c1_42 = arith.constant 1 : index
    %c2_43 = arith.constant 2 : index
    %c0_44 = arith.constant 0 : index
    %36 = vector.load %arg2[%c0_40, %c0_41, %c1_42, %c2_43, %c0_44] : memref<1x1x18x18x4xbf16, #tpu.memory_space<vmem>>, vector<1x1x16x16x4xbf16>
    %37 = vector.shape_cast %36 : vector<1x1x16x16x4xbf16> to vector<16x16x4xbf16>
    %38 = vector.shape_cast %37 : vector<16x16x4xbf16> to vector<256x4xbf16>
    %c5 = arith.constant 5 : index
    %c0_45 = arith.constant 0 : index
    %c0_46 = arith.constant 0 : index
    %39 = vector.load %arg3[%c5, %c0_45, %c0_46] : memref<9x4x128xbf16, #tpu.memory_space<vmem>>, vector<1x4x128xbf16>
    %40 = vector.shape_cast %39 : vector<1x4x128xbf16> to vector<4x128xbf16>
    %cst_47 = arith.constant dense<0.000000e+00> : vector<256x128xf32>
    %41 = tpu.matmul %38, %40, %cst_47 {dimension_numbers = #tpu.dot_dimension_numbers<[1], [0], [0], [1], [0, 0, 1, 1], [], []>} : vector<256x4xbf16>, vector<4x128xbf16>, vector<256x128xf32> -> vector<256x128xf32>
    %42 = arith.addf %35, %41 : vector<256x128xf32>
    %c0_48 = arith.constant 0 : index
    %c0_49 = arith.constant 0 : index
    %c2_50 = arith.constant 2 : index
    %c0_51 = arith.constant 0 : index
    %c0_52 = arith.constant 0 : index
    %43 = vector.load %arg2[%c0_48, %c0_49, %c2_50, %c0_51, %c0_52] : memref<1x1x18x18x4xbf16, #tpu.memory_space<vmem>>, vector<1x1x16x16x4xbf16>
    %44 = vector.shape_cast %43 : vector<1x1x16x16x4xbf16> to vector<16x16x4xbf16>
    %45 = vector.shape_cast %44 : vector<16x16x4xbf16> to vector<256x4xbf16>
    %c6 = arith.constant 6 : index
    %c0_53 = arith.constant 0 : index
    %c0_54 = arith.constant 0 : index
    %46 = vector.load %arg3[%c6, %c0_53, %c0_54] : memref<9x4x128xbf16, #tpu.memory_space<vmem>>, vector<1x4x128xbf16>
    %47 = vector.shape_cast %46 : vector<1x4x128xbf16> to vector<4x128xbf16>
    %cst_55 = arith.constant dense<0.000000e+00> : vector<256x128xf32>
    %48 = tpu.matmul %45, %47, %cst_55 {dimension_numbers = #tpu.dot_dimension_numbers<[1], [0], [0], [1], [0, 0, 1, 1], [], []>} : vector<256x4xbf16>, vector<4x128xbf16>, vector<256x128xf32> -> vector<256x128xf32>
    %49 = arith.addf %42, %48 : vector<256x128xf32>
    %c0_56 = arith.constant 0 : index
    %c0_57 = arith.constant 0 : index
    %c2_58 = arith.constant 2 : index
    %c1_59 = arith.constant 1 : index
    %c0_60 = arith.constant 0 : index
    %50 = vector.load %arg2[%c0_56, %c0_57, %c2_58, %c1_59, %c0_60] : memref<1x1x18x18x4xbf16, #tpu.memory_space<vmem>>, vector<1x1x16x16x4xbf16>
    %51 = vector.shape_cast %50 : vector<1x1x16x16x4xbf16> to vector<16x16x4xbf16>
    %52 = vector.shape_cast %51 : vector<16x16x4xbf16> to vector<256x4xbf16>
    %c7 = arith.constant 7 : index
    %c0_61 = arith.constant 0 : index
    %c0_62 = arith.constant 0 : index
    %53 = vector.load %arg3[%c7, %c0_61, %c0_62] : memref<9x4x128xbf16, #tpu.memory_space<vmem>>, vector<1x4x128xbf16>
    %54 = vector.shape_cast %53 : vector<1x4x128xbf16> to vector<4x128xbf16>
    %cst_63 = arith.constant dense<0.000000e+00> : vector<256x128xf32>
    %55 = tpu.matmul %52, %54, %cst_63 {dimension_numbers = #tpu.dot_dimension_numbers<[1], [0], [0], [1], [0, 0, 1, 1], [], []>} : vector<256x4xbf16>, vector<4x128xbf16>, vector<256x128xf32> -> vector<256x128xf32>
    %56 = arith.addf %49, %55 : vector<256x128xf32>
    %c0_64 = arith.constant 0 : index
    %c0_65 = arith.constant 0 : index
    %c2_66 = arith.constant 2 : index
    %c2_67 = arith.constant 2 : index
    %c0_68 = arith.constant 0 : index
    %57 = vector.load %arg2[%c0_64, %c0_65, %c2_66, %c2_67, %c0_68] : memref<1x1x18x18x4xbf16, #tpu.memory_space<vmem>>, vector<1x1x16x16x4xbf16>
    %58 = vector.shape_cast %57 : vector<1x1x16x16x4xbf16> to vector<16x16x4xbf16>
    %59 = vector.shape_cast %58 : vector<16x16x4xbf16> to vector<256x4xbf16>
    %c8 = arith.constant 8 : index
    %c0_69 = arith.constant 0 : index
    %c0_70 = arith.constant 0 : index
    %60 = vector.load %arg3[%c8, %c0_69, %c0_70] : memref<9x4x128xbf16, #tpu.memory_space<vmem>>, vector<1x4x128xbf16>
    %61 = vector.shape_cast %60 : vector<1x4x128xbf16> to vector<4x128xbf16>
    %cst_71 = arith.constant dense<0.000000e+00> : vector<256x128xf32>
    %62 = tpu.matmul %59, %61, %cst_71 {dimension_numbers = #tpu.dot_dimension_numbers<[1], [0], [0], [1], [0, 0, 1, 1], [], []>} : vector<256x4xbf16>, vector<4x128xbf16>, vector<256x128xf32> -> vector<256x128xf32>
    %63 = arith.addf %56, %62 : vector<256x128xf32>
    %c0_72 = arith.constant 0 : index
    %c0_73 = arith.constant 0 : index
    %64 = vector.load %arg4[%c0_72, %c0_73] : memref<1x128xf32, #tpu.memory_space<vmem>>, vector<1x128xf32>
    %65 = vector.broadcast %64 : vector<1x128xf32> to vector<256x128xf32>
    %66 = arith.addf %63, %65 : vector<256x128xf32>
    %cst_74 = arith.constant 2.000000e-01 : f32
    %67 = vector.broadcast %cst_74 : f32 to vector<256x128xf32>
    %68 = arith.mulf %67, %66 : vector<256x128xf32>
    %69 = arith.maximumf %66, %68 : vector<256x128xf32>
    %c0_75 = arith.constant 0 : index
    %c0_76 = arith.constant 0 : index
    %c0_77 = arith.constant 0 : index
    %c0_78 = arith.constant 0 : index
    %70 = vector.load %arg5[%c0_75, %c0_76, %c0_77, %c0_78] : memref<1x1x256x128xf32, #tpu.memory_space<vmem>>, vector<1x1x256x128xf32>
    %71 = vector.shape_cast %70 : vector<1x1x256x128xf32> to vector<256x128xf32>
    %72 = vector.shape_cast %69 : vector<256x128xf32> to vector<1x1x256x128xf32>
    tpu.vector_store %arg5[%c0_75, %c0_76, %c0_77, %c0_78], %72 {strides = array<i32>} : memref<1x1x256x128xf32, #tpu.memory_space<vmem>>, vector<1x1x256x128xf32>,
    return
  }
  func.func @transform_0(%arg0: i32, %arg1: i32) -> (i32, i32, i32, i32, i32) {
    %c0_i32 = arith.constant 0 : i32
    %c0_i32_0 = arith.constant 0 : i32
    %c0_i32_1 = arith.constant 0 : i32
    %c0_i32_2 = arith.constant 0 : i32
    return %arg0, %arg1, %c0_i32, %c0_i32_0, %c0_i32_1 : i32, i32, i32, i32, i32
  }
  func.func @transform_1(%arg0: i32, %arg1: i32) -> (i32, i32, i32) {
    %c0_i32 = arith.constant 0 : i32
    %c0_i32_0 = arith.constant 0 : i32
    %c0_i32_1 = arith.constant 0 : i32
    %c0_i32_2 = arith.constant 0 : i32
    return %c0_i32, %c0_i32_0, %c0_i32_1 : i32, i32, i32
  }
  func.func @transform_2(%arg0: i32, %arg1: i32) -> (i32, i32) {
    %c0_i32 = arith.constant 0 : i32
    %c0_i32_0 = arith.constant 0 : i32
    %c0_i32_1 = arith.constant 0 : i32
    return %c0_i32, %c0_i32_0 : i32, i32
  }
  func.func @transform_3(%arg0: i32, %arg1: i32) -> (i32, i32, i32, i32) {
    %c0_i32 = arith.constant 0 : i32
    %c0_i32_0 = arith.constant 0 : i32
    %c0_i32_1 = arith.constant 0 : i32
    return %arg0, %arg1, %c0_i32, %c0_i32_0 : i32, i32, i32, i32
  }
}

</mosaic_0001>

<llo_original>
// kernel: conv_block_forward.1
$region0: #{conv_block_forward.1}
  #allocation0 [shape = 'u32[]', space=smem, size = 0x4, offset = 0x4, fixed_abs, tag = 'smem constant byte address 0x4 - core index']
  #allocation1 [shape = 'u32[144,128]{1,0:T(1,128)}', space=vmem, size = 0x12000, scoped, tag = 'internal scratch']
  %s0 = inlined_call_operand.vmem [shape: bf16[2,1,18,18,4], index: 0, kind: input, shape index: {}]
  %s1 = inlined_call_operand.vmem [shape: bf16[9,4,128], index: 1, kind: input, shape index: {}]
  %s2 = inlined_call_operand.vmem [shape: f32[1,128], index: 2, kind: input, shape index: {}]
  %s3 = inlined_call_operand.vmem [shape: f32[2,1,256,128], index: 3, kind: output, shape index: {}]
  %s4 = sld [smem:[#allocation0]]
  $region45: #{conv_block_forward.1} parent=0
    _
  %s6 = ssub.s32 1, %s4
  %s7 = scalar_select 0, %s6, %s4
  loop: start=0, step=1, limit=4
  $region2: #{conv_block_forward.1} parent=0 // loop_pre_header
    _
  $region3: #{conv_block_forward.1} parent=0 // loop_header
    %s9 = sphi 0, %s13
    %p10 = scmp.ge.s32.totalorder %s9, 4
    %s16 = sphi 0, %s28
    %s17 = sphi 0, %s24
    %s18 = sphi 0, %s16
    %s19 = sphi 0, %s17
    %s20 = sphi 0, %s18
    %s21 = sphi 0, %s19
    %s33 = sphi 0, %s35
    %s36 = sphi 0, %s33
    %s37 = sphi 0, %s36
    %s53 = sphi 0, %s37
    %s57 = sphi 0, %s57
    %s59 = sphi 0, %s57
    %s60 = sphi 0, %s59
    %s74 = sphi 0, %s60
    %s78 = sphi 0, %s78
    %s80 = sphi 0, %s78
    %s81 = sphi 0, %s80
    %s95 = sphi 0, %s81
    %s103 = sphi 0, %s105
    %s106 = sphi 0, %s103
    %s107 = sphi 0, %s106
    %s123 = sphi 0, %s107
  $region4: #{conv_block_forward.1} parent=0 // loop_header_branch
    %12 = sbr.rel (%p10) target = $region8
  $region5: #{conv_block_forward.1} parent=0 // loop_body
    %s14 = ssub.s32 %s9, 1
    %s15 = ssub.s32 %s9, 2
    %s22 = sadd.s32 1, %s17
    %p23 = scmp.ge.s32.totalorder %s22, 1
    %s24 = scalar_select %p23, 0, %s22
    %s25 = sadd.s32 1, %s16
    %s26 = scalar_select %p23, %s25, %s16
    %p27 = scmp.ge.s32.totalorder %s26, 2
    %s28 = scalar_select %p27, 0, %s26
    %s29 = ssub.s32 %s16, %s28
    %s30 = ssub.s32 %s17, %s24
    %s31 = sor.u32 %s29, %s30
    %p32 = scmp.eq.s32.totalorder %s31, 0
    %s34 = sadd.s32 %s33, 1
    %s35 = scalar_select %p32, %s33, %s34
    %p38 = pneg %p32
    %p39 = scmp.eq.s32.totalorder %s9, 1
    %p40 = por %p38, %p39
    %p41 = scmp.ne.s32.totalorder %s33, %s36
    %p42 = scmp.eq.s32.totalorder %s9, 0
    %p43 = por %p41, %p42
    %p44 = scmp.ne.s32.totalorder %s33, %s36
    %p45 = scmp.eq.s32.totalorder %s14, 1
    %p46 = por %p44, %p45
    %p47 = scmp.ne.s32.totalorder %s36, %s37
    %p48 = scmp.eq.s32.totalorder %s14, 0
    %p49 = por %p47, %p48
    %p50 = scmp.ne.s32.totalorder %s36, %s37
    %p51 = scmp.eq.s32.totalorder %s15, 1
    %p52 = por %p50, %p51
    %p54 = scmp.ne.s32.totalorder %s37, %s53
    %p55 = scmp.eq.s32.totalorder %s15, 0
    %p56 = por %p54, %p55
    %s58 = sadd.s32 %s57, 1
    %p61 = scmp.eq.s32.totalorder %s9, 1
    %p62 = scmp.ne.s32.totalorder %s57, %s59
    %p63 = scmp.eq.s32.totalorder %s9, 0
    %p64 = por %p62, %p63
    %p65 = scmp.ne.s32.totalorder %s57, %s59
    %p66 = scmp.eq.s32.totalorder %s14, 1
    %p67 = por %p65, %p66
    %p68 = scmp.ne.s32.totalorder %s59, %s60
    %p69 = scmp.eq.s32.totalorder %s14, 0
    %p70 = por %p68, %p69
    %p71 = scmp.ne.s32.totalorder %s59, %s60
    %p72 = scmp.eq.s32.totalorder %s15, 1
    %p73 = por %p71, %p72
    %p75 = scmp.ne.s32.totalorder %s60, %s74
    %p76 = scmp.eq.s32.totalorder %s15, 0
    %p77 = por %p75, %p76
    %s79 = sadd.s32 %s78, 1
    %p82 = scmp.eq.s32.totalorder %s9, 1
    %p83 = scmp.ne.s32.totalorder %s78, %s80
    %p84 = scmp.eq.s32.totalorder %s9, 0
    %p85 = por %p83, %p84
    %p86 = scmp.ne.s32.totalorder %s78, %s80
    %p87 = scmp.eq.s32.totalorder %s14, 1
    %p88 = por %p86, %p87
    %p89 = scmp.ne.s32.totalorder %s80, %s81
    %p90 = scmp.eq.s32.totalorder %s14, 0
    %p91 = por %p89, %p90
    %p92 = scmp.ne.s32.totalorder %s80, %s81
    %p93 = scmp.eq.s32.totalorder %s15, 1
    %p94 = por %p92, %p93
    %p96 = scmp.ne.s32.totalorder %s81, %s95
    %p97 = scmp.eq.s32.totalorder %s15, 0
    %p98 = por %p96, %p97
    %s99 = ssub.s32 %s16, %s28
    %s100 = ssub.s32 %s17, %s24
    %s101 = sor.u32 %s99, %s100
    %p102 = scmp.eq.s32.totalorder %s101, 0
    %s104 = sadd.s32 %s103, 1
    %s105 = scalar_select %p102, %s103, %s104
    %p108 = pneg %p102
    %p109 = scmp.eq.s32.totalorder %s9, 1
    %p110 = por %p108, %p109
    %p111 = scmp.ne.s32.totalorder %s103, %s106
    %p112 = scmp.eq.s32.totalorder %s9, 0
    %p113 = por %p111, %p112
    %p114 = scmp.ne.s32.totalorder %s103, %s106
    %p115 = scmp.eq.s32.totalorder %s14, 1
    %p116 = por %p114, %p115
    %p117 = scmp.ne.s32.totalorder %s106, %s107
    %p118 = scmp.eq.s32.totalorder %s14, 0
    %p119 = por %p117, %p118
    %p120 = scmp.ne.s32.totalorder %s106, %s107
    %p121 = scmp.eq.s32.totalorder %s15, 1
    %p122 = por %p120, %p121
    %p124 = scmp.ne.s32.totalorder %s107, %s123
    %p125 = scmp.eq.s32.totalorder %s15, 0
    %p126 = por %p124, %p125
    %p127 = scmp.le.s32.totalorder 1, %s9
    %p128 = scmp.lt.s32.totalorder %s9, 3
    %p129 = pnand %p127, %p128
    %p130 = pneg %p129
    // Predicated region
    $region9: #{conv_block_forward.1} parent=5 // pred_check
      _
    $region10: #{conv_block_forward.1} parent=5 // pred_check_branch
      %132 = sbr.rel (%p129) target = $region12
    $region11: #{conv_block_forward.1} parent=5 // pred_region
      %s133 = ssub.s32 %s9, 1
      // Predicated region
      $region13: #{conv_block_forward.1} parent=11 // pred_check
        %p134 = pneg %p70
      $region14: #{conv_block_forward.1} parent=11 // pred_check_branch
        %136 = sbr.rel (%p134) target = $region16
      $region15: #{conv_block_forward.1} parent=11 // pred_region
        _
      $region16: #{conv_block_forward.1} parent=11 // pred_fallthru
        _
      // Predicated region
      $region17: #{conv_block_forward.1} parent=11 // pred_check
        %p137 = pneg %p91
      $region18: #{conv_block_forward.1} parent=11 // pred_check_branch
        %139 = sbr.rel (%p137) target = $region20
      $region19: #{conv_block_forward.1} parent=11 // pred_region
        _
      $region20: #{conv_block_forward.1} parent=11 // pred_fallthru
        _
    $region12: #{conv_block_forward.1} parent=5 // pred_fallthru
      _
    %p140 = scmp.lt.s32.totalorder %s9, 2
    // Predicated region
    $region21: #{conv_block_forward.1} parent=5 // pred_check
      %p141 = pneg %p140
    $region22: #{conv_block_forward.1} parent=5 // pred_check_branch
      %143 = sbr.rel (%p141) target = $region24
    $region23: #{conv_block_forward.1} parent=5 // pred_region
      // Predicated region
      $region25: #{conv_block_forward.1} parent=23 // pred_check
        %p144 = pneg %p43
      $region26: #{conv_block_forward.1} parent=23 // pred_check_branch
        %146 = sbr.rel (%p144) target = $region28
      $region27: #{conv_block_forward.1} parent=23 // pred_region
        %p147 = scmp.lt.s32.totalorder %s16, 1
        %s148 = scalar_select %p147, %s16, 1
        %p149 = scmp.lt.s32.totalorder %s17, 0
        %s150 = scalar_select %p149, %s17, 0
        %s151 = smul.addr %s150, 54
        %s152 = smul.addr %s148, 54
        %s153 = sadd.s32 %s151, %s152
        %s154 = smul.addr %s153, 4
        %s155 = scalar_lea.vmem %s0, %s154
      $region28: #{conv_block_forward.1} parent=23 // pred_fallthru
        _
    $region24: #{conv_block_forward.1} parent=5 // pred_fallthru
      _
    %p156 = scmp.le.s32.totalorder 1, %s9
    %p157 = scmp.lt.s32.totalorder %s9, 3
    %p158 = pnand %p156, %p157
    %p159 = pneg %p158
    // Predicated region
    $region29: #{conv_block_forward.1} parent=5 // pred_check
      _
    $region30: #{conv_block_forward.1} parent=5 // pred_check_branch
      %161 = sbr.rel (%p158) target = $region32
    $region31: #{conv_block_forward.1} parent=5 // pred_region
      %s162 = ssub.s32 %s9, 1
      %p163 = scmp.lt.s32.totalorder %s18, 1
      %s164 = scalar_select %p163, %s18, 1
      %p165 = scmp.lt.s32.totalorder %s19, 0
      %s166 = scalar_select %p165, %s19, 0
      %s167 = smul.addr %s166, 54
      %s168 = smul.addr %s164, 54
      %s169 = sadd.s32 %s167, %s168
      %s170 = smul.addr %s169, 4
      %s171 = scalar_lea.vmem %s0, %s170
      %p172 = pneg %p49
      %p173 = pneg %p46
      %p174 = pneg %p70
      %p175 = pneg %p67
      %p176 = pneg %p91
      %p177 = pneg %p88
      %p178 = pneg %p119
      %p179 = pneg %p116
      %p180 = scmp.lt.s32.totalorder %s18, 1
      %s181 = scalar_select %p180, %s18, 1
      %p182 = scmp.lt.s32.totalorder %s19, 0
      %s183 = scalar_select %p182, %s19, 0
      %s184 = smul.addr %s183, 32
      %s185 = smul.addr %s181, 32
      %s186 = sadd.s32 %s184, %s185
      %s187 = smul.addr %s186, 8
      %s188 = scalar_lea.vmem %s3, %s187
      %p189 = scmp.lt.s32.totalorder %s18, 1
      %s190 = scalar_select %p189, %s18, 1
      %p191 = scmp.lt.s32.totalorder %s19, 0
      %s192 = scalar_select %p191, %s19, 0
      %s193 = smul.addr %s192, 54
      %s194 = smul.addr %s190, 54
      %s195 = sadd.s32 %s193, %s194
      %s196 = smul.addr %s195, 4
      %s197 = scalar_lea.vmem %s0, %s196
      %p198 = scmp.lt.s32.totalorder %s18, 1
      %s199 = scalar_select %p198, %s18, 1
      %p200 = scmp.lt.s32.totalorder %s19, 0
      %s201 = scalar_select %p200, %s19, 0
      %s202 = smul.addr %s201, 32
      %s203 = smul.addr %s199, 32
      %s204 = sadd.s32 %s202, %s203
      %s205 = smul.addr %s204, 8
      %s206 = scalar_lea.vmem %s3, %s205
      %v208 = vld [vmem:[%s197] sm:$0xf]
      %v209 = vld [vmem:[%s197 + $0x4] sm:$0xf]
      %v210 = vld [vmem:[%s197 + $0xc] sm:$0xf]
      %v211 = vld [vmem:[%s197 + $0x10] sm:$0xf]
      %v212 = vld [vmem:[%s197 + $0x18] sm:$0xf]
      %v213 = vld [vmem:[%s197 + $0x1c] sm:$0xf]
      %v214 = vld [vmem:[%s197 + $0x24] sm:$0xf]
      %v215 = vld [vmem:[%s197 + $0x28] sm:$0xf]
      %v216 = vld [vmem:[%s197 + $0x30] sm:$0xf]
      %v217 = vld [vmem:[%s197 + $0x34] sm:$0xf]
      %v218 = vld [vmem:[%s197 + $0x3c] sm:$0xf]
      %v219 = vld [vmem:[%s197 + $0x40] sm:$0xf]
      %v220 = vld [vmem:[%s197 + $0x48] sm:$0xf]
      %v221 = vld [vmem:[%s197 + $0x4c] sm:$0xf]
      %v222 = vld [vmem:[%s197 + $0x54] sm:$0xf]
      %v223 = vld [vmem:[%s197 + $0x58] sm:$0xf]
      %v224 = vld [vmem:[%s197 + $0x60] sm:$0xf]
      %v225 = vld [vmem:[%s197 + $0x64] sm:$0xf]
      %v226 = vld [vmem:[%s197 + $0x6c] sm:$0xf]
      %v227 = vld [vmem:[%s197 + $0x70] sm:$0xf]
      %v228 = vld [vmem:[%s197 + $0x78] sm:$0xf]
      %v229 = vld [vmem:[%s197 + $0x7c] sm:$0xf]
      %v230 = vld [vmem:[%s197 + $0x84] sm:$0xf]
      %v231 = vld [vmem:[%s197 + $0x88] sm:$0xf]
      %v232 = vld [vmem:[%s197 + $0x90] sm:$0xf]
      %v233 = vld [vmem:[%s197 + $0x94] sm:$0xf]
      %v234 = vld [vmem:[%s197 + $0x9c] sm:$0xf]
      %v235 = vld [vmem:[%s197 + $0xa0] sm:$0xf]
      %v236 = vld [vmem:[%s197 + $0xa8] sm:$0xf]
      %v237 = vld [vmem:[%s197 + $0xac] sm:$0xf]
      %v238 = vld [vmem:[%s197 + $0xb4] sm:$0xf]
      %v239 = vld [vmem:[%s197 + $0xb8] sm:$0xf]
      %v240 = vld [vmem:[%s1] sm:$0x3]
      %v241 = vld [vmem:[%s197 + $0x8] sm:$0x1]
      %v242 = vld [vmem:[%s197 + $0x14] sm:$0x1]
      %v243 = vld [vmem:[%s197 + $0x20] sm:$0x1]
      %v244 = vld [vmem:[%s197 + $0x2c] sm:$0x1]
      %v245 = vld [vmem:[%s197 + $0x38] sm:$0x1]
      %v246 = vld [vmem:[%s197 + $0x44] sm:$0x1]
      %v247 = vld [vmem:[%s197 + $0x50] sm:$0x1]
      %v248 = vld [vmem:[%s197 + $0x5c] sm:$0x1]
      %v249 = vld [vmem:[%s197 + $0x68] sm:$0x1]
      %v250 = vld [vmem:[%s197 + $0x74] sm:$0x1]
      %v251 = vld [vmem:[%s197 + $0x80] sm:$0x1]
      %v252 = vld [vmem:[%s197 + $0x8c] sm:$0x1]
      %v253 = vld [vmem:[%s197 + $0x98] sm:$0x1]
      %v254 = vld [vmem:[%s197 + $0xa4] sm:$0x1]
      %v255 = vld [vmem:[%s197 + $0xb0] sm:$0x1]
      %v256 = vld [vmem:[%s197 + $0xbc] sm:$0x1]
      %vm257 = vsmask.f32 3328
      %vm258 = vsmask.f32 7440
      %vm259 = vmor %vm257, %vm258
      %v261 = vshrl.u32 %v208, 16
      %v263 = vrot.slane %v261, 4
      %v264 = vshll.u32 %v208, 16
      %v266 = vrot.slane %v264, 5
      %v267 = vor.u32 %v263, %v266
      %v268 = vrot.slane %v267, 4
      %v270 = vshll.u32 %v209, 16
      %v272 = vrot.slane %v270, 5
      %v273 = vsel %vm259, %v268, %v272
      %v274 = vshrl.u32 %v209, 16
      %v276 = vrot.slane %v274, 4
      %v277 = vor.u32 %v276, %v272
      %v278 = vrot.slane %v277, 4
      %v280 = vshll.u32 %v241, 16
      %v282 = vrot.slane %v280, 5
      %v283 = vsel %vm259, %v278, %v282
      %v285 = vshrl.u32 %v210, 16
      %v287 = vrot.slane %v285, 4
      %v288 = vshll.u32 %v210, 16
      %v290 = vrot.slane %v288, 5
      %v291 = vor.u32 %v287, %v290
      %v292 = vrot.slane %v291, 4
      %v294 = vshll.u32 %v211, 16
      %v296 = vrot.slane %v294, 5
      %v297 = vsel %vm259, %v292, %v296
      %v298 = vshrl.u32 %v211, 16
      %v300 = vrot.slane %v298, 4
      %v301 = vor.u32 %v300, %v296
      %v302 = vrot.slane %v301, 4
      %v304 = vshll.u32 %v242, 16
      %v306 = vrot.slane %v304, 5
      %v307 = vsel %vm259, %v302, %v306
      %v309 = vshrl.u32 %v212, 16
      %v311 = vrot.slane %v309, 4
      %v312 = vshll.u32 %v212, 16
      %v314 = vrot.slane %v312, 5
      %v315 = vor.u32 %v311, %v314
      %v316 = vrot.slane %v315, 4
      %v318 = vshll.u32 %v213, 16
      %v320 = vrot.slane %v318, 5
      %v321 = vsel %vm259, %v316, %v320
      %v322 = vshrl.u32 %v213, 16
      %v324 = vrot.slane %v322, 4
      %v325 = vor.u32 %v324, %v320
      %v326 = vrot.slane %v325, 4
      %v328 = vshll.u32 %v243, 16
      %v330 = vrot.slane %v328, 5
      %v331 = vsel %vm259, %v326, %v330
      %v333 = vshrl.u32 %v214, 16
      %v335 = vrot.slane %v333, 4
      %v336 = vshll.u32 %v214, 16
      %v338 = vrot.slane %v336, 5
      %v339 = vor.u32 %v335, %v338
      %v340 = vrot.slane %v339, 4
      %v342 = vshll.u32 %v215, 16
      %v344 = vrot.slane %v342, 5
      %v345 = vsel %vm259, %v340, %v344
      %v346 = vshrl.u32 %v215, 16
      %v348 = vrot.slane %v346, 4
      %v349 = vor.u32 %v348, %v344
      %v350 = vrot.slane %v349, 4
      %v352 = vshll.u32 %v244, 16
      %v354 = vrot.slane %v352, 5
      %v355 = vsel %vm259, %v350, %v354
      %v357 = vshrl.u32 %v216, 16
      %v359 = vrot.slane %v357, 4
      %v360 = vshll.u32 %v216, 16
      %v362 = vrot.slane %v360, 5
      %v363 = vor.u32 %v359, %v362
      %v364 = vrot.slane %v363, 4
      %v366 = vshll.u32 %v217, 16
      %v368 = vrot.slane %v366, 5
      %v369 = vsel %vm259, %v364, %v368
      %v370 = vshrl.u32 %v217, 16
      %v372 = vrot.slane %v370, 4
      %v373 = vor.u32 %v372, %v368
      %v374 = vrot.slane %v373, 4
      %v376 = vshll.u32 %v245, 16
      %v378 = vrot.slane %v376, 5
      %v379 = vsel %vm259, %v374, %v378
      %v381 = vshrl.u32 %v218, 16
      %v383 = vrot.slane %v381, 4
      %v384 = vshll.u32 %v218, 16
      %v386 = vrot.slane %v384, 5
      %v387 = vor.u32 %v383, %v386
      %v388 = vrot.slane %v387, 4
      %v390 = vshll.u32 %v219, 16
      %v392 = vrot.slane %v390, 5
      %v393 = vsel %vm259, %v388, %v392
      %v394 = vshrl.u32 %v219, 16
      %v396 = vrot.slane %v394, 4
      %v397 = vor.u32 %v396, %v392
      %v398 = vrot.slane %v397, 4
      %v400 = vshll.u32 %v246, 16
      %v402 = vrot.slane %v400, 5
      %v403 = vsel %vm259, %v398, %v402
      %v405 = vshrl.u32 %v220, 16
      %v407 = vrot.slane %v405, 4
      %v408 = vshll.u32 %v220, 16
      %v410 = vrot.slane %v408, 5
      %v411 = vor.u32 %v407, %v410
      %v412 = vrot.slane %v411, 4
      %v414 = vshll.u32 %v221, 16
      %v416 = vrot.slane %v414, 5
      %v417 = vsel %vm259, %v412, %v416
      %v418 = vshrl.u32 %v221, 16
      %v420 = vrot.slane %v418, 4
      %v421 = vor.u32 %v420, %v416
      %v422 = vrot.slane %v421, 4
      %v424 = vshll.u32 %v247, 16
      %v426 = vrot.slane %v424, 5
      %v427 = vsel %vm259, %v422, %v426
      %v429 = vshrl.u32 %v222, 16
      %v431 = vrot.slane %v429, 4
      %v432 = vshll.u32 %v222, 16
      %v434 = vrot.slane %v432, 5
      %v435 = vor.u32 %v431, %v434
      %v436 = vrot.slane %v435, 4
      %v438 = vshll.u32 %v223, 16
      %v440 = vrot.slane %v438, 5
      %v441 = vsel %vm259, %v436, %v440
      %v442 = vshrl.u32 %v223, 16
      %v444 = vrot.slane %v442, 4
      %v445 = vor.u32 %v444, %v440
      %v446 = vrot.slane %v445, 4
      %v448 = vshll.u32 %v248, 16
      %v450 = vrot.slane %v448, 5
      %v451 = vsel %vm259, %v446, %v450
      %v453 = vshrl.u32 %v224, 16
      %v455 = vrot.slane %v453, 4
      %v456 = vshll.u32 %v224, 16
      %v458 = vrot.slane %v456, 5
      %v459 = vor.u32 %v455, %v458
      %v460 = vrot.slane %v459, 4
      %v462 = vshll.u32 %v225, 16
      %v464 = vrot.slane %v462, 5
      %v465 = vsel %vm259, %v460, %v464
      %v466 = vshrl.u32 %v225, 16
      %v468 = vrot.slane %v466, 4
      %v469 = vor.u32 %v468, %v464
      %v470 = vrot.slane %v469, 4
      %v472 = vshll.u32 %v249, 16
      %v474 = vrot.slane %v472, 5
      %v475 = vsel %vm259, %v470, %v474
      %v477 = vshrl.u32 %v226, 16
      %v479 = vrot.slane %v477, 4
      %v480 = vshll.u32 %v226, 16
      %v482 = vrot.slane %v480, 5
      %v483 = vor.u32 %v479, %v482
      %v484 = vrot.slane %v483, 4
      %v486 = vshll.u32 %v227, 16
      %v488 = vrot.slane %v486, 5
      %v489 = vsel %vm259, %v484, %v488
      %v490 = vshrl.u32 %v227, 16
      %v492 = vrot.slane %v490, 4
      %v493 = vor.u32 %v492, %v488
      %v494 = vrot.slane %v493, 4
      %v496 = vshll.u32 %v250, 16
      %v498 = vrot.slane %v496, 5
      %v499 = vsel %vm259, %v494, %v498
      %v501 = vshrl.u32 %v228, 16
      %v503 = vrot.slane %v501, 4
      %v504 = vshll.u32 %v228, 16
      %v506 = vrot.slane %v504, 5
      %v507 = vor.u32 %v503, %v506
      %v508 = vrot.slane %v507, 4
      %v510 = vshll.u32 %v229, 16
      %v512 = vrot.slane %v510, 5
      %v513 = vsel %vm259, %v508, %v512
      %v514 = vshrl.u32 %v229, 16
      %v516 = vrot.slane %v514, 4
      %v517 = vor.u32 %v516, %v512
      %v518 = vrot.slane %v517, 4
      %v520 = vshll.u32 %v251, 16
      %v522 = vrot.slane %v520, 5
      %v523 = vsel %vm259, %v518, %v522
      %v525 = vshrl.u32 %v230, 16
      %v527 = vrot.slane %v525, 4
      %v528 = vshll.u32 %v230, 16
      %v530 = vrot.slane %v528, 5
      %v531 = vor.u32 %v527, %v530
      %v532 = vrot.slane %v531, 4
      %v534 = vshll.u32 %v231, 16
      %v536 = vrot.slane %v534, 5
      %v537 = vsel %vm259, %v532, %v536
      %v538 = vshrl.u32 %v231, 16
      %v540 = vrot.slane %v538, 4
      %v541 = vor.u32 %v540, %v536
      %v542 = vrot.slane %v541, 4
      %v544 = vshll.u32 %v252, 16
      %v546 = vrot.slane %v544, 5
      %v547 = vsel %vm259, %v542, %v546
      %v549 = vshrl.u32 %v232, 16
      %v551 = vrot.slane %v549, 4
      %v552 = vshll.u32 %v232, 16
      %v554 = vrot.slane %v552, 5
      %v555 = vor.u32 %v551, %v554
      %v556 = vrot.slane %v555, 4
      %v558 = vshll.u32 %v233, 16
      %v560 = vrot.slane %v558, 5
      %v561 = vsel %vm259, %v556, %v560
      %v562 = vshrl.u32 %v233, 16
      %v564 = vrot.slane %v562, 4
      %v565 = vor.u32 %v564, %v560
      %v566 = vrot.slane %v565, 4
      %v568 = vshll.u32 %v253, 16
      %v570 = vrot.slane %v568, 5
      %v571 = vsel %vm259, %v566, %v570
      %v573 = vshrl.u32 %v234, 16
      %v575 = vrot.slane %v573, 4
      %v576 = vshll.u32 %v234, 16
      %v578 = vrot.slane %v576, 5
      %v579 = vor.u32 %v575, %v578
      %v580 = vrot.slane %v579, 4
      %v582 = vshll.u32 %v235, 16
      %v584 = vrot.slane %v582, 5
      %v585 = vsel %vm259, %v580, %v584
      %v586 = vshrl.u32 %v235, 16
      %v588 = vrot.slane %v586, 4
      %v589 = vor.u32 %v588, %v584
      %v590 = vrot.slane %v589, 4
      %v592 = vshll.u32 %v254, 16
      %v594 = vrot.slane %v592, 5
      %v595 = vsel %vm259, %v590, %v594
      %v597 = vshrl.u32 %v236, 16
      %v599 = vrot.slane %v597, 4
      %v600 = vshll.u32 %v236, 16
      %v602 = vrot.slane %v600, 5
      %v603 = vor.u32 %v599, %v602
      %v604 = vrot.slane %v603, 4
      %v606 = vshll.u32 %v237, 16
      %v608 = vrot.slane %v606, 5
      %v609 = vsel %vm259, %v604, %v608
      %v610 = vshrl.u32 %v237, 16
      %v612 = vrot.slane %v610, 4
      %v613 = vor.u32 %v612, %v608
      %v614 = vrot.slane %v613, 4
      %v616 = vshll.u32 %v255, 16
      %v618 = vrot.slane %v616, 5
      %v619 = vsel %vm259, %v614, %v618
      %v621 = vshrl.u32 %v238, 16
      %v623 = vrot.slane %v621, 4
      %v624 = vshll.u32 %v238, 16
      %v626 = vrot.slane %v624, 5
      %v627 = vor.u32 %v623, %v626
      %v628 = vrot.slane %v627, 4
      %v630 = vshll.u32 %v239, 16
      %v632 = vrot.slane %v630, 5
      %v633 = vsel %vm259, %v628, %v632
      %v634 = vshrl.u32 %v239, 16
      %v636 = vrot.slane %v634, 4
      %v637 = vor.u32 %v636, %v632
      %v638 = vrot.slane %v637, 4
      %v640 = vshll.u32 %v256, 16
      %v642 = vrot.slane %v640, 5
      %v643 = vsel %vm259, %v638, %v642
      %s644 = scalar_lea.vmem %s1, 2
      %v645 = vld [vmem:[%s644] sm:$0x3]
      %v646 = vunpack.c.l.b16 %v273
      %v647 = vunpack.c.l.b16 %v283
      %v648 = vunpack.c.l.b16 %v297
      %v649 = vunpack.c.l.b16 %v307
      %v650 = vunpack.c.l.b16 %v321
      %v651 = vunpack.c.l.b16 %v331
      %v652 = vunpack.c.l.b16 %v345
      %v653 = vunpack.c.l.b16 %v355
      %v654 = vunpack.c.l.b16 %v369
      %v655 = vunpack.c.l.b16 %v379
      %v656 = vunpack.c.l.b16 %v393
      %v657 = vunpack.c.l.b16 %v403
      %v658 = vunpack.c.l.b16 %v417
      %v659 = vunpack.c.l.b16 %v427
      %v660 = vunpack.c.l.b16 %v441
      %v661 = vunpack.c.l.b16 %v451
      %v662 = vunpack.c.l.b16 %v465
      %v663 = vunpack.c.l.b16 %v475
      %v664 = vunpack.c.l.b16 %v489
      %v665 = vunpack.c.l.b16 %v499
      %v666 = vunpack.c.l.b16 %v513
      %v667 = vunpack.c.l.b16 %v523
      %v668 = vunpack.c.l.b16 %v537
      %v669 = vunpack.c.l.b16 %v547
      %v670 = vunpack.c.l.b16 %v561
      %v671 = vunpack.c.l.b16 %v571
      %v672 = vunpack.c.l.b16 %v585
      %v673 = vunpack.c.l.b16 %v595
      %v674 = vunpack.c.l.b16 %v609
      %v675 = vunpack.c.l.b16 %v619
      %v676 = vunpack.c.l.b16 %v633
      %v677 = vunpack.c.l.b16 %v643
      %v678 = vpack.c.b16 %v647, %v646
      %v679 = vpack.c.b16 %v649, %v648
      %v680 = vpack.c.b16 %v651, %v650
      %v681 = vpack.c.b16 %v653, %v652
      %v682 = vpack.c.b16 %v655, %v654
      %v683 = vpack.c.b16 %v657, %v656
      %v684 = vpack.c.b16 %v659, %v658
      %v685 = vpack.c.b16 %v661, %v660
      %v686 = vpack.c.b16 %v663, %v662
      %v687 = vpack.c.b16 %v665, %v664
      %v688 = vpack.c.b16 %v667, %v666
      %v689 = vpack.c.b16 %v669, %v668
      %v690 = vpack.c.b16 %v671, %v670
      %v691 = vpack.c.b16 %v673, %v672
      %v692 = vpack.c.b16 %v675, %v674
      %v693 = vpack.c.b16 %v677, %v676
      %vm694 = vcmask 31744
      %v696 = vsel %vm694, %v678, 0
      %v699 = vsel %vm694, %v679, 0
      %v702 = vsel %vm694, %v680, 0
      %v705 = vsel %vm694, %v681, 0
      %v708 = vsel %vm694, %v682, 0
      %v711 = vsel %vm694, %v683, 0
      %v714 = vsel %vm694, %v684, 0
      %v717 = vsel %vm694, %v685, 0
      %v720 = vsel %vm694, %v686, 0
      %v723 = vsel %vm694, %v687, 0
      %v726 = vsel %vm694, %v688, 0
      %v729 = vsel %vm694, %v689, 0
      %v732 = vsel %vm694, %v690, 0
      %v735 = vsel %vm694, %v691, 0
      %v738 = vsel %vm694, %v692, 0
      %v741 = vsel %vm694, %v693, 0
      %vm743 = vcmask 1041408
      %v745 = vsel %vm743, %v645, 0
      %747 = vmatprep.subr.bf16.mxu0 0
      %748 = vmatpush1.bf16.msra.mxu0 %v745
      %749 = vmatprep.subr.bf16.mxu0 0
      %750 = vmatpush1.bf16.msra.mxu0 0
      %751 = vmatprep.subr.bf16.mxu0 0
      %752 = vmatpush1.bf16.msra.mxu0 0
      %753 = vmatprep.subr.bf16.mxu0 0
      %754 = vmatpush1.bf16.msra.mxu0 0
      %755 = vmatprep.subr.bf16.mxu0 0
      %756 = vmatpush1.bf16.msra.mxu0 0
      %757 = vmatprep.subr.bf16.mxu0 0
      %758 = vmatpush1.bf16.msra.mxu0 0
      %759 = vmatprep.subr.bf16.mxu0 0
      %760 = vmatpush1.bf16.msra.mxu0 0
      %761 = vmatprep.subr.bf16.mxu0 0
      %762 = vmatpush1.bf16.msra.mxu0 0
      %763 = vmatprep.subr.bf16.mxu0 0
      %764 = vmatpush1.bf16.msra.mxu0 0
      %765 = vmatprep.subr.bf16.mxu0 0
      %766 = vmatpush1.bf16.msra.mxu0 0
      %767 = vmatprep.subr.bf16.mxu0 0
      %768 = vmatpush1.bf16.msra.mxu0 0
      %769 = vmatprep.subr.bf16.mxu0 0
      %770 = vmatpush1.bf16.msra.mxu0 0
      %771 = vmatprep.subr.bf16.mxu0 0
      %772 = vmatpush1.bf16.msra.mxu0 0
      %773 = vmatprep.subr.bf16.mxu0 0
      %774 = vmatpush1.bf16.msra.mxu0 0
      %775 = vmatprep.subr.bf16.mxu0 0
      %776 = vmatpush1.bf16.msra.mxu0 0
      %777 = vmatprep.subr.bf16.mxu0 0
      %778 = vmatpush1.bf16.msra.mxu0 0
      %779 = vmatprep.mubr.bf16.mxu0 0
      %780 = vmatmul.mubr.bf16.gmra.mrb[0].mxu0 %v696
      %v781 = vpop.f32.mrb[0].mxu0
      %v782 = vadd.f32 0.0, %v781
      %v783 = vpop.f32.mrb[0].mxu0
      %v784 = vpop.f32.mrb[0].mxu0
      %v785 = vadd.f32 0.0, %v784
      %v786 = vpop.f32.mrb[0].mxu0
      %787 = vmatprep.mubr.bf16.mxu0 0
      %788 = vmatmul.mubr.bf16.gmra.mrb[0].mxu0 %v699
      %v789 = vpop.f32.mrb[0].mxu0
      %v790 = vadd.f32 0.0, %v789
      %v791 = vpop.f32.mrb[0].mxu0
      %v792 = vpop.f32.mrb[0].mxu0
      %v793 = vadd.f32 0.0, %v792
      %v794 = vpop.f32.mrb[0].mxu0
      %795 = vmatprep.mubr.bf16.mxu0 0
      %796 = vmatmul.mubr.bf16.gmra.mrb[0].mxu0 %v702
      %v797 = vpop.f32.mrb[0].mxu0
      %v798 = vadd.f32 0.0, %v797
      %v799 = vpop.f32.mrb[0].mxu0
      %v800 = vpop.f32.mrb[0].mxu0
      %v801 = vadd.f32 0.0, %v800
      %v802 = vpop.f32.mrb[0].mxu0
      %803 = vmatprep.mubr.bf16.mxu0 0
      %804 = vmatmul.mubr.bf16.gmra.mrb[0].mxu0 %v705
      %v805 = vpop.f32.mrb[0].mxu0
      %v806 = vadd.f32 0.0, %v805
      %v807 = vpop.f32.mrb[0].mxu0
      %v808 = vpop.f32.mrb[0].mxu0
      %v809 = vadd.f32 0.0, %v808
      %v810 = vpop.f32.mrb[0].mxu0
      %811 = vmatprep.mubr.bf16.mxu0 0
      %812 = vmatmul.mubr.bf16.gmra.mrb[0].mxu0 %v708
      %v813 = vpop.f32.mrb[0].mxu0
      %v814 = vadd.f32 0.0, %v813
      %v815 = vpop.f32.mrb[0].mxu0
      %v816 = vpop.f32.mrb[0].mxu0
      %v817 = vadd.f32 0.0, %v816
      %v818 = vpop.f32.mrb[0].mxu0
      %819 = vmatprep.mubr.bf16.mxu0 0
      %820 = vmatmul.mubr.bf16.gmra.mrb[0].mxu0 %v711
      %v821 = vpop.f32.mrb[0].mxu0
      %v822 = vadd.f32 0.0, %v821
      %v823 = vpop.f32.mrb[0].mxu0
      %v824 = vpop.f32.mrb[0].mxu0
      %v825 = vadd.f32 0.0, %v824
      %v826 = vpop.f32.mrb[0].mxu0
      %827 = vmatprep.mubr.bf16.mxu0 0
      %828 = vmatmul.mubr.bf16.gmra.mrb[0].mxu0 %v714
      %v829 = vpop.f32.mrb[0].mxu0
      %v830 = vadd.f32 0.0, %v829
      %v831 = vpop.f32.mrb[0].mxu0
      %v832 = vpop.f32.mrb[0].mxu0
      %v833 = vadd.f32 0.0, %v832
      %v834 = vpop.f32.mrb[0].mxu0
      %835 = vmatprep.mubr.bf16.mxu0 0
      %836 = vmatmul.mubr.bf16.gmra.mrb[0].mxu0 %v717
      %v837 = vpop.f32.mrb[0].mxu0
      %v838 = vadd.f32 0.0, %v837
      %v839 = vpop.f32.mrb[0].mxu0
      %v840 = vpop.f32.mrb[0].mxu0
      %v841 = vadd.f32 0.0, %v840
      %v842 = vpop.f32.mrb[0].mxu0
      %843 = vmatprep.mubr.bf16.mxu0 0
      %844 = vmatmul.mubr.bf16.gmra.mrb[0].mxu0 %v720
      %v845 = vpop.f32.mrb[0].mxu0
      %v846 = vadd.f32 0.0, %v845
      %v847 = vpop.f32.mrb[0].mxu0
      %v848 = vpop.f32.mrb[0].mxu0
      %v849 = vadd.f32 0.0, %v848
      %v850 = vpop.f32.mrb[0].mxu0
      %851 = vmatprep.mubr.bf16.mxu0 0
      %852 = vmatmul.mubr.bf16.gmra.mrb[0].mxu0 %v723
      %v853 = vpop.f32.mrb[0].mxu0
      %v854 = vadd.f32 0.0, %v853
      %v855 = vpop.f32.mrb[0].mxu0
      %v856 = vpop.f32.mrb[0].mxu0
      %v857 = vadd.f32 0.0, %v856
      %v858 = vpop.f32.mrb[0].mxu0
      %859 = vmatprep.mubr.bf16.mxu0 0
      %860 = vmatmul.mubr.bf16.gmra.mrb[0].mxu0 %v726
      %v861 = vpop.f32.mrb[0].mxu0
      %v862 = vadd.f32 0.0, %v861
      %v863 = vpop.f32.mrb[0].mxu0
      %v864 = vpop.f32.mrb[0].mxu0
      %v865 = vadd.f32 0.0, %v864
      %v866 = vpop.f32.mrb[0].mxu0
      %867 = vmatprep.mubr.bf16.mxu0 0
      %868 = vmatmul.mubr.bf16.gmra.mrb[0].mxu0 %v729
      %v869 = vpop.f32.mrb[0].mxu0
      %v870 = vadd.f32 0.0, %v869
      %v871 = vpop.f32.mrb[0].mxu0
      %v872 = vpop.f32.mrb[0].mxu0
      %v873 = vadd.f32 0.0, %v872
      %v874 = vpop.f32.mrb[0].mxu0
      %875 = vmatprep.mubr.bf16.mxu0 0
      %876 = vmatmul.mubr.bf16.gmra.mrb[0].mxu0 %v732
      %v877 = vpop.f32.mrb[0].mxu0
      %v878 = vadd.f32 0.0, %v877
      %v879 = vpop.f32.mrb[0].mxu0
      %v880 = vpop.f32.mrb[0].mxu0
      %v881 = vadd.f32 0.0, %v880
      %v882 = vpop.f32.mrb[0].mxu0
      %883 = vmatprep.mubr.bf16.mxu0 0
      %884 = vmatmul.mubr.bf16.gmra.mrb[0].mxu0 %v735
      %v885 = vpop.f32.mrb[0].mxu0
      %v886 = vadd.f32 0.0, %v885
      %v887 = vpop.f32.mrb[0].mxu0
      %v888 = vpop.f32.mrb[0].mxu0
      %v889 = vadd.f32 0.0, %v888
      %v890 = vpop.f32.mrb[0].mxu0
      %891 = vmatprep.mubr.bf16.mxu0 0
      %892 = vmatmul.mubr.bf16.gmra.mrb[0].mxu0 %v738
      %v893 = vpop.f32.mrb[0].mxu0
      %v894 = vadd.f32 0.0, %v893
      %v895 = vpop.f32.mrb[0].mxu0
      %v896 = vpop.f32.mrb[0].mxu0
      %v897 = vadd.f32 0.0, %v896
      %v898 = vpop.f32.mrb[0].mxu0
      %899 = vmatprep.mubr.bf16.mxu0 0
      %900 = vmatmul.mubr.bf16.gmra.mrb[0].mxu0 %v741
      %v901 = vpop.f32.mrb[0].mxu0
      %v902 = vadd.f32 0.0, %v901
      %v903 = vpop.f32.mrb[0].mxu0
      %v904 = vpop.f32.mrb[0].mxu0
      %v905 = vadd.f32 0.0, %v904
      %v906 = vpop.f32.mrb[0].mxu0
      %907 = vdwg.mxu0
      %v940 = vunpack.c.l.b16 %v208
      %v941 = vunpack.c.l.b16 %v209
      %v942 = vunpack.c.l.b16 %v210
      %v943 = vunpack.c.l.b16 %v211
      %v944 = vunpack.c.l.b16 %v212
      %v945 = vunpack.c.l.b16 %v213
      %v946 = vunpack.c.l.b16 %v214
      %v947 = vunpack.c.l.b16 %v215
      %v948 = vunpack.c.l.b16 %v216
      %v949 = vunpack.c.l.b16 %v217
      %v950 = vunpack.c.l.b16 %v218
      %v951 = vunpack.c.l.b16 %v219
      %v952 = vunpack.c.l.b16 %v220
      %v953 = vunpack.c.l.b16 %v221
      %v954 = vunpack.c.l.b16 %v222
      %v955 = vunpack.c.l.b16 %v223
      %v956 = vunpack.c.l.b16 %v224
      %v957 = vunpack.c.l.b16 %v225
      %v958 = vunpack.c.l.b16 %v226
      %v959 = vunpack.c.l.b16 %v227
      %v960 = vunpack.c.l.b16 %v228
      %v961 = vunpack.c.l.b16 %v229
      %v962 = vunpack.c.l.b16 %v230
      %v963 = vunpack.c.l.b16 %v231
      %v964 = vunpack.c.l.b16 %v232
      %v965 = vunpack.c.l.b16 %v233
      %v966 = vunpack.c.l.b16 %v234
      %v967 = vunpack.c.l.b16 %v235
      %v968 = vunpack.c.l.b16 %v236
      %v969 = vunpack.c.l.b16 %v237
      %v970 = vunpack.c.l.b16 %v238
      %v971 = vunpack.c.l.b16 %v239
      %v972 = vpack.c.b16 %v941, %v940
      %v973 = vpack.c.b16 %v943, %v942
      %v974 = vpack.c.b16 %v945, %v944
      %v975 = vpack.c.b16 %v947, %v946
      %v976 = vpack.c.b16 %v949, %v948
      %v977 = vpack.c.b16 %v951, %v950
      %v978 = vpack.c.b16 %v953, %v952
      %v979 = vpack.c.b16 %v955, %v954
      %v980 = vpack.c.b16 %v957, %v956
      %v981 = vpack.c.b16 %v959, %v958
      %v982 = vpack.c.b16 %v961, %v960
      %v983 = vpack.c.b16 %v963, %v962
      %v984 = vpack.c.b16 %v965, %v964
      %v985 = vpack.c.b16 %v967, %v966
      %v986 = vpack.c.b16 %v969, %v968
      %v987 = vpack.c.b16 %v971, %v970
      %v989 = vsel %vm694, %v972, 0
      %v992 = vsel %vm694, %v973, 0
      %v995 = vsel %vm694, %v974, 0
      %v998 = vsel %vm694, %v975, 0
      %v1001 = vsel %vm694, %v976, 0
      %v1004 = vsel %vm694, %v977, 0
      %v1007 = vsel %vm694, %v978, 0
      %v1010 = vsel %vm694, %v979, 0
      %v1013 = vsel %vm694, %v980, 0
      %v1016 = vsel %vm694, %v981, 0
      %v1019 = vsel %vm694, %v982, 0
      %v1022 = vsel %vm694, %v983, 0
      %v1025 = vsel %vm694, %v984, 0
      %v1028 = vsel %vm694, %v985, 0
      %v1031 = vsel %vm694, %v986, 0
      %v1034 = vsel %vm694, %v987, 0
      %v1037 = vsel %vm743, %v240, 0
      %1039 = vmatprep.subr.bf16.mxu0 0
      %1040 = vmatpush1.bf16.msra.mxu0 %v1037
      %1041 = vmatprep.subr.bf16.mxu0 0
      %1042 = vmatpush1.bf16.msra.mxu0 0
      %1043 = vmatprep.subr.bf16.mxu0 0
      %1044 = vmatpush1.bf16.msra.mxu0 0
      %1045 = vmatprep.subr.bf16.mxu0 0
      %1046 = vmatpush1.bf16.msra.mxu0 0
      %1047 = vmatprep.subr.bf16.mxu0 0
      %1048 = vmatpush1.bf16.msra.mxu0 0
      %1049 = vmatprep.subr.bf16.mxu0 0
      %1050 = vmatpush1.bf16.msra.mxu0 0
      %1051 = vmatprep.subr.bf16.mxu0 0
      %1052 = vmatpush1.bf16.msra.mxu0 0
      %1053 = vmatprep.subr.bf16.mxu0 0
      %1054 = vmatpush1.bf16.msra.mxu0 0
      %1055 = vmatprep.subr.bf16.mxu0 0
      %1056 = vmatpush1.bf16.msra.mxu0 0
      %1057 = vmatprep.subr.bf16.mxu0 0
      %1058 = vmatpush1.bf16.msra.mxu0 0
      %1059 = vmatprep.subr.bf16.mxu0 0
      %1060 = vmatpush1.bf16.msra.mxu0 0
      %1061 = vmatprep.subr.bf16.mxu0 0
      %1062 = vmatpush1.bf16.msra.mxu0 0
      %1063 = vmatprep.subr.bf16.mxu0 0
      %1064 = vmatpush1.bf16.msra.mxu0 0
      %1065 = vmatprep.subr.bf16.mxu0 0
      %1066 = vmatpush1.bf16.msra.mxu0 0
      %1067 = vmatprep.subr.bf16.mxu0 0
      %1068 = vmatpush1.bf16.msra.mxu0 0
      %1069 = vmatprep.subr.bf16.mxu0 0
      %1070 = vmatpush1.bf16.msra.mxu0 0
      %1071 = vmatprep.mubr.bf16.mxu0 0
      %1072 = vmatmul.mubr.bf16.gmra.mrb[0].mxu0 %v989
      %v1073 = vpop.f32.mrb[0].mxu0
      %v1074 = vadd.f32 %v782, %v1073
      %v1075 = vpop.f32.mrb[0].mxu0
      %v1076 = vpop.f32.mrb[0].mxu0
      %v1077 = vadd.f32 %v785, %v1076
      %v1078 = vpop.f32.mrb[0].mxu0
      %1079 = vmatprep.mubr.bf16.mxu0 0
      %1080 = vmatmul.mubr.bf16.gmra.mrb[0].mxu0 %v992
      %v1081 = vpop.f32.mrb[0].mxu0
      %v1082 = vadd.f32 %v790, %v1081
      %v1083 = vpop.f32.mrb[0].mxu0
      %v1084 = vpop.f32.mrb[0].mxu0
      %v1085 = vadd.f32 %v793, %v1084
      %v1086 = vpop.f32.mrb[0].mxu0
      %1087 = vmatprep.mubr.bf16.mxu0 0
      %1088 = vmatmul.mubr.bf16.gmra.mrb[0].mxu0 %v995
      %v1089 = vpop.f32.mrb[0].mxu0
      %v1090 = vadd.f32 %v798, %v1089
      %v1091 = vpop.f32.mrb[0].mxu0
      %v1092 = vpop.f32.mrb[0].mxu0
      %v1093 = vadd.f32 %v801, %v1092
      %v1094 = vpop.f32.mrb[0].mxu0
      %1095 = vmatprep.mubr.bf16.mxu0 0
      %1096 = vmatmul.mubr.bf16.gmra.mrb[0].mxu0 %v998
      %v1097 = vpop.f32.mrb[0].mxu0
      %v1098 = vadd.f32 %v806, %v1097
      %v1099 = vpop.f32.mrb[0].mxu0
      %v1100 = vpop.f32.mrb[0].mxu0
      %v1101 = vadd.f32 %v809, %v1100
      %v1102 = vpop.f32.mrb[0].mxu0
      %1103 = vmatprep.mubr.bf16.mxu0 0
      %1104 = vmatmul.mubr.bf16.gmra.mrb[0].mxu0 %v1001
      %v1105 = vpop.f32.mrb[0].mxu0
      %v1106 = vadd.f32 %v814, %v1105
      %v1107 = vpop.f32.mrb[0].mxu0
      %v1108 = vpop.f32.mrb[0].mxu0
      %v1109 = vadd.f32 %v817, %v1108
      %v1110 = vpop.f32.mrb[0].mxu0
      %1111 = vmatprep.mubr.bf16.mxu0 0
      %1112 = vmatmul.mubr.bf16.gmra.mrb[0].mxu0 %v1004
      %v1113 = vpop.f32.mrb[0].mxu0
      %v1114 = vadd.f32 %v822, %v1113
      %v1115 = vpop.f32.mrb[0].mxu0
      %v1116 = vpop.f32.mrb[0].mxu0
      %v1117 = vadd.f32 %v825, %v1116
      %v1118 = vpop.f32.mrb[0].mxu0
      %1119 = vmatprep.mubr.bf16.mxu0 0
      %1120 = vmatmul.mubr.bf16.gmra.mrb[0].mxu0 %v1007
      %v1121 = vpop.f32.mrb[0].mxu0
      %v1122 = vadd.f32 %v830, %v1121
      %v1123 = vpop.f32.mrb[0].mxu0
      %v1124 = vpop.f32.mrb[0].mxu0
      %v1125 = vadd.f32 %v833, %v1124
      %v1126 = vpop.f32.mrb[0].mxu0
      %1127 = vmatprep.mubr.bf16.mxu0 0
      %1128 = vmatmul.mubr.bf16.gmra.mrb[0].mxu0 %v1010
      %v1129 = vpop.f32.mrb[0].mxu0
      %v1130 = vadd.f32 %v838, %v1129
      %v1131 = vpop.f32.mrb[0].mxu0
      %v1132 = vpop.f32.mrb[0].mxu0
      %v1133 = vadd.f32 %v841, %v1132
      %v1134 = vpop.f32.mrb[0].mxu0
      %1135 = vmatprep.mubr.bf16.mxu0 0
      %1136 = vmatmul.mubr.bf16.gmra.mrb[0].mxu0 %v1013
      %v1137 = vpop.f32.mrb[0].mxu0
      %v1138 = vadd.f32 %v846, %v1137
      %v1139 = vpop.f32.mrb[0].mxu0
      %v1140 = vpop.f32.mrb[0].mxu0
      %v1141 = vadd.f32 %v849, %v1140
      %v1142 = vpop.f32.mrb[0].mxu0
      %1143 = vmatprep.mubr.bf16.mxu0 0
      %1144 = vmatmul.mubr.bf16.gmra.mrb[0].mxu0 %v1016
      %v1145 = vpop.f32.mrb[0].mxu0
      %v1146 = vadd.f32 %v854, %v1145
      %v1147 = vpop.f32.mrb[0].mxu0
      %v1148 = vpop.f32.mrb[0].mxu0
      %v1149 = vadd.f32 %v857, %v1148
      %v1150 = vpop.f32.mrb[0].mxu0
      %1151 = vmatprep.mubr.bf16.mxu0 0
      %1152 = vmatmul.mubr.bf16.gmra.mrb[0].mxu0 %v1019
      %v1153 = vpop.f32.mrb[0].mxu0
      %v1154 = vadd.f32 %v862, %v1153
      %v1155 = vpop.f32.mrb[0].mxu0
      %v1156 = vpop.f32.mrb[0].mxu0
      %v1157 = vadd.f32 %v865, %v1156
      %v1158 = vpop.f32.mrb[0].mxu0
      %1159 = vmatprep.mubr.bf16.mxu0 0
      %1160 = vmatmul.mubr.bf16.gmra.mrb[0].mxu0 %v1022
      %v1161 = vpop.f32.mrb[0].mxu0
      %v1162 = vadd.f32 %v870, %v1161
      %v1163 = vpop.f32.mrb[0].mxu0
      %v1164 = vpop.f32.mrb[0].mxu0
      %v1165 = vadd.f32 %v873, %v1164
      %v1166 = vpop.f32.mrb[0].mxu0
      %1167 = vmatprep.mubr.bf16.mxu0 0
      %1168 = vmatmul.mubr.bf16.gmra.mrb[0].mxu0 %v1025
      %v1169 = vpop.f32.mrb[0].mxu0
      %v1170 = vadd.f32 %v878, %v1169
      %v1171 = vpop.f32.mrb[0].mxu0
      %v1172 = vpop.f32.mrb[0].mxu0
      %v1173 = vadd.f32 %v881, %v1172
      %v1174 = vpop.f32.mrb[0].mxu0
      %1175 = vmatprep.mubr.bf16.mxu0 0
      %1176 = vmatmul.mubr.bf16.gmra.mrb[0].mxu0 %v1028
      %v1177 = vpop.f32.mrb[0].mxu0
      %v1178 = vadd.f32 %v886, %v1177
      %v1179 = vpop.f32.mrb[0].mxu0
      %v1180 = vpop.f32.mrb[0].mxu0
      %v1181 = vadd.f32 %v889, %v1180
      %v1182 = vpop.f32.mrb[0].mxu0
      %1183 = vmatprep.mubr.bf16.mxu0 0
      %1184 = vmatmul.mubr.bf16.gmra.mrb[0].mxu0 %v1031
      %v1185 = vpop.f32.mrb[0].mxu0
      %v1186 = vadd.f32 %v894, %v1185
      %v1187 = vpop.f32.mrb[0].mxu0
      %v1188 = vpop.f32.mrb[0].mxu0
      %v1189 = vadd.f32 %v897, %v1188
      %v1190 = vpop.f32.mrb[0].mxu0
      %1191 = vmatprep.mubr.bf16.mxu0 0
      %1192 = vmatmul.mubr.bf16.gmra.mrb[0].mxu0 %v1034
      %v1193 = vpop.f32.mrb[0].mxu0
      %v1194 = vadd.f32 %v902, %v1193
      %v1195 = vpop.f32.mrb[0].mxu0
      %v1196 = vpop.f32.mrb[0].mxu0
      %v1197 = vadd.f32 %v905, %v1196
      %v1198 = vpop.f32.mrb[0].mxu0
      %1199 = vdwg.mxu0
      %v1200 = vld [vmem:[%s197] sm:$0xe]
      %v1201 = vld [vmem:[%s197 + $0xc] sm:$0xe]
      %v1202 = vld [vmem:[%s197 + $0x18] sm:$0xe]
      %v1203 = vld [vmem:[%s197 + $0x24] sm:$0xe]
      %v1204 = vld [vmem:[%s197 + $0x30] sm:$0xe]
      %v1205 = vld [vmem:[%s197 + $0x3c] sm:$0xe]
      %v1206 = vld [vmem:[%s197 + $0x48] sm:$0xe]
      %v1207 = vld [vmem:[%s197 + $0x54] sm:$0xe]
      %v1208 = vld [vmem:[%s197 + $0x60] sm:$0xe]
      %v1209 = vld [vmem:[%s197 + $0x6c] sm:$0xe]
      %v1210 = vld [vmem:[%s197 + $0x78] sm:$0xe]
      %v1211 = vld [vmem:[%s197 + $0x84] sm:$0xe]
      %v1212 = vld [vmem:[%s197 + $0x90] sm:$0xe]
      %v1213 = vld [vmem:[%s197 + $0x9c] sm:$0xe]
      %v1214 = vld [vmem:[%s197 + $0xa8] sm:$0xe]
      %v1215 = vld [vmem:[%s197 + $0xb4] sm:$0xe]
      %vm1248 = vcmask 1042432
      %vm1249 = vcmask 1046532
      %vm1250 = vmor %vm1248, %vm1249
      %v1251 = vrot.slane %v1200, 5
      %v1252 = vrot.slane %v1251, 4
      %v1253 = vrot.slane %v209, 5
      %v1254 = vsel %vm1250, %v1252, %v1253
      %v1255 = vrot.slane %v1253, 4
      %v1256 = vrot.slane %v241, 5
      %v1257 = vsel %vm1250, %v1255, %v1256
      %v1258 = vrot.slane %v1201, 5
      %v1259 = vrot.slane %v1258, 4
      %v1260 = vrot.slane %v211, 5
      %v1261 = vsel %vm1250, %v1259, %v1260
      %v1262 = vrot.slane %v1260, 4
      %v1263 = vrot.slane %v242, 5
      %v1264 = vsel %vm1250, %v1262, %v1263
      %v1265 = vrot.slane %v1202, 5
      %v1266 = vrot.slane %v1265, 4
      %v1267 = vrot.slane %v213, 5
      %v1268 = vsel %vm1250, %v1266, %v1267
      %v1269 = vrot.slane %v1267, 4
      %v1270 = vrot.slane %v243, 5
      %v1271 = vsel %vm1250, %v1269, %v1270
      %v1272 = vrot.slane %v1203, 5
      %v1273 = vrot.slane %v1272, 4
      %v1274 = vrot.slane %v215, 5
      %v1275 = vsel %vm1250, %v1273, %v1274
      %v1276 = vrot.slane %v1274, 4
      %v1277 = vrot.slane %v244, 5
      %v1278 = vsel %vm1250, %v1276, %v1277
      %v1279 = vrot.slane %v1204, 5
      %v1280 = vrot.slane %v1279, 4
      %v1281 = vrot.slane %v217, 5
      %v1282 = vsel %vm1250, %v1280, %v1281
      %v1283 = vrot.slane %v1281, 4
      %v1284 = vrot.slane %v245, 5
      %v1285 = vsel %vm1250, %v1283, %v1284
      %v1286 = vrot.slane %v1205, 5
      %v1287 = vrot.slane %v1286, 4
      %v1288 = vrot.slane %v219, 5
      %v1289 = vsel %vm1250, %v1287, %v1288
      %v1290 = vrot.slane %v1288, 4
      %v1291 = vrot.slane %v246, 5
      %v1292 = vsel %vm1250, %v1290, %v1291
      %v1293 = vrot.slane %v1206, 5
      %v1294 = vrot.slane %v1293, 4
      %v1295 = vrot.slane %v221, 5
      %v1296 = vsel %vm1250, %v1294, %v1295
      %v1297 = vrot.slane %v1295, 4
      %v1298 = vrot.slane %v247, 5
      %v1299 = vsel %vm1250, %v1297, %v1298
      %v1300 = vrot.slane %v1207, 5
      %v1301 = vrot.slane %v1300, 4
      %v1302 = vrot.slane %v223, 5
      %v1303 = vsel %vm1250, %v1301, %v1302
      %v1304 = vrot.slane %v1302, 4
      %v1305 = vrot.slane %v248, 5
      %v1306 = vsel %vm1250, %v1304, %v1305
      %v1307 = vrot.slane %v1208, 5
      %v1308 = vrot.slane %v1307, 4
      %v1309 = vrot.slane %v225, 5
      %v1310 = vsel %vm1250, %v1308, %v1309
      %v1311 = vrot.slane %v1309, 4
      %v1312 = vrot.slane %v249, 5
      %v1313 = vsel %vm1250, %v1311, %v1312
      %v1314 = vrot.slane %v1209, 5
      %v1315 = vrot.slane %v1314, 4
      %v1316 = vrot.slane %v227, 5
      %v1317 = vsel %vm1250, %v1315, %v1316
      %v1318 = vrot.slane %v1316, 4
      %v1319 = vrot.slane %v250, 5
      %v1320 = vsel %vm1250, %v1318, %v1319
      %v1321 = vrot.slane %v1210, 5
      %v1322 = vrot.slane %v1321, 4
      %v1323 = vrot.slane %v229, 5
      %v1324 = vsel %vm1250, %v1322, %v1323
      %v1325 = vrot.slane %v1323, 4
      %v1326 = vrot.slane %v251, 5
      %v1327 = vsel %vm1250, %v1325, %v1326
      %v1328 = vrot.slane %v1211, 5
      %v1329 = vrot.slane %v1328, 4
      %v1330 = vrot.slane %v231, 5
      %v1331 = vsel %vm1250, %v1329, %v1330
      %v1332 = vrot.slane %v1330, 4
      %v1333 = vrot.slane %v252, 5
      %v1334 = vsel %vm1250, %v1332, %v1333
      %v1335 = vrot.slane %v1212, 5
      %v1336 = vrot.slane %v1335, 4
      %v1337 = vrot.slane %v233, 5
      %v1338 = vsel %vm1250, %v1336, %v1337
      %v1339 = vrot.slane %v1337, 4
      %v1340 = vrot.slane %v253, 5
      %v1341 = vsel %vm1250, %v1339, %v1340
      %v1342 = vrot.slane %v1213, 5
      %v1343 = vrot.slane %v1342, 4
      %v1344 = vrot.slane %v235, 5
      %v1345 = vsel %vm1250, %v1343, %v1344
      %v1346 = vrot.slane %v1344, 4
      %v1347 = vrot.slane %v254, 5
      %v1348 = vsel %vm1250, %v1346, %v1347
      %v1349 = vrot.slane %v1214, 5
      %v1350 = vrot.slane %v1349, 4
      %v1351 = vrot.slane %v237, 5
      %v1352 = vsel %vm1250, %v1350, %v1351
      %v1353 = vrot.slane %v1351, 4
      %v1354 = vrot.slane %v255, 5
      %v1355 = vsel %vm1250, %v1353, %v1354
      %v1356 = vrot.slane %v1215, 5
      %v1357 = vrot.slane %v1356, 4
      %v1358 = vrot.slane %v239, 5
      %v1359 = vsel %vm1250, %v1357, %v1358
      %v1360 = vrot.slane %v1358, 4
      %v1361 = vrot.slane %v256, 5
      %v1362 = vsel %vm1250, %v1360, %v1361
      %s1363 = scalar_lea.vmem %s1, 4
      %v1364 = vld [vmem:[%s1363] sm:$0x3]
      %v1365 = vunpack.c.l.b16 %v1254
      %v1366 = vunpack.c.l.b16 %v1257
      %v1367 = vunpack.c.l.b16 %v1261
      %v1368 = vunpack.c.l.b16 %v1264
      %v1369 = vunpack.c.l.b16 %v1268
      %v1370 = vunpack.c.l.b16 %v1271
      %v1371 = vunpack.c.l.b16 %v1275
      %v1372 = vunpack.c.l.b16 %v1278
      %v1373 = vunpack.c.l.b16 %v1282
      %v1374 = vunpack.c.l.b16 %v1285
      %v1375 = vunpack.c.l.b16 %v1289
      %v1376 = vunpack.c.l.b16 %v1292
      %v1377 = vunpack.c.l.b16 %v1296
      %v1378 = vunpack.c.l.b16 %v1299
      %v1379 = vunpack.c.l.b16 %v1303
      %v1380 = vunpack.c.l.b16 %v1306
      %v1381 = vunpack.c.l.b16 %v1310
      %v1382 = vunpack.c.l.b16 %v1313
      %v1383 = vunpack.c.l.b16 %v1317
      %v1384 = vunpack.c.l.b16 %v1320
      %v1385 = vunpack.c.l.b16 %v1324
      %v1386 = vunpack.c.l.b16 %v1327
      %v1387 = vunpack.c.l.b16 %v1331
      %v1388 = vunpack.c.l.b16 %v1334
      %v1389 = vunpack.c.l.b16 %v1338
      %v1390 = vunpack.c.l.b16 %v1341
      %v1391 = vunpack.c.l.b16 %v1345
      %v1392 = vunpack.c.l.b16 %v1348
      %v1393 = vunpack.c.l.b16 %v1352
      %v1394 = vunpack.c.l.b16 %v1355
      %v1395 = vunpack.c.l.b16 %v1359
      %v1396 = vunpack.c.l.b16 %v1362
      %v1397 = vpack.c.b16 %v1366, %v1365
      %v1398 = vpack.c.b16 %v1368, %v1367
      %v1399 = vpack.c.b16 %v1370, %v1369
      %v1400 = vpack.c.b16 %v1372, %v1371
      %v1401 = vpack.c.b16 %v1374, %v1373
      %v1402 = vpack.c.b16 %v1376, %v1375
      %v1403 = vpack.c.b16 %v1378, %v1377
      %v1404 = vpack.c.b16 %v1380, %v1379
      %v1405 = vpack.c.b16 %v1382, %v1381
      %v1406 = vpack.c.b16 %v1384, %v1383
      %v1407 = vpack.c.b16 %v1386, %v1385
      %v1408 = vpack.c.b16 %v1388, %v1387
      %v1409 = vpack.c.b16 %v1390, %v1389
      %v1410 = vpack.c.b16 %v1392, %v1391
      %v1411 = vpack.c.b16 %v1394, %v1393
      %v1412 = vpack.c.b16 %v1396, %v1395
      %v1414 = vsel %vm694, %v1397, 0
      %v1417 = vsel %vm694, %v1398, 0
      %v1420 = vsel %vm694, %v1399, 0
      %v1423 = vsel %vm694, %v1400, 0
      %v1426 = vsel %vm694, %v1401, 0
      %v1429 = vsel %vm694, %v1402, 0
      %v1432 = vsel %vm694, %v1403, 0
      %v1435 = vsel %vm694, %v1404, 0
      %v1438 = vsel %vm694, %v1405, 0
      %v1441 = vsel %vm694, %v1406, 0
      %v1444 = vsel %vm694, %v1407, 0
      %v1447 = vsel %vm694, %v1408, 0
      %v1450 = vsel %vm694, %v1409, 0
      %v1453 = vsel %vm694, %v1410, 0
      %v1456 = vsel %vm694, %v1411, 0
      %v1459 = vsel %vm694, %v1412, 0
      %v1462 = vsel %vm743, %v1364, 0
      %1464 = vmatprep.subr.bf16.mxu0 0
      %1465 = vmatpush1.bf16.msra.mxu0 %v1462
      %1466 = vmatprep.subr.bf16.mxu0 0
      %1467 = vmatpush1.bf16.msra.mxu0 0
      %1468 = vmatprep.subr.bf16.mxu0 0
      %1469 = vmatpush1.bf16.msra.mxu0 0
      %1470 = vmatprep.subr.bf16.mxu0 0
      %1471 = vmatpush1.bf16.msra.mxu0 0
      %1472 = vmatprep.subr.bf16.mxu0 0
      %1473 = vmatpush1.bf16.msra.mxu0 0
      %1474 = vmatprep.subr.bf16.mxu0 0
      %1475 = vmatpush1.bf16.msra.mxu0 0
      %1476 = vmatprep.subr.bf16.mxu0 0
      %1477 = vmatpush1.bf16.msra.mxu0 0
      %1478 = vmatprep.subr.bf16.mxu0 0
      %1479 = vmatpush1.bf16.msra.mxu0 0
      %1480 = vmatprep.subr.bf16.mxu0 0
      %1481 = vmatpush1.bf16.msra.mxu0 0
      %1482 = vmatprep.subr.bf16.mxu0 0
      %1483 = vmatpush1.bf16.msra.mxu0 0
      %1484 = vmatprep.subr.bf16.mxu0 0
      %1485 = vmatpush1.bf16.msra.mxu0 0
      %1486 = vmatprep.subr.bf16.mxu0 0
      %1487 = vmatpush1.bf16.msra.mxu0 0
      %1488 = vmatprep.subr.bf16.mxu0 0
      %1489 = vmatpush1.bf16.msra.mxu0 0
      %1490 = vmatprep.subr.bf16.mxu0 0
      %1491 = vmatpush1.bf16.msra.mxu0 0
      %1492 = vmatprep.subr.bf16.mxu0 0
      %1493 = vmatpush1.bf16.msra.mxu0 0
      %1494 = vmatprep.subr.bf16.mxu0 0
      %1495 = vmatpush1.bf16.msra.mxu0 0
      %1496 = vmatprep.mubr.bf16.mxu0 0
      %1497 = vmatmul.mubr.bf16.gmra.mrb[0].mxu0 %v1414
      %v1498 = vpop.f32.mrb[0].mxu0
      %v1499 = vadd.f32 0.0, %v1498
      %v1500 = vpop.f32.mrb[0].mxu0
      %v1501 = vpop.f32.mrb[0].mxu0
      %v1502 = vadd.f32 0.0, %v1501
      %v1503 = vpop.f32.mrb[0].mxu0
      %1504 = vmatprep.mubr.bf16.mxu0 0
      %1505 = vmatmul.mubr.bf16.gmra.mrb[0].mxu0 %v1417
      %v1506 = vpop.f32.mrb[0].mxu0
      %v1507 = vadd.f32 0.0, %v1506
      %v1508 = vpop.f32.mrb[0].mxu0
      %v1509 = vpop.f32.mrb[0].mxu0
      %v1510 = vadd.f32 0.0, %v1509
      %v1511 = vpop.f32.mrb[0].mxu0
      %1512 = vmatprep.mubr.bf16.mxu0 0
      %1513 = vmatmul.mubr.bf16.gmra.mrb[0].mxu0 %v1420
      %v1514 = vpop.f32.mrb[0].mxu0
      %v1515 = vadd.f32 0.0, %v1514
      %v1516 = vpop.f32.mrb[0].mxu0
      %v1517 = vpop.f32.mrb[0].mxu0
      %v1518 = vadd.f32 0.0, %v1517
      %v1519 = vpop.f32.mrb[0].mxu0
      %1520 = vmatprep.mubr.bf16.mxu0 0
      %1521 = vmatmul.mubr.bf16.gmra.mrb[0].mxu0 %v1423
      %v1522 = vpop.f32.mrb[0].mxu0
      %v1523 = vadd.f32 0.0, %v1522
      %v1524 = vpop.f32.mrb[0].mxu0
      %v1525 = vpop.f32.mrb[0].mxu0
      %v1526 = vadd.f32 0.0, %v1525
      %v1527 = vpop.f32.mrb[0].mxu0
      %1528 = vmatprep.mubr.bf16.mxu0 0
      %1529 = vmatmul.mubr.bf16.gmra.mrb[0].mxu0 %v1426
      %v1530 = vpop.f32.mrb[0].mxu0
      %v1531 = vadd.f32 0.0, %v1530
      %v1532 = vpop.f32.mrb[0].mxu0
      %v1533 = vpop.f32.mrb[0].mxu0
      %v1534 = vadd.f32 0.0, %v1533
      %v1535 = vpop.f32.mrb[0].mxu0
      %1536 = vmatprep.mubr.bf16.mxu0 0
      %1537 = vmatmul.mubr.bf16.gmra.mrb[0].mxu0 %v1429
      %v1538 = vpop.f32.mrb[0].mxu0
      %v1539 = vadd.f32 0.0, %v1538
      %v1540 = vpop.f32.mrb[0].mxu0
      %v1541 = vpop.f32.mrb[0].mxu0
      %v1542 = vadd.f32 0.0, %v1541
      %v1543 = vpop.f32.mrb[0].mxu0
      %1544 = vmatprep.mubr.bf16.mxu0 0
      %1545 = vmatmul.mubr.bf16.gmra.mrb[0].mxu0 %v1432
      %v1546 = vpop.f32.mrb[0].mxu0
      %v1547 = vadd.f32 0.0, %v1546
      %v1548 = vpop.f32.mrb[0].mxu0
      %v1549 = vpop.f32.mrb[0].mxu0
      %v1550 = vadd.f32 0.0, %v1549
      %v1551 = vpop.f32.mrb[0].mxu0
      %1552 = vmatprep.mubr.bf16.mxu0 0
      %1553 = vmatmul.mubr.bf16.gmra.mrb[0].mxu0 %v1435
      %v1554 = vpop.f32.mrb[0].mxu0
      %v1555 = vadd.f32 0.0, %v1554
      %v1556 = vpop.f32.mrb[0].mxu0
      %v1557 = vpop.f32.mrb[0].mxu0
      %v1558 = vadd.f32 0.0, %v1557
      %v1559 = vpop.f32.mrb[0].mxu0
      %1560 = vmatprep.mubr.bf16.mxu0 0
      %1561 = vmatmul.mubr.bf16.gmra.mrb[0].mxu0 %v1438
      %v1562 = vpop.f32.mrb[0].mxu0
      %v1563 = vadd.f32 0.0, %v1562
      %v1564 = vpop.f32.mrb[0].mxu0
      %v1565 = vpop.f32.mrb[0].mxu0
      %v1566 = vadd.f32 0.0, %v1565
      %v1567 = vpop.f32.mrb[0].mxu0
      %1568 = vmatprep.mubr.bf16.mxu0 0
      %1569 = vmatmul.mubr.bf16.gmra.mrb[0].mxu0 %v1441
      %v1570 = vpop.f32.mrb[0].mxu0
      %v1571 = vadd.f32 0.0, %v1570
      %v1572 = vpop.f32.mrb[0].mxu0
      %v1573 = vpop.f32.mrb[0].mxu0
      %v1574 = vadd.f32 0.0, %v1573
      %v1575 = vpop.f32.mrb[0].mxu0
      %1576 = vmatprep.mubr.bf16.mxu0 0
      %1577 = vmatmul.mubr.bf16.gmra.mrb[0].mxu0 %v1444
      %v1578 = vpop.f32.mrb[0].mxu0
      %v1579 = vadd.f32 0.0, %v1578
      %v1580 = vpop.f32.mrb[0].mxu0
      %v1581 = vpop.f32.mrb[0].mxu0
      %v1582 = vadd.f32 0.0, %v1581
      %v1583 = vpop.f32.mrb[0].mxu0
      %1584 = vmatprep.mubr.bf16.mxu0 0
      %1585 = vmatmul.mubr.bf16.gmra.mrb[0].mxu0 %v1447
      %v1586 = vpop.f32.mrb[0].mxu0
      %v1587 = vadd.f32 0.0, %v1586
      %v1588 = vpop.f32.mrb[0].mxu0
      %v1589 = vpop.f32.mrb[0].mxu0
      %v1590 = vadd.f32 0.0, %v1589
      %v1591 = vpop.f32.mrb[0].mxu0
      %1592 = vmatprep.mubr.bf16.mxu0 0
      %1593 = vmatmul.mubr.bf16.gmra.mrb[0].mxu0 %v1450
      %v1594 = vpop.f32.mrb[0].mxu0
      %v1595 = vadd.f32 0.0, %v1594
      %v1596 = vpop.f32.mrb[0].mxu0
      %v1597 = vpop.f32.mrb[0].mxu0
      %v1598 = vadd.f32 0.0, %v1597
      %v1599 = vpop.f32.mrb[0].mxu0
      %1600 = vmatprep.mubr.bf16.mxu0 0
      %1601 = vmatmul.mubr.bf16.gmra.mrb[0].mxu0 %v1453
      %v1602 = vpop.f32.mrb[0].mxu0
      %v1603 = vadd.f32 0.0, %v1602
      %v1604 = vpop.f32.mrb[0].mxu0
      %v1605 = vpop.f32.mrb[0].mxu0
      %v1606 = vadd.f32 0.0, %v1605
      %v1607 = vpop.f32.mrb[0].mxu0
      %1608 = vmatprep.mubr.bf16.mxu0 0
      %1609 = vmatmul.mubr.bf16.gmra.mrb[0].mxu0 %v1456
      %v1610 = vpop.f32.mrb[0].mxu0
      %v1611 = vadd.f32 0.0, %v1610
      %v1612 = vpop.f32.mrb[0].mxu0
      %v1613 = vpop.f32.mrb[0].mxu0
      %v1614 = vadd.f32 0.0, %v1613
      %v1615 = vpop.f32.mrb[0].mxu0
      %1616 = vmatprep.mubr.bf16.mxu0 0
      %1617 = vmatmul.mubr.bf16.gmra.mrb[0].mxu0 %v1459
      %v1618 = vpop.f32.mrb[0].mxu0
      %v1619 = vadd.f32 0.0, %v1618
      %v1620 = vpop.f32.mrb[0].mxu0
      %v1621 = vpop.f32.mrb[0].mxu0
      %v1622 = vadd.f32 0.0, %v1621
      %v1623 = vpop.f32.mrb[0].mxu0
      %1624 = vdwg.mxu0
      %v1625 = vadd.f32 %v1074, %v1499
      %v1626 = vadd.f32 %v1077, %v1502
      %v1627 = vadd.f32 %v1082, %v1507
      %v1628 = vadd.f32 %v1085, %v1510
      %v1629 = vadd.f32 %v1090, %v1515
      %v1630 = vadd.f32 %v1093, %v1518
      %v1631 = vadd.f32 %v1098, %v1523
      %v1632 = vadd.f32 %v1101, %v1526
      %v1633 = vadd.f32 %v1106, %v1531
      %v1634 = vadd.f32 %v1109, %v1534
      %v1635 = vadd.f32 %v1114, %v1539
      %v1636 = vadd.f32 %v1117, %v1542
      %v1637 = vadd.f32 %v1122, %v1547
      %v1638 = vadd.f32 %v1125, %v1550
      %v1639 = vadd.f32 %v1130, %v1555
      %v1640 = vadd.f32 %v1133, %v1558
      %v1641 = vadd.f32 %v1138, %v1563
      %v1642 = vadd.f32 %v1141, %v1566
      %v1643 = vadd.f32 %v1146, %v1571
      %v1644 = vadd.f32 %v1149, %v1574
      %v1645 = vadd.f32 %v1154, %v1579
      %v1646 = vadd.f32 %v1157, %v1582
      %v1647 = vadd.f32 %v1162, %v1587
      %v1648 = vadd.f32 %v1165, %v1590
      %v1649 = vadd.f32 %v1170, %v1595
      %v1650 = vadd.f32 %v1173, %v1598
      %v1651 = vadd.f32 %v1178, %v1603
      %v1652 = vadd.f32 %v1181, %v1606
      %v1653 = vadd.f32 %v1186, %v1611
      %v1654 = vadd.f32 %v1189, %v1614
      %v1655 = vadd.f32 %v1194, %v1619
      %v1656 = vadd.f32 %v1197, %v1622
      %s1657 = scalar_lea.vmem %s197, 12
      %v1658 = vld [vmem:[%s1657] sm:$0xf]
      %v1659 = vld [vmem:[%s1657 + $0x4] sm:$0xf]
      %v1660 = vld [vmem:[%s1657 + $0xc] sm:$0xf]
      %v1661 = vld [vmem:[%s1657 + $0x10] sm:$0xf]
      %v1662 = vld [vmem:[%s1657 + $0x18] sm:$0xf]
      %v1663 = vld [vmem:[%s1657 + $0x1c] sm:$0xf]
      %v1664 = vld [vmem:[%s1657 + $0x24] sm:$0xf]
      %v1665 = vld [vmem:[%s1657 + $0x28] sm:$0xf]
      %v1666 = vld [vmem:[%s1657 + $0x30] sm:$0xf]
      %v1667 = vld [vmem:[%s1657 + $0x34] sm:$0xf]
      %v1668 = vld [vmem:[%s1657 + $0x3c] sm:$0xf]
      %v1669 = vld [vmem:[%s1657 + $0x40] sm:$0xf]
      %v1670 = vld [vmem:[%s1657 + $0x48] sm:$0xf]
      %v1671 = vld [vmem:[%s1657 + $0x4c] sm:$0xf]
      %v1672 = vld [vmem:[%s1657 + $0x54] sm:$0xf]
      %v1673 = vld [vmem:[%s1657 + $0x58] sm:$0xf]
      %v1674 = vld [vmem:[%s1657 + $0x60] sm:$0xf]
      %v1675 = vld [vmem:[%s1657 + $0x64] sm:$0xf]
      %v1676 = vld [vmem:[%s1657 + $0x6c] sm:$0xf]
      %v1677 = vld [vmem:[%s1657 + $0x70] sm:$0xf]
      %v1678 = vld [vmem:[%s1657 + $0x78] sm:$0xf]
      %v1679 = vld [vmem:[%s1657 + $0x7c] sm:$0xf]
      %v1680 = vld [vmem:[%s1657 + $0x84] sm:$0xf]
      %v1681 = vld [vmem:[%s1657 + $0x88] sm:$0xf]
      %v1682 = vld [vmem:[%s1657 + $0x90] sm:$0xf]
      %v1683 = vld [vmem:[%s1657 + $0x94] sm:$0xf]
      %v1684 = vld [vmem:[%s1657 + $0x9c] sm:$0xf]
      %v1685 = vld [vmem:[%s1657 + $0xa0] sm:$0xf]
      %v1686 = vld [vmem:[%s1657 + $0xa8] sm:$0xf]
      %v1687 = vld [vmem:[%s1657 + $0xac] sm:$0xf]
      %v1688 = vld [vmem:[%s1657 + $0xb4] sm:$0xf]
      %v1689 = vld [vmem:[%s1657 + $0xb8] sm:$0xf]
      %s1690 = scalar_lea.vmem %s1, 6
      %v1691 = vld [vmem:[%s1690] sm:$0x3]
      %v1724 = vunpack.c.l.b16 %v1658
      %v1725 = vunpack.c.l.b16 %v1659
      %v1726 = vunpack.c.l.b16 %v1660
      %v1727 = vunpack.c.l.b16 %v1661
      %v1728 = vunpack.c.l.b16 %v1662
      %v1729 = vunpack.c.l.b16 %v1663
      %v1730 = vunpack.c.l.b16 %v1664
      %v1731 = vunpack.c.l.b16 %v1665
      %v1732 = vunpack.c.l.b16 %v1666
      %v1733 = vunpack.c.l.b16 %v1667
      %v1734 = vunpack.c.l.b16 %v1668
      %v1735 = vunpack.c.l.b16 %v1669
      %v1736 = vunpack.c.l.b16 %v1670
      %v1737 = vunpack.c.l.b16 %v1671
      %v1738 = vunpack.c.l.b16 %v1672
      %v1739 = vunpack.c.l.b16 %v1673
      %v1740 = vunpack.c.l.b16 %v1674
      %v1741 = vunpack.c.l.b16 %v1675
      %v1742 = vunpack.c.l.b16 %v1676
      %v1743 = vunpack.c.l.b16 %v1677
      %v1744 = vunpack.c.l.b16 %v1678
      %v1745 = vunpack.c.l.b16 %v1679
      %v1746 = vunpack.c.l.b16 %v1680
      %v1747 = vunpack.c.l.b16 %v1681
      %v1748 = vunpack.c.l.b16 %v1682
      %v1749 = vunpack.c.l.b16 %v1683
      %v1750 = vunpack.c.l.b16 %v1684
      %v1751 = vunpack.c.l.b16 %v1685
      %v1752 = vunpack.c.l.b16 %v1686
      %v1753 = vunpack.c.l.b16 %v1687
      %v1754 = vunpack.c.l.b16 %v1688
      %v1755 = vunpack.c.l.b16 %v1689
      %v1756 = vpack.c.b16 %v1725, %v1724
      %v1757 = vpack.c.b16 %v1727, %v1726
      %v1758 = vpack.c.b16 %v1729, %v1728
      %v1759 = vpack.c.b16 %v1731, %v1730
      %v1760 = vpack.c.b16 %v1733, %v1732
      %v1761 = vpack.c.b16 %v1735, %v1734
      %v1762 = vpack.c.b16 %v1737, %v1736
      %v1763 = vpack.c.b16 %v1739, %v1738
      %v1764 = vpack.c.b16 %v1741, %v1740
      %v1765 = vpack.c.b16 %v1743, %v1742
      %v1766 = vpack.c.b16 %v1745, %v1744
      %v1767 = vpack.c.b16 %v1747, %v1746
      %v1768 = vpack.c.b16 %v1749, %v1748
      %v1769 = vpack.c.b16 %v1751, %v1750
      %v1770 = vpack.c.b16 %v1753, %v1752
      %v1771 = vpack.c.b16 %v1755, %v1754
      %v1773 = vsel %vm694, %v1756, 0
      %v1776 = vsel %vm694, %v1757, 0
      %v1779 = vsel %vm694, %v1758, 0
      %v1782 = vsel %vm694, %v1759, 0
      %v1785 = vsel %vm694, %v1760, 0
      %v1788 = vsel %vm694, %v1761, 0
      %v1791 = vsel %vm694, %v1762, 0
      %v1794 = vsel %vm694, %v1763, 0
      %v1797 = vsel %vm694, %v1764, 0
      %v1800 = vsel %vm694, %v1765, 0
      %v1803 = vsel %vm694, %v1766, 0
      %v1806 = vsel %vm694, %v1767, 0
      %v1809 = vsel %vm694, %v1768, 0
      %v1812 = vsel %vm694, %v1769, 0
      %v1815 = vsel %vm694, %v1770, 0
      %v1818 = vsel %vm694, %v1771, 0
      %v1821 = vsel %vm743, %v1691, 0
      %1823 = vmatprep.subr.bf16.mxu0 0
      %1824 = vmatpush1.bf16.msra.mxu0 %v1821
      %1825 = vmatprep.subr.bf16.mxu0 0
      %1826 = vmatpush1.bf16.msra.mxu0 0
      %1827 = vmatprep.subr.bf16.mxu0 0
      %1828 = vmatpush1.bf16.msra.mxu0 0
      %1829 = vmatprep.subr.bf16.mxu0 0
      %1830 = vmatpush1.bf16.msra.mxu0 0
      %1831 = vmatprep.subr.bf16.mxu0 0
      %1832 = vmatpush1.bf16.msra.mxu0 0
      %1833 = vmatprep.subr.bf16.mxu0 0
      %1834 = vmatpush1.bf16.msra.mxu0 0
      %1835 = vmatprep.subr.bf16.mxu0 0
      %1836 = vmatpush1.bf16.msra.mxu0 0
      %1837 = vmatprep.subr.bf16.mxu0 0
      %1838 = vmatpush1.bf16.msra.mxu0 0
      %1839 = vmatprep.subr.bf16.mxu0 0
      %1840 = vmatpush1.bf16.msra.mxu0 0
      %1841 = vmatprep.subr.bf16.mxu0 0
      %1842 = vmatpush1.bf16.msra.mxu0 0
      %1843 = vmatprep.subr.bf16.mxu0 0
      %1844 = vmatpush1.bf16.msra.mxu0 0
      %1845 = vmatprep.subr.bf16.mxu0 0
      %1846 = vmatpush1.bf16.msra.mxu0 0
      %1847 = vmatprep.subr.bf16.mxu0 0
      %1848 = vmatpush1.bf16.msra.mxu0 0
      %1849 = vmatprep.subr.bf16.mxu0 0
      %1850 = vmatpush1.bf16.msra.mxu0 0
      %1851 = vmatprep.subr.bf16.mxu0 0
      %1852 = vmatpush1.bf16.msra.mxu0 0
      %1853 = vmatprep.subr.bf16.mxu0 0
      %1854 = vmatpush1.bf16.msra.mxu0 0
      %1855 = vmatprep.mubr.bf16.mxu0 0
      %1856 = vmatmul.mubr.bf16.gmra.mrb[0].mxu0 %v1773
      %v1857 = vpop.f32.mrb[0].mxu0
      %v1858 = vadd.f32 0.0, %v1857
      %v1859 = vpop.f32.mrb[0].mxu0
      %v1860 = vpop.f32.mrb[0].mxu0
      %v1861 = vadd.f32 0.0, %v1860
      %v1862 = vpop.f32.mrb[0].mxu0
      %1863 = vmatprep.mubr.bf16.mxu0 0
      %1864 = vmatmul.mubr.bf16.gmra.mrb[0].mxu0 %v1776
      %v1865 = vpop.f32.mrb[0].mxu0
      %v1866 = vadd.f32 0.0, %v1865
      %v1867 = vpop.f32.mrb[0].mxu0
      %v1868 = vpop.f32.mrb[0].mxu0
      %v1869 = vadd.f32 0.0, %v1868
      %v1870 = vpop.f32.mrb[0].mxu0
      %1871 = vmatprep.mubr.bf16.mxu0 0
      %1872 = vmatmul.mubr.bf16.gmra.mrb[0].mxu0 %v1779
      %v1873 = vpop.f32.mrb[0].mxu0
      %v1874 = vadd.f32 0.0, %v1873
      %v1875 = vpop.f32.mrb[0].mxu0
      %v1876 = vpop.f32.mrb[0].mxu0
      %v1877 = vadd.f32 0.0, %v1876
      %v1878 = vpop.f32.mrb[0].mxu0
      %1879 = vmatprep.mubr.bf16.mxu0 0
      %1880 = vmatmul.mubr.bf16.gmra.mrb[0].mxu0 %v1782
      %v1881 = vpop.f32.mrb[0].mxu0
      %v1882 = vadd.f32 0.0, %v1881
      %v1883 = vpop.f32.mrb[0].mxu0
      %v1884 = vpop.f32.mrb[0].mxu0
      %v1885 = vadd.f32 0.0, %v1884
      %v1886 = vpop.f32.mrb[0].mxu0
      %1887 = vmatprep.mubr.bf16.mxu0 0
      %1888 = vmatmul.mubr.bf16.gmra.mrb[0].mxu0 %v1785
      %v1889 = vpop.f32.mrb[0].mxu0
      %v1890 = vadd.f32 0.0, %v1889
      %v1891 = vpop.f32.mrb[0].mxu0
      %v1892 = vpop.f32.mrb[0].mxu0
      %v1893 = vadd.f32 0.0, %v1892
      %v1894 = vpop.f32.mrb[0].mxu0
      %1895 = vmatprep.mubr.bf16.mxu0 0
      %1896 = vmatmul.mubr.bf16.gmra.mrb[0].mxu0 %v1788
      %v1897 = vpop.f32.mrb[0].mxu0
      %v1898 = vadd.f32 0.0, %v1897
      %v1899 = vpop.f32.mrb[0].mxu0
      %v1900 = vpop.f32.mrb[0].mxu0
      %v1901 = vadd.f32 0.0, %v1900
      %v1902 = vpop.f32.mrb[0].mxu0
      %1903 = vmatprep.mubr.bf16.mxu0 0
      %1904 = vmatmul.mubr.bf16.gmra.mrb[0].mxu0 %v1791
      %v1905 = vpop.f32.mrb[0].mxu0
      %v1906 = vadd.f32 0.0, %v1905
      %v1907 = vpop.f32.mrb[0].mxu0
      %v1908 = vpop.f32.mrb[0].mxu0
      %v1909 = vadd.f32 0.0, %v1908
      %v1910 = vpop.f32.mrb[0].mxu0
      %1911 = vmatprep.mubr.bf16.mxu0 0
      %1912 = vmatmul.mubr.bf16.gmra.mrb[0].mxu0 %v1794
      %v1913 = vpop.f32.mrb[0].mxu0
      %v1914 = vadd.f32 0.0, %v1913
      %v1915 = vpop.f32.mrb[0].mxu0
      %v1916 = vpop.f32.mrb[0].mxu0
      %v1917 = vadd.f32 0.0, %v1916
      %v1918 = vpop.f32.mrb[0].mxu0
      %1919 = vmatprep.mubr.bf16.mxu0 0
      %1920 = vmatmul.mubr.bf16.gmra.mrb[0].mxu0 %v1797
      %v1921 = vpop.f32.mrb[0].mxu0
      %v1922 = vadd.f32 0.0, %v1921
      %v1923 = vpop.f32.mrb[0].mxu0
      %v1924 = vpop.f32.mrb[0].mxu0
      %v1925 = vadd.f32 0.0, %v1924
      %v1926 = vpop.f32.mrb[0].mxu0
      %1927 = vmatprep.mubr.bf16.mxu0 0
      %1928 = vmatmul.mubr.bf16.gmra.mrb[0].mxu0 %v1800
      %v1929 = vpop.f32.mrb[0].mxu0
      %v1930 = vadd.f32 0.0, %v1929
      %v1931 = vpop.f32.mrb[0].mxu0
      %v1932 = vpop.f32.mrb[0].mxu0
      %v1933 = vadd.f32 0.0, %v1932
      %v1934 = vpop.f32.mrb[0].mxu0
      %1935 = vmatprep.mubr.bf16.mxu0 0
      %1936 = vmatmul.mubr.bf16.gmra.mrb[0].mxu0 %v1803
      %v1937 = vpop.f32.mrb[0].mxu0
      %v1938 = vadd.f32 0.0, %v1937
      %v1939 = vpop.f32.mrb[0].mxu0
      %v1940 = vpop.f32.mrb[0].mxu0
      %v1941 = vadd.f32 0.0, %v1940
      %v1942 = vpop.f32.mrb[0].mxu0
      %1943 = vmatprep.mubr.bf16.mxu0 0
      %1944 = vmatmul.mubr.bf16.gmra.mrb[0].mxu0 %v1806
      %v1945 = vpop.f32.mrb[0].mxu0
      %v1946 = vadd.f32 0.0, %v1945
      %v1947 = vpop.f32.mrb[0].mxu0
      %v1948 = vpop.f32.mrb[0].mxu0
      %v1949 = vadd.f32 0.0, %v1948
      %v1950 = vpop.f32.mrb[0].mxu0
      %1951 = vmatprep.mubr.bf16.mxu0 0
      %1952 = vmatmul.mubr.bf16.gmra.mrb[0].mxu0 %v1809
      %v1953 = vpop.f32.mrb[0].mxu0
      %v1954 = vadd.f32 0.0, %v1953
      %v1955 = vpop.f32.mrb[0].mxu0
      %v1956 = vpop.f32.mrb[0].mxu0
      %v1957 = vadd.f32 0.0, %v1956
      %v1958 = vpop.f32.mrb[0].mxu0
      %1959 = vmatprep.mubr.bf16.mxu0 0
      %1960 = vmatmul.mubr.bf16.gmra.mrb[0].mxu0 %v1812
      %v1961 = vpop.f32.mrb[0].mxu0
      %v1962 = vadd.f32 0.0, %v1961
      %v1963 = vpop.f32.mrb[0].mxu0
      %v1964 = vpop.f32.mrb[0].mxu0
      %v1965 = vadd.f32 0.0, %v1964
      %v1966 = vpop.f32.mrb[0].mxu0
      %1967 = vmatprep.mubr.bf16.mxu0 0
      %1968 = vmatmul.mubr.bf16.gmra.mrb[0].mxu0 %v1815
      %v1969 = vpop.f32.mrb[0].mxu0
      %v1970 = vadd.f32 0.0, %v1969
      %v1971 = vpop.f32.mrb[0].mxu0
      %v1972 = vpop.f32.mrb[0].mxu0
      %v1973 = vadd.f32 0.0, %v1972
      %v1974 = vpop.f32.mrb[0].mxu0
      %1975 = vmatprep.mubr.bf16.mxu0 0
      %1976 = vmatmul.mubr.bf16.gmra.mrb[0].mxu0 %v1818
      %v1977 = vpop.f32.mrb[0].mxu0
      %v1978 = vadd.f32 0.0, %v1977
      %v1979 = vpop.f32.mrb[0].mxu0
      %v1980 = vpop.f32.mrb[0].mxu0
      %v1981 = vadd.f32 0.0, %v1980
      %v1982 = vpop.f32.mrb[0].mxu0
      %1983 = vdwg.mxu0
      %v1984 = vadd.f32 %v1625, %v1858
      %v1985 = vadd.f32 %v1626, %v1861
      %v1986 = vadd.f32 %v1627, %v1866
      %v1987 = vadd.f32 %v1628, %v1869
      %v1988 = vadd.f32 %v1629, %v1874
      %v1989 = vadd.f32 %v1630, %v1877
      %v1990 = vadd.f32 %v1631, %v1882
      %v1991 = vadd.f32 %v1632, %v1885
      %v1992 = vadd.f32 %v1633, %v1890
      %v1993 = vadd.f32 %v1634, %v1893
      %v1994 = vadd.f32 %v1635, %v1898
      %v1995 = vadd.f32 %v1636, %v1901
      %v1996 = vadd.f32 %v1637, %v1906
      %v1997 = vadd.f32 %v1638, %v1909
      %v1998 = vadd.f32 %v1639, %v1914
      %v1999 = vadd.f32 %v1640, %v1917
      %v2000 = vadd.f32 %v1641, %v1922
      %v2001 = vadd.f32 %v1642, %v1925
      %v2002 = vadd.f32 %v1643, %v1930
      %v2003 = vadd.f32 %v1644, %v1933
      %v2004 = vadd.f32 %v1645, %v1938
      %v2005 = vadd.f32 %v1646, %v1941
      %v2006 = vadd.f32 %v1647, %v1946
      %v2007 = vadd.f32 %v1648, %v1949
      %v2008 = vadd.f32 %v1649, %v1954
      %v2009 = vadd.f32 %v1650, %v1957
      %v2010 = vadd.f32 %v1651, %v1962
      %v2011 = vadd.f32 %v1652, %v1965
      %v2012 = vadd.f32 %v1653, %v1970
      %v2013 = vadd.f32 %v1654, %v1973
      %v2014 = vadd.f32 %v1655, %v1978
      %v2015 = vadd.f32 %v1656, %v1981
      %v2016 = vld [vmem:[%s1657] sm:$0xf]
      %v2017 = vld [vmem:[%s1657 + $0x4] sm:$0xf]
      %v2018 = vld [vmem:[%s1657 + $0x8] sm:$0x1]
      %v2019 = vld [vmem:[%s1657 + $0xc] sm:$0xf]
      %v2020 = vld [vmem:[%s1657 + $0x10] sm:$0xf]
      %v2021 = vld [vmem:[%s1657 + $0x14] sm:$0x1]
      %v2022 = vld [vmem:[%s1657 + $0x18] sm:$0xf]
      %v2023 = vld [vmem:[%s1657 + $0x1c] sm:$0xf]
      %v2024 = vld [vmem:[%s1657 + $0x20] sm:$0x1]
      %v2025 = vld [vmem:[%s1657 + $0x24] sm:$0xf]
      %v2026 = vld [vmem:[%s1657 + $0x28] sm:$0xf]
      %v2027 = vld [vmem:[%s1657 + $0x2c] sm:$0x1]
      %v2028 = vld [vmem:[%s1657 + $0x30] sm:$0xf]
      %v2029 = vld [vmem:[%s1657 + $0x34] sm:$0xf]
      %v2030 = vld [vmem:[%s1657 + $0x38] sm:$0x1]
      %v2031 = vld [vmem:[%s1657 + $0x3c] sm:$0xf]
      %v2032 = vld [vmem:[%s1657 + $0x40] sm:$0xf]
      %v2033 = vld [vmem:[%s1657 + $0x44] sm:$0x1]
      %v2034 = vld [vmem:[%s1657 + $0x48] sm:$0xf]
      %v2035 = vld [vmem:[%s1657 + $0x4c] sm:$0xf]
      %v2036 = vld [vmem:[%s1657 + $0x50] sm:$0x1]
      %v2037 = vld [vmem:[%s1657 + $0x54] sm:$0xf]
      %v2038 = vld [vmem:[%s1657 + $0x58] sm:$0xf]
      %v2039 = vld [vmem:[%s1657 + $0x5c] sm:$0x1]
      %v2040 = vld [vmem:[%s1657 + $0x60] sm:$0xf]
      %v2041 = vld [vmem:[%s1657 + $0x64] sm:$0xf]
      %v2042 = vld [vmem:[%s1657 + $0x68] sm:$0x1]
      %v2043 = vld [vmem:[%s1657 + $0x6c] sm:$0xf]
      %v2044 = vld [vmem:[%s1657 + $0x70] sm:$0xf]
      %v2045 = vld [vmem:[%s1657 + $0x74] sm:$0x1]
      %v2046 = vld [vmem:[%s1657 + $0x78] sm:$0xf]
      %v2047 = vld [vmem:[%s1657 + $0x7c] sm:$0xf]
      %v2048 = vld [vmem:[%s1657 + $0x80] sm:$0x1]
      %v2049 = vld [vmem:[%s1657 + $0x84] sm:$0xf]
      %v2050 = vld [vmem:[%s1657 + $0x88] sm:$0xf]
      %v2051 = vld [vmem:[%s1657 + $0x8c] sm:$0x1]
      %v2052 = vld [vmem:[%s1657 + $0x90] sm:$0xf]
      %v2053 = vld [vmem:[%s1657 + $0x94] sm:$0xf]
      %v2054 = vld [vmem:[%s1657 + $0x98] sm:$0x1]
      %v2055 = vld [vmem:[%s1657 + $0x9c] sm:$0xf]
      %v2056 = vld [vmem:[%s1657 + $0xa0] sm:$0xf]
      %v2057 = vld [vmem:[%s1657 + $0xa4] sm:$0x1]
      %v2058 = vld [vmem:[%s1657 + $0xa8] sm:$0xf]
      %v2059 = vld [vmem:[%s1657 + $0xac] sm:$0xf]
      %v2060 = vld [vmem:[%s1657 + $0xb0] sm:$0x1]
      %v2061 = vld [vmem:[%s1657 + $0xb4] sm:$0xf]
      %v2062 = vld [vmem:[%s1657 + $0xb8] sm:$0xf]
      %v2063 = vld [vmem:[%s1657 + $0xbc] sm:$0x1]
      %v2065 = vshrl.u32 %v2016, 16
      %v2067 = vrot.slane %v2065, 4
      %v2068 = vshll.u32 %v2016, 16
      %v2070 = vrot.slane %v2068, 5
      %v2071 = vor.u32 %v2067, %v2070
      %v2072 = vrot.slane %v2071, 4
      %v2074 = vshll.u32 %v2017, 16
      %v2076 = vrot.slane %v2074, 5
      %v2077 = vsel %vm259, %v2072, %v2076
      %v2078 = vshrl.u32 %v2017, 16
      %v2080 = vrot.slane %v2078, 4
      %v2081 = vor.u32 %v2080, %v2076
      %v2082 = vrot.slane %v2081, 4
      %v2084 = vshll.u32 %v2018, 16
      %v2086 = vrot.slane %v2084, 5
      %v2087 = vsel %vm259, %v2082, %v2086
      %v2089 = vshrl.u32 %v2019, 16
      %v2091 = vrot.slane %v2089, 4
      %v2092 = vshll.u32 %v2019, 16
      %v2094 = vrot.slane %v2092, 5
      %v2095 = vor.u32 %v2091, %v2094
      %v2096 = vrot.slane %v2095, 4
      %v2098 = vshll.u32 %v2020, 16
      %v2100 = vrot.slane %v2098, 5
      %v2101 = vsel %vm259, %v2096, %v2100
      %v2102 = vshrl.u32 %v2020, 16
      %v2104 = vrot.slane %v2102, 4
      %v2105 = vor.u32 %v2104, %v2100
      %v2106 = vrot.slane %v2105, 4
      %v2108 = vshll.u32 %v2021, 16
      %v2110 = vrot.slane %v2108, 5
      %v2111 = vsel %vm259, %v2106, %v2110
      %v2113 = vshrl.u32 %v2022, 16
      %v2115 = vrot.slane %v2113, 4
      %v2116 = vshll.u32 %v2022, 16
      %v2118 = vrot.slane %v2116, 5
      %v2119 = vor.u32 %v2115, %v2118
      %v2120 = vrot.slane %v2119, 4
      %v2122 = vshll.u32 %v2023, 16
      %v2124 = vrot.slane %v2122, 5
      %v2125 = vsel %vm259, %v2120, %v2124
      %v2126 = vshrl.u32 %v2023, 16
      %v2128 = vrot.slane %v2126, 4
      %v2129 = vor.u32 %v2128, %v2124
      %v2130 = vrot.slane %v2129, 4
      %v2132 = vshll.u32 %v2024, 16
      %v2134 = vrot.slane %v2132, 5
      %v2135 = vsel %vm259, %v2130, %v2134
      %v2137 = vshrl.u32 %v2025, 16
      %v2139 = vrot.slane %v2137, 4
      %v2140 = vshll.u32 %v2025, 16
      %v2142 = vrot.slane %v2140, 5
      %v2143 = vor.u32 %v2139, %v2142
      %v2144 = vrot.slane %v2143, 4
      %v2146 = vshll.u32 %v2026, 16
      %v2148 = vrot.slane %v2146, 5
      %v2149 = vsel %vm259, %v2144, %v2148
      %v2150 = vshrl.u32 %v2026, 16
      %v2152 = vrot.slane %v2150, 4
      %v2153 = vor.u32 %v2152, %v2148
      %v2154 = vrot.slane %v2153, 4
      %v2156 = vshll.u32 %v2027, 16
      %v2158 = vrot.slane %v2156, 5
      %v2159 = vsel %vm259, %v2154, %v2158
      %v2161 = vshrl.u32 %v2028, 16
      %v2163 = vrot.slane %v2161, 4
      %v2164 = vshll.u32 %v2028, 16
      %v2166 = vrot.slane %v2164, 5
      %v2167 = vor.u32 %v2163, %v2166
      %v2168 = vrot.slane %v2167, 4
      %v2170 = vshll.u32 %v2029, 16
      %v2172 = vrot.slane %v2170, 5
      %v2173 = vsel %vm259, %v2168, %v2172
      %v2174 = vshrl.u32 %v2029, 16
      %v2176 = vrot.slane %v2174, 4
      %v2177 = vor.u32 %v2176, %v2172
      %v2178 = vrot.slane %v2177, 4
      %v2180 = vshll.u32 %v2030, 16
      %v2182 = vrot.slane %v2180, 5
      %v2183 = vsel %vm259, %v2178, %v2182
      %v2185 = vshrl.u32 %v2031, 16
      %v2187 = vrot.slane %v2185, 4
      %v2188 = vshll.u32 %v2031, 16
      %v2190 = vrot.slane %v2188, 5
      %v2191 = vor.u32 %v2187, %v2190
      %v2192 = vrot.slane %v2191, 4
      %v2194 = vshll.u32 %v2032, 16
      %v2196 = vrot.slane %v2194, 5
      %v2197 = vsel %vm259, %v2192, %v2196
      %v2198 = vshrl.u32 %v2032, 16
      %v2200 = vrot.slane %v2198, 4
      %v2201 = vor.u32 %v2200, %v2196
      %v2202 = vrot.slane %v2201, 4
      %v2204 = vshll.u32 %v2033, 16
      %v2206 = vrot.slane %v2204, 5
      %v2207 = vsel %vm259, %v2202, %v2206
      %v2209 = vshrl.u32 %v2034, 16
      %v2211 = vrot.slane %v2209, 4
      %v2212 = vshll.u32 %v2034, 16
      %v2214 = vrot.slane %v2212, 5
      %v2215 = vor.u32 %v2211, %v2214
      %v2216 = vrot.slane %v2215, 4
      %v2218 = vshll.u32 %v2035, 16
      %v2220 = vrot.slane %v2218, 5
      %v2221 = vsel %vm259, %v2216, %v2220
      %v2222 = vshrl.u32 %v2035, 16
      %v2224 = vrot.slane %v2222, 4
      %v2225 = vor.u32 %v2224, %v2220
      %v2226 = vrot.slane %v2225, 4
      %v2228 = vshll.u32 %v2036, 16
      %v2230 = vrot.slane %v2228, 5
      %v2231 = vsel %vm259, %v2226, %v2230
      %v2233 = vshrl.u32 %v2037, 16
      %v2235 = vrot.slane %v2233, 4
      %v2236 = vshll.u32 %v2037, 16
      %v2238 = vrot.slane %v2236, 5
      %v2239 = vor.u32 %v2235, %v2238
      %v2240 = vrot.slane %v2239, 4
      %v2242 = vshll.u32 %v2038, 16
      %v2244 = vrot.slane %v2242, 5
      %v2245 = vsel %vm259, %v2240, %v2244
      %v2246 = vshrl.u32 %v2038, 16
      %v2248 = vrot.slane %v2246, 4
      %v2249 = vor.u32 %v2248, %v2244
      %v2250 = vrot.slane %v2249, 4
      %v2252 = vshll.u32 %v2039, 16
      %v2254 = vrot.slane %v2252, 5
      %v2255 = vsel %vm259, %v2250, %v2254
      %v2257 = vshrl.u32 %v2040, 16
      %v2259 = vrot.slane %v2257, 4
      %v2260 = vshll.u32 %v2040, 16
      %v2262 = vrot.slane %v2260, 5
      %v2263 = vor.u32 %v2259, %v2262
      %v2264 = vrot.slane %v2263, 4
      %v2266 = vshll.u32 %v2041, 16
      %v2268 = vrot.slane %v2266, 5
      %v2269 = vsel %vm259, %v2264, %v2268
      %v2270 = vshrl.u32 %v2041, 16
      %v2272 = vrot.slane %v2270, 4
      %v2273 = vor.u32 %v2272, %v2268
      %v2274 = vrot.slane %v2273, 4
      %v2276 = vshll.u32 %v2042, 16
      %v2278 = vrot.slane %v2276, 5
      %v2279 = vsel %vm259, %v2274, %v2278
      %v2281 = vshrl.u32 %v2043, 16
      %v2283 = vrot.slane %v2281, 4
      %v2284 = vshll.u32 %v2043, 16
      %v2286 = vrot.slane %v2284, 5
      %v2287 = vor.u32 %v2283, %v2286
      %v2288 = vrot.slane %v2287, 4
      %v2290 = vshll.u32 %v2044, 16
      %v2292 = vrot.slane %v2290, 5
      %v2293 = vsel %vm259, %v2288, %v2292
      %v2294 = vshrl.u32 %v2044, 16
      %v2296 = vrot.slane %v2294, 4
      %v2297 = vor.u32 %v2296, %v2292
      %v2298 = vrot.slane %v2297, 4
      %v2300 = vshll.u32 %v2045, 16
      %v2302 = vrot.slane %v2300, 5
      %v2303 = vsel %vm259, %v2298, %v2302
      %v2305 = vshrl.u32 %v2046, 16
      %v2307 = vrot.slane %v2305, 4
      %v2308 = vshll.u32 %v2046, 16
      %v2310 = vrot.slane %v2308, 5
      %v2311 = vor.u32 %v2307, %v2310
      %v2312 = vrot.slane %v2311, 4
      %v2314 = vshll.u32 %v2047, 16
      %v2316 = vrot.slane %v2314, 5
      %v2317 = vsel %vm259, %v2312, %v2316
      %v2318 = vshrl.u32 %v2047, 16
      %v2320 = vrot.slane %v2318, 4
      %v2321 = vor.u32 %v2320, %v2316
      %v2322 = vrot.slane %v2321, 4
      %v2324 = vshll.u32 %v2048, 16
      %v2326 = vrot.slane %v2324, 5
      %v2327 = vsel %vm259, %v2322, %v2326
      %v2329 = vshrl.u32 %v2049, 16
      %v2331 = vrot.slane %v2329, 4
      %v2332 = vshll.u32 %v2049, 16
      %v2334 = vrot.slane %v2332, 5
      %v2335 = vor.u32 %v2331, %v2334
      %v2336 = vrot.slane %v2335, 4
      %v2338 = vshll.u32 %v2050, 16
      %v2340 = vrot.slane %v2338, 5
      %v2341 = vsel %vm259, %v2336, %v2340
      %v2342 = vshrl.u32 %v2050, 16
      %v2344 = vrot.slane %v2342, 4
      %v2345 = vor.u32 %v2344, %v2340
      %v2346 = vrot.slane %v2345, 4
      %v2348 = vshll.u32 %v2051, 16
      %v2350 = vrot.slane %v2348, 5
      %v2351 = vsel %vm259, %v2346, %v2350
      %v2353 = vshrl.u32 %v2052, 16
      %v2355 = vrot.slane %v2353, 4
      %v2356 = vshll.u32 %v2052, 16
      %v2358 = vrot.slane %v2356, 5
      %v2359 = vor.u32 %v2355, %v2358
      %v2360 = vrot.slane %v2359, 4
      %v2362 = vshll.u32 %v2053, 16
      %v2364 = vrot.slane %v2362, 5
      %v2365 = vsel %vm259, %v2360, %v2364
      %v2366 = vshrl.u32 %v2053, 16
      %v2368 = vrot.slane %v2366, 4
      %v2369 = vor.u32 %v2368, %v2364
      %v2370 = vrot.slane %v2369, 4
      %v2372 = vshll.u32 %v2054, 16
      %v2374 = vrot.slane %v2372, 5
      %v2375 = vsel %vm259, %v2370, %v2374
      %v2377 = vshrl.u32 %v2055, 16
      %v2379 = vrot.slane %v2377, 4
      %v2380 = vshll.u32 %v2055, 16
      %v2382 = vrot.slane %v2380, 5
      %v2383 = vor.u32 %v2379, %v2382
      %v2384 = vrot.slane %v2383, 4
      %v2386 = vshll.u32 %v2056, 16
      %v2388 = vrot.slane %v2386, 5
      %v2389 = vsel %vm259, %v2384, %v2388
      %v2390 = vshrl.u32 %v2056, 16
      %v2392 = vrot.slane %v2390, 4
      %v2393 = vor.u32 %v2392, %v2388
      %v2394 = vrot.slane %v2393, 4
      %v2396 = vshll.u32 %v2057, 16
      %v2398 = vrot.slane %v2396, 5
      %v2399 = vsel %vm259, %v2394, %v2398
      %v2401 = vshrl.u32 %v2058, 16
      %v2403 = vrot.slane %v2401, 4
      %v2404 = vshll.u32 %v2058, 16
      %v2406 = vrot.slane %v2404, 5
      %v2407 = vor.u32 %v2403, %v2406
      %v2408 = vrot.slane %v2407, 4
      %v2410 = vshll.u32 %v2059, 16
      %v2412 = vrot.slane %v2410, 5
      %v2413 = vsel %vm259, %v2408, %v2412
      %v2414 = vshrl.u32 %v2059, 16
      %v2416 = vrot.slane %v2414, 4
      %v2417 = vor.u32 %v2416, %v2412
      %v2418 = vrot.slane %v2417, 4
      %v2420 = vshll.u32 %v2060, 16
      %v2422 = vrot.slane %v2420, 5
      %v2423 = vsel %vm259, %v2418, %v2422
      %v2425 = vshrl.u32 %v2061, 16
      %v2427 = vrot.slane %v2425, 4
      %v2428 = vshll.u32 %v2061, 16
      %v2430 = vrot.slane %v2428, 5
      %v2431 = vor.u32 %v2427, %v2430
      %v2432 = vrot.slane %v2431, 4
      %v2434 = vshll.u32 %v2062, 16
      %v2436 = vrot.slane %v2434, 5
      %v2437 = vsel %vm259, %v2432, %v2436
      %v2438 = vshrl.u32 %v2062, 16
      %v2440 = vrot.slane %v2438, 4
      %v2441 = vor.u32 %v2440, %v2436
      %v2442 = vrot.slane %v2441, 4
      %v2444 = vshll.u32 %v2063, 16
      %v2446 = vrot.slane %v2444, 5
      %v2447 = vsel %vm259, %v2442, %v2446
      %s2448 = scalar_lea.vmem %s1, 8
      %v2449 = vld [vmem:[%s2448] sm:$0x3]
      %v2450 = vunpack.c.l.b16 %v2077
      %v2451 = vunpack.c.l.b16 %v2087
      %v2452 = vunpack.c.l.b16 %v2101
      %v2453 = vunpack.c.l.b16 %v2111
      %v2454 = vunpack.c.l.b16 %v2125
      %v2455 = vunpack.c.l.b16 %v2135
      %v2456 = vunpack.c.l.b16 %v2149
      %v2457 = vunpack.c.l.b16 %v2159
      %v2458 = vunpack.c.l.b16 %v2173
      %v2459 = vunpack.c.l.b16 %v2183
      %v2460 = vunpack.c.l.b16 %v2197
      %v2461 = vunpack.c.l.b16 %v2207
      %v2462 = vunpack.c.l.b16 %v2221
      %v2463 = vunpack.c.l.b16 %v2231
      %v2464 = vunpack.c.l.b16 %v2245
      %v2465 = vunpack.c.l.b16 %v2255
      %v2466 = vunpack.c.l.b16 %v2269
      %v2467 = vunpack.c.l.b16 %v2279
      %v2468 = vunpack.c.l.b16 %v2293
      %v2469 = vunpack.c.l.b16 %v2303
      %v2470 = vunpack.c.l.b16 %v2317
      %v2471 = vunpack.c.l.b16 %v2327
      %v2472 = vunpack.c.l.b16 %v2341
      %v2473 = vunpack.c.l.b16 %v2351
      %v2474 = vunpack.c.l.b16 %v2365
      %v2475 = vunpack.c.l.b16 %v2375
      %v2476 = vunpack.c.l.b16 %v2389
      %v2477 = vunpack.c.l.b16 %v2399
      %v2478 = vunpack.c.l.b16 %v2413
      %v2479 = vunpack.c.l.b16 %v2423
      %v2480 = vunpack.c.l.b16 %v2437
      %v2481 = vunpack.c.l.b16 %v2447
      %v2482 = vpack.c.b16 %v2451, %v2450
      %v2483 = vpack.c.b16 %v2453, %v2452
      %v2484 = vpack.c.b16 %v2455, %v2454
      %v2485 = vpack.c.b16 %v2457, %v2456
      %v2486 = vpack.c.b16 %v2459, %v2458
      %v2487 = vpack.c.b16 %v2461, %v2460
      %v2488 = vpack.c.b16 %v2463, %v2462
      %v2489 = vpack.c.b16 %v2465, %v2464
      %v2490 = vpack.c.b16 %v2467, %v2466
      %v2491 = vpack.c.b16 %v2469, %v2468
      %v2492 = vpack.c.b16 %v2471, %v2470
      %v2493 = vpack.c.b16 %v2473, %v2472
      %v2494 = vpack.c.b16 %v2475, %v2474
      %v2495 = vpack.c.b16 %v2477, %v2476
      %v2496 = vpack.c.b16 %v2479, %v2478
      %v2497 = vpack.c.b16 %v2481, %v2480
      %v2499 = vsel %vm694, %v2482, 0
      %v2502 = vsel %vm694, %v2483, 0
      %v2505 = vsel %vm694, %v2484, 0
      %v2508 = vsel %vm694, %v2485, 0
      %v2511 = vsel %vm694, %v2486, 0
      %v2514 = vsel %vm694, %v2487, 0
      %v2517 = vsel %vm694, %v2488, 0
      %v2520 = vsel %vm694, %v2489, 0
      %v2523 = vsel %vm694, %v2490, 0
      %v2526 = vsel %vm694, %v2491, 0
      %v2529 = vsel %vm694, %v2492, 0
      %v2532 = vsel %vm694, %v2493, 0
      %v2535 = vsel %vm694, %v2494, 0
      %v2538 = vsel %vm694, %v2495, 0
      %v2541 = vsel %vm694, %v2496, 0
      %v2544 = vsel %vm694, %v2497, 0
      %v2547 = vsel %vm743, %v2449, 0
      %2549 = vmatprep.subr.bf16.mxu0 0
      %2550 = vmatpush1.bf16.msra.mxu0 %v2547
      %2551 = vmatprep.subr.bf16.mxu0 0
      %2552 = vmatpush1.bf16.msra.mxu0 0
      %2553 = vmatprep.subr.bf16.mxu0 0
      %2554 = vmatpush1.bf16.msra.mxu0 0
      %2555 = vmatprep.subr.bf16.mxu0 0
      %2556 = vmatpush1.bf16.msra.mxu0 0
      %2557 = vmatprep.subr.bf16.mxu0 0
      %2558 = vmatpush1.bf16.msra.mxu0 0
      %2559 = vmatprep.subr.bf16.mxu0 0
      %2560 = vmatpush1.bf16.msra.mxu0 0
      %2561 = vmatprep.subr.bf16.mxu0 0
      %2562 = vmatpush1.bf16.msra.mxu0 0
      %2563 = vmatprep.subr.bf16.mxu0 0
      %2564 = vmatpush1.bf16.msra.mxu0 0
      %2565 = vmatprep.subr.bf16.mxu0 0
      %2566 = vmatpush1.bf16.msra.mxu0 0
      %2567 = vmatprep.subr.bf16.mxu0 0
      %2568 = vmatpush1.bf16.msra.mxu0 0
      %2569 = vmatprep.subr.bf16.mxu0 0
      %2570 = vmatpush1.bf16.msra.mxu0 0
      %2571 = vmatprep.subr.bf16.mxu0 0
      %2572 = vmatpush1.bf16.msra.mxu0 0
      %2573 = vmatprep.subr.bf16.mxu0 0
      %2574 = vmatpush1.bf16.msra.mxu0 0
      %2575 = vmatprep.subr.bf16.mxu0 0
      %2576 = vmatpush1.bf16.msra.mxu0 0
      %2577 = vmatprep.subr.bf16.mxu0 0
      %2578 = vmatpush1.bf16.msra.mxu0 0
      %2579 = vmatprep.subr.bf16.mxu0 0
      %2580 = vmatpush1.bf16.msra.mxu0 0
      %2581 = vmatprep.mubr.bf16.mxu0 0
      %2582 = vmatmul.mubr.bf16.gmra.mrb[0].mxu0 %v2499
      %v2583 = vpop.f32.mrb[0].mxu0
      %v2584 = vadd.f32 0.0, %v2583
      %v2585 = vpop.f32.mrb[0].mxu0
      %v2586 = vpop.f32.mrb[0].mxu0
      %v2587 = vadd.f32 0.0, %v2586
      %v2588 = vpop.f32.mrb[0].mxu0
      %2589 = vmatprep.mubr.bf16.mxu0 0
      %2590 = vmatmul.mubr.bf16.gmra.mrb[0].mxu0 %v2502
      %v2591 = vpop.f32.mrb[0].mxu0
      %v2592 = vadd.f32 0.0, %v2591
      %v2593 = vpop.f32.mrb[0].mxu0
      %v2594 = vpop.f32.mrb[0].mxu0
      %v2595 = vadd.f32 0.0, %v2594
      %v2596 = vpop.f32.mrb[0].mxu0
      %2597 = vmatprep.mubr.bf16.mxu0 0
      %2598 = vmatmul.mubr.bf16.gmra.mrb[0].mxu0 %v2505
      %v2599 = vpop.f32.mrb[0].mxu0
      %v2600 = vadd.f32 0.0, %v2599
      %v2601 = vpop.f32.mrb[0].mxu0
      %v2602 = vpop.f32.mrb[0].mxu0
      %v2603 = vadd.f32 0.0, %v2602
      %v2604 = vpop.f32.mrb[0].mxu0
      %2605 = vmatprep.mubr.bf16.mxu0 0
      %2606 = vmatmul.mubr.bf16.gmra.mrb[0].mxu0 %v2508
      %v2607 = vpop.f32.mrb[0].mxu0
      %v2608 = vadd.f32 0.0, %v2607
      %v2609 = vpop.f32.mrb[0].mxu0
      %v2610 = vpop.f32.mrb[0].mxu0
      %v2611 = vadd.f32 0.0, %v2610
      %v2612 = vpop.f32.mrb[0].mxu0
      %2613 = vmatprep.mubr.bf16.mxu0 0
      %2614 = vmatmul.mubr.bf16.gmra.mrb[0].mxu0 %v2511
      %v2615 = vpop.f32.mrb[0].mxu0
      %v2616 = vadd.f32 0.0, %v2615
      %v2617 = vpop.f32.mrb[0].mxu0
      %v2618 = vpop.f32.mrb[0].mxu0
      %v2619 = vadd.f32 0.0, %v2618
      %v2620 = vpop.f32.mrb[0].mxu0
      %2621 = vmatprep.mubr.bf16.mxu0 0
      %2622 = vmatmul.mubr.bf16.gmra.mrb[0].mxu0 %v2514
      %v2623 = vpop.f32.mrb[0].mxu0
      %v2624 = vadd.f32 0.0, %v2623
      %v2625 = vpop.f32.mrb[0].mxu0
      %v2626 = vpop.f32.mrb[0].mxu0
      %v2627 = vadd.f32 0.0, %v2626
      %v2628 = vpop.f32.mrb[0].mxu0
      %2629 = vmatprep.mubr.bf16.mxu0 0
      %2630 = vmatmul.mubr.bf16.gmra.mrb[0].mxu0 %v2517
      %v2631 = vpop.f32.mrb[0].mxu0
      %v2632 = vadd.f32 0.0, %v2631
      %v2633 = vpop.f32.mrb[0].mxu0
      %v2634 = vpop.f32.mrb[0].mxu0
      %v2635 = vadd.f32 0.0, %v2634
      %v2636 = vpop.f32.mrb[0].mxu0
      %2637 = vmatprep.mubr.bf16.mxu0 0
      %2638 = vmatmul.mubr.bf16.gmra.mrb[0].mxu0 %v2520
      %v2639 = vpop.f32.mrb[0].mxu0
      %v2640 = vadd.f32 0.0, %v2639
      %v2641 = vpop.f32.mrb[0].mxu0
      %v2642 = vpop.f32.mrb[0].mxu0
      %v2643 = vadd.f32 0.0, %v2642
      %v2644 = vpop.f32.mrb[0].mxu0
      %2645 = vmatprep.mubr.bf16.mxu0 0
      %2646 = vmatmul.mubr.bf16.gmra.mrb[0].mxu0 %v2523
      %v2647 = vpop.f32.mrb[0].mxu0
      %v2648 = vadd.f32 0.0, %v2647
      %v2649 = vpop.f32.mrb[0].mxu0
      %v2650 = vpop.f32.mrb[0].mxu0
      %v2651 = vadd.f32 0.0, %v2650
      %v2652 = vpop.f32.mrb[0].mxu0
      %2653 = vmatprep.mubr.bf16.mxu0 0
      %2654 = vmatmul.mubr.bf16.gmra.mrb[0].mxu0 %v2526
      %v2655 = vpop.f32.mrb[0].mxu0
      %v2656 = vadd.f32 0.0, %v2655
      %v2657 = vpop.f32.mrb[0].mxu0
      %v2658 = vpop.f32.mrb[0].mxu0
      %v2659 = vadd.f32 0.0, %v2658
      %v2660 = vpop.f32.mrb[0].mxu0
      %2661 = vmatprep.mubr.bf16.mxu0 0
      %2662 = vmatmul.mubr.bf16.gmra.mrb[0].mxu0 %v2529
      %v2663 = vpop.f32.mrb[0].mxu0
      %v2664 = vadd.f32 0.0, %v2663
      %v2665 = vpop.f32.mrb[0].mxu0
      %v2666 = vpop.f32.mrb[0].mxu0
      %v2667 = vadd.f32 0.0, %v2666
      %v2668 = vpop.f32.mrb[0].mxu0
      %2669 = vmatprep.mubr.bf16.mxu0 0
      %2670 = vmatmul.mubr.bf16.gmra.mrb[0].mxu0 %v2532
      %v2671 = vpop.f32.mrb[0].mxu0
      %v2672 = vadd.f32 0.0, %v2671
      %v2673 = vpop.f32.mrb[0].mxu0
      %v2674 = vpop.f32.mrb[0].mxu0
      %v2675 = vadd.f32 0.0, %v2674
      %v2676 = vpop.f32.mrb[0].mxu0
      %2677 = vmatprep.mubr.bf16.mxu0 0
      %2678 = vmatmul.mubr.bf16.gmra.mrb[0].mxu0 %v2535
      %v2679 = vpop.f32.mrb[0].mxu0
      %v2680 = vadd.f32 0.0, %v2679
      %v2681 = vpop.f32.mrb[0].mxu0
      %v2682 = vpop.f32.mrb[0].mxu0
      %v2683 = vadd.f32 0.0, %v2682
      %v2684 = vpop.f32.mrb[0].mxu0
      %2685 = vmatprep.mubr.bf16.mxu0 0
      %2686 = vmatmul.mubr.bf16.gmra.mrb[0].mxu0 %v2538
      %v2687 = vpop.f32.mrb[0].mxu0
      %v2688 = vadd.f32 0.0, %v2687
      %v2689 = vpop.f32.mrb[0].mxu0
      %v2690 = vpop.f32.mrb[0].mxu0
      %v2691 = vadd.f32 0.0, %v2690
      %v2692 = vpop.f32.mrb[0].mxu0
      %2693 = vmatprep.mubr.bf16.mxu0 0
      %2694 = vmatmul.mubr.bf16.gmra.mrb[0].mxu0 %v2541
      %v2695 = vpop.f32.mrb[0].mxu0
      %v2696 = vadd.f32 0.0, %v2695
      %v2697 = vpop.f32.mrb[0].mxu0
      %v2698 = vpop.f32.mrb[0].mxu0
      %v2699 = vadd.f32 0.0, %v2698
      %v2700 = vpop.f32.mrb[0].mxu0
      %2701 = vmatprep.mubr.bf16.mxu0 0
      %2702 = vmatmul.mubr.bf16.gmra.mrb[0].mxu0 %v2544
      %v2703 = vpop.f32.mrb[0].mxu0
      %v2704 = vadd.f32 0.0, %v2703
      %v2705 = vpop.f32.mrb[0].mxu0
      %v2706 = vpop.f32.mrb[0].mxu0
      %v2707 = vadd.f32 0.0, %v2706
      %v2708 = vpop.f32.mrb[0].mxu0
      %2709 = vdwg.mxu0
      %v2710 = vadd.f32 %v1984, %v2584
      %v2711 = vadd.f32 %v1985, %v2587
      %v2712 = vadd.f32 %v1986, %v2592
      %v2713 = vadd.f32 %v1987, %v2595
      %v2714 = vadd.f32 %v1988, %v2600
      %v2715 = vadd.f32 %v1989, %v2603
      %v2716 = vadd.f32 %v1990, %v2608
      %v2717 = vadd.f32 %v1991, %v2611
      %v2718 = vadd.f32 %v1992, %v2616
      %v2719 = vadd.f32 %v1993, %v2619
      %v2720 = vadd.f32 %v1994, %v2624
      %v2721 = vadd.f32 %v1995, %v2627
      %v2722 = vadd.f32 %v1996, %v2632
      %v2723 = vadd.f32 %v1997, %v2635
      %v2724 = vadd.f32 %v1998, %v2640
      %v2725 = vadd.f32 %v1999, %v2643
      %v2726 = vadd.f32 %v2000, %v2648
      %v2727 = vadd.f32 %v2001, %v2651
      %v2728 = vadd.f32 %v2002, %v2656
      %v2729 = vadd.f32 %v2003, %v2659
      %v2730 = vadd.f32 %v2004, %v2664
      %v2731 = vadd.f32 %v2005, %v2667
      %v2732 = vadd.f32 %v2006, %v2672
      %v2733 = vadd.f32 %v2007, %v2675
      %v2734 = vadd.f32 %v2008, %v2680
      %v2735 = vadd.f32 %v2009, %v2683
      %v2736 = vadd.f32 %v2010, %v2688
      %v2737 = vadd.f32 %v2011, %v2691
      %v2738 = vadd.f32 %v2012, %v2696
      %v2739 = vadd.f32 %v2013, %v2699
      %v2740 = vadd.f32 %v2014, %v2704
      %v2741 = vadd.f32 %v2015, %v2707
      %v2742 = vld [vmem:[%s1657] sm:$0xe]
      %v2743 = vld [vmem:[%s1657 + $0xc] sm:$0xe]
      %v2744 = vld [vmem:[%s1657 + $0x18] sm:$0xe]
      %v2745 = vld [vmem:[%s1657 + $0x24] sm:$0xe]
      %v2746 = vld [vmem:[%s1657 + $0x30] sm:$0xe]
      %v2747 = vld [vmem:[%s1657 + $0x3c] sm:$0xe]
      %v2748 = vld [vmem:[%s1657 + $0x48] sm:$0xe]
      %v2749 = vld [vmem:[%s1657 + $0x54] sm:$0xe]
      %v2750 = vld [vmem:[%s1657 + $0x60] sm:$0xe]
      %v2751 = vld [vmem:[%s1657 + $0x6c] sm:$0xe]
      %v2752 = vld [vmem:[%s1657 + $0x78] sm:$0xe]
      %v2753 = vld [vmem:[%s1657 + $0x84] sm:$0xe]
      %v2754 = vld [vmem:[%s1657 + $0x90] sm:$0xe]
      %v2755 = vld [vmem:[%s1657 + $0x9c] sm:$0xe]
      %v2756 = vld [vmem:[%s1657 + $0xa8] sm:$0xe]
      %v2757 = vld [vmem:[%s1657 + $0xb4] sm:$0xe]
      %v2806 = vrot.slane %v2742, 5
      %v2807 = vrot.slane %v2806, 4
      %v2808 = vrot.slane %v2017, 5
      %v2809 = vsel %vm1250, %v2807, %v2808
      %v2810 = vrot.slane %v2808, 4
      %v2811 = vrot.slane %v2018, 5
      %v2812 = vsel %vm1250, %v2810, %v2811
      %v2813 = vrot.slane %v2743, 5
      %v2814 = vrot.slane %v2813, 4
      %v2815 = vrot.slane %v2020, 5
      %v2816 = vsel %vm1250, %v2814, %v2815
      %v2817 = vrot.slane %v2815, 4
      %v2818 = vrot.slane %v2021, 5
      %v2819 = vsel %vm1250, %v2817, %v2818
      %v2820 = vrot.slane %v2744, 5
      %v2821 = vrot.slane %v2820, 4
      %v2822 = vrot.slane %v2023, 5
      %v2823 = vsel %vm1250, %v2821, %v2822
      %v2824 = vrot.slane %v2822, 4
      %v2825 = vrot.slane %v2024, 5
      %v2826 = vsel %vm1250, %v2824, %v2825
      %v2827 = vrot.slane %v2745, 5
      %v2828 = vrot.slane %v2827, 4
      %v2829 = vrot.slane %v2026, 5
      %v2830 = vsel %vm1250, %v2828, %v2829
      %v2831 = vrot.slane %v2829, 4
      %v2832 = vrot.slane %v2027, 5
      %v2833 = vsel %vm1250, %v2831, %v2832
      %v2834 = vrot.slane %v2746, 5
      %v2835 = vrot.slane %v2834, 4
      %v2836 = vrot.slane %v2029, 5
      %v2837 = vsel %vm1250, %v2835, %v2836
      %v2838 = vrot.slane %v2836, 4
      %v2839 = vrot.slane %v2030, 5
      %v2840 = vsel %vm1250, %v2838, %v2839
      %v2841 = vrot.slane %v2747, 5
      %v2842 = vrot.slane %v2841, 4
      %v2843 = vrot.slane %v2032, 5
      %v2844 = vsel %vm1250, %v2842, %v2843
      %v2845 = vrot.slane %v2843, 4
      %v2846 = vrot.slane %v2033, 5
      %v2847 = vsel %vm1250, %v2845, %v2846
      %v2848 = vrot.slane %v2748, 5
      %v2849 = vrot.slane %v2848, 4
      %v2850 = vrot.slane %v2035, 5
      %v2851 = vsel %vm1250, %v2849, %v2850
      %v2852 = vrot.slane %v2850, 4
      %v2853 = vrot.slane %v2036, 5
      %v2854 = vsel %vm1250, %v2852, %v2853
      %v2855 = vrot.slane %v2749, 5
      %v2856 = vrot.slane %v2855, 4
      %v2857 = vrot.slane %v2038, 5
      %v2858 = vsel %vm1250, %v2856, %v2857
      %v2859 = vrot.slane %v2857, 4
      %v2860 = vrot.slane %v2039, 5
      %v2861 = vsel %vm1250, %v2859, %v2860
      %v2862 = vrot.slane %v2750, 5
      %v2863 = vrot.slane %v2862, 4
      %v2864 = vrot.slane %v2041, 5
      %v2865 = vsel %vm1250, %v2863, %v2864
      %v2866 = vrot.slane %v2864, 4
      %v2867 = vrot.slane %v2042, 5
      %v2868 = vsel %vm1250, %v2866, %v2867
      %v2869 = vrot.slane %v2751, 5
      %v2870 = vrot.slane %v2869, 4
      %v2871 = vrot.slane %v2044, 5
      %v2872 = vsel %vm1250, %v2870, %v2871
      %v2873 = vrot.slane %v2871, 4
      %v2874 = vrot.slane %v2045, 5
      %v2875 = vsel %vm1250, %v2873, %v2874
      %v2876 = vrot.slane %v2752, 5
      %v2877 = vrot.slane %v2876, 4
      %v2878 = vrot.slane %v2047, 5
      %v2879 = vsel %vm1250, %v2877, %v2878
      %v2880 = vrot.slane %v2878, 4
      %v2881 = vrot.slane %v2048, 5
      %v2882 = vsel %vm1250, %v2880, %v2881
      %v2883 = vrot.slane %v2753, 5
      %v2884 = vrot.slane %v2883, 4
      %v2885 = vrot.slane %v2050, 5
      %v2886 = vsel %vm1250, %v2884, %v2885
      %v2887 = vrot.slane %v2885, 4
      %v2888 = vrot.slane %v2051, 5
      %v2889 = vsel %vm1250, %v2887, %v2888
      %v2890 = vrot.slane %v2754, 5
      %v2891 = vrot.slane %v2890, 4
      %v2892 = vrot.slane %v2053, 5
      %v2893 = vsel %vm1250, %v2891, %v2892
      %v2894 = vrot.slane %v2892, 4
      %v2895 = vrot.slane %v2054, 5
      %v2896 = vsel %vm1250, %v2894, %v2895
      %v2897 = vrot.slane %v2755, 5
      %v2898 = vrot.slane %v2897, 4
      %v2899 = vrot.slane %v2056, 5
      %v2900 = vsel %vm1250, %v2898, %v2899
      %v2901 = vrot.slane %v2899, 4
      %v2902 = vrot.slane %v2057, 5
      %v2903 = vsel %vm1250, %v2901, %v2902
      %v2904 = vrot.slane %v2756, 5
      %v2905 = vrot.slane %v2904, 4
      %v2906 = vrot.slane %v2059, 5
      %v2907 = vsel %vm1250, %v2905, %v2906
      %v2908 = vrot.slane %v2906, 4
      %v2909 = vrot.slane %v2060, 5
      %v2910 = vsel %vm1250, %v2908, %v2909
      %v2911 = vrot.slane %v2757, 5
      %v2912 = vrot.slane %v2911, 4
      %v2913 = vrot.slane %v2062, 5
      %v2914 = vsel %vm1250, %v2912, %v2913
      %v2915 = vrot.slane %v2913, 4
      %v2916 = vrot.slane %v2063, 5
      %v2917 = vsel %vm1250, %v2915, %v2916
      %s2918 = scalar_lea.vmem %s1, 10
      %v2919 = vld [vmem:[%s2918] sm:$0x3]
      %v2920 = vunpack.c.l.b16 %v2809
      %v2921 = vunpack.c.l.b16 %v2812
      %v2922 = vunpack.c.l.b16 %v2816
      %v2923 = vunpack.c.l.b16 %v2819
      %v2924 = vunpack.c.l.b16 %v2823
      %v2925 = vunpack.c.l.b16 %v2826
      %v2926 = vunpack.c.l.b16 %v2830
      %v2927 = vunpack.c.l.b16 %v2833
      %v2928 = vunpack.c.l.b16 %v2837
      %v2929 = vunpack.c.l.b16 %v2840
      %v2930 = vunpack.c.l.b16 %v2844
      %v2931 = vunpack.c.l.b16 %v2847
      %v2932 = vunpack.c.l.b16 %v2851
      %v2933 = vunpack.c.l.b16 %v2854
      %v2934 = vunpack.c.l.b16 %v2858
      %v2935 = vunpack.c.l.b16 %v2861
      %v2936 = vunpack.c.l.b16 %v2865
      %v2937 = vunpack.c.l.b16 %v2868
      %v2938 = vunpack.c.l.b16 %v2872
      %v2939 = vunpack.c.l.b16 %v2875
      %v2940 = vunpack.c.l.b16 %v2879
      %v2941 = vunpack.c.l.b16 %v2882
      %v2942 = vunpack.c.l.b16 %v2886
      %v2943 = vunpack.c.l.b16 %v2889
      %v2944 = vunpack.c.l.b16 %v2893
      %v2945 = vunpack.c.l.b16 %v2896
      %v2946 = vunpack.c.l.b16 %v2900
      %v2947 = vunpack.c.l.b16 %v2903
      %v2948 = vunpack.c.l.b16 %v2907
      %v2949 = vunpack.c.l.b16 %v2910
      %v2950 = vunpack.c.l.b16 %v2914
      %v2951 = vunpack.c.l.b16 %v2917
      %v2952 = vpack.c.b16 %v2921, %v2920
      %v2953 = vpack.c.b16 %v2923, %v2922
      %v2954 = vpack.c.b16 %v2925, %v2924
      %v2955 = vpack.c.b16 %v2927, %v2926
      %v2956 = vpack.c.b16 %v2929, %v2928
      %v2957 = vpack.c.b16 %v2931, %v2930
      %v2958 = vpack.c.b16 %v2933, %v2932
      %v2959 = vpack.c.b16 %v2935, %v2934
      %v2960 = vpack.c.b16 %v2937, %v2936
      %v2961 = vpack.c.b16 %v2939, %v2938
      %v2962 = vpack.c.b16 %v2941, %v2940
      %v2963 = vpack.c.b16 %v2943, %v2942
      %v2964 = vpack.c.b16 %v2945, %v2944
      %v2965 = vpack.c.b16 %v2947, %v2946
      %v2966 = vpack.c.b16 %v2949, %v2948
      %v2967 = vpack.c.b16 %v2951, %v2950
      %v2969 = vsel %vm694, %v2952, 0
      %v2972 = vsel %vm694, %v2953, 0
      %v2975 = vsel %vm694, %v2954, 0
      %v2978 = vsel %vm694, %v2955, 0
      %v2981 = vsel %vm694, %v2956, 0
      %v2984 = vsel %vm694, %v2957, 0
      %v2987 = vsel %vm694, %v2958, 0
      %v2990 = vsel %vm694, %v2959, 0
      %v2993 = vsel %vm694, %v2960, 0
      %v2996 = vsel %vm694, %v2961, 0
      %v2999 = vsel %vm694, %v2962, 0
      %v3002 = vsel %vm694, %v2963, 0
      %v3005 = vsel %vm694, %v2964, 0
      %v3008 = vsel %vm694, %v2965, 0
      %v3011 = vsel %vm694, %v2966, 0
      %v3014 = vsel %vm694, %v2967, 0
      %v3017 = vsel %vm743, %v2919, 0
      %3019 = vmatprep.subr.bf16.mxu0 0
      %3020 = vmatpush1.bf16.msra.mxu0 %v3017
      %3021 = vmatprep.subr.bf16.mxu0 0
      %3022 = vmatpush1.bf16.msra.mxu0 0
      %3023 = vmatprep.subr.bf16.mxu0 0
      %3024 = vmatpush1.bf16.msra.mxu0 0
      %3025 = vmatprep.subr.bf16.mxu0 0
      %3026 = vmatpush1.bf16.msra.mxu0 0
      %3027 = vmatprep.subr.bf16.mxu0 0
      %3028 = vmatpush1.bf16.msra.mxu0 0
      %3029 = vmatprep.subr.bf16.mxu0 0
      %3030 = vmatpush1.bf16.msra.mxu0 0
      %3031 = vmatprep.subr.bf16.mxu0 0
      %3032 = vmatpush1.bf16.msra.mxu0 0
      %3033 = vmatprep.subr.bf16.mxu0 0
      %3034 = vmatpush1.bf16.msra.mxu0 0
      %3035 = vmatprep.subr.bf16.mxu0 0
      %3036 = vmatpush1.bf16.msra.mxu0 0
      %3037 = vmatprep.subr.bf16.mxu0 0
      %3038 = vmatpush1.bf16.msra.mxu0 0
      %3039 = vmatprep.subr.bf16.mxu0 0
      %3040 = vmatpush1.bf16.msra.mxu0 0
      %3041 = vmatprep.subr.bf16.mxu0 0
      %3042 = vmatpush1.bf16.msra.mxu0 0
      %3043 = vmatprep.subr.bf16.mxu0 0
      %3044 = vmatpush1.bf16.msra.mxu0 0
      %3045 = vmatprep.subr.bf16.mxu0 0
      %3046 = vmatpush1.bf16.msra.mxu0 0
      %3047 = vmatprep.subr.bf16.mxu0 0
      %3048 = vmatpush1.bf16.msra.mxu0 0
      %3049 = vmatprep.subr.bf16.mxu0 0
      %3050 = vmatpush1.bf16.msra.mxu0 0
      %3051 = vmatprep.mubr.bf16.mxu0 0
      %3052 = vmatmul.mubr.bf16.gmra.mrb[0].mxu0 %v2969
      %v3053 = vpop.f32.mrb[0].mxu0
      %v3054 = vadd.f32 0.0, %v3053
      %v3055 = vpop.f32.mrb[0].mxu0
      %v3056 = vpop.f32.mrb[0].mxu0
      %v3057 = vadd.f32 0.0, %v3056
      %v3058 = vpop.f32.mrb[0].mxu0
      %3059 = vmatprep.mubr.bf16.mxu0 0
      %3060 = vmatmul.mubr.bf16.gmra.mrb[0].mxu0 %v2972
      %v3061 = vpop.f32.mrb[0].mxu0
      %v3062 = vadd.f32 0.0, %v3061
      %v3063 = vpop.f32.mrb[0].mxu0
      %v3064 = vpop.f32.mrb[0].mxu0
      %v3065 = vadd.f32 0.0, %v3064
      %v3066 = vpop.f32.mrb[0].mxu0
      %3067 = vmatprep.mubr.bf16.mxu0 0
      %3068 = vmatmul.mubr.bf16.gmra.mrb[0].mxu0 %v2975
      %v3069 = vpop.f32.mrb[0].mxu0
      %v3070 = vadd.f32 0.0, %v3069
      %v3071 = vpop.f32.mrb[0].mxu0
      %v3072 = vpop.f32.mrb[0].mxu0
      %v3073 = vadd.f32 0.0, %v3072
      %v3074 = vpop.f32.mrb[0].mxu0
      %3075 = vmatprep.mubr.bf16.mxu0 0
      %3076 = vmatmul.mubr.bf16.gmra.mrb[0].mxu0 %v2978
      %v3077 = vpop.f32.mrb[0].mxu0
      %v3078 = vadd.f32 0.0, %v3077
      %v3079 = vpop.f32.mrb[0].mxu0
      %v3080 = vpop.f32.mrb[0].mxu0
      %v3081 = vadd.f32 0.0, %v3080
      %v3082 = vpop.f32.mrb[0].mxu0
      %3083 = vmatprep.mubr.bf16.mxu0 0
      %3084 = vmatmul.mubr.bf16.gmra.mrb[0].mxu0 %v2981
      %v3085 = vpop.f32.mrb[0].mxu0
      %v3086 = vadd.f32 0.0, %v3085
      %v3087 = vpop.f32.mrb[0].mxu0
      %v3088 = vpop.f32.mrb[0].mxu0
      %v3089 = vadd.f32 0.0, %v3088
      %v3090 = vpop.f32.mrb[0].mxu0
      %3091 = vmatprep.mubr.bf16.mxu0 0
      %3092 = vmatmul.mubr.bf16.gmra.mrb[0].mxu0 %v2984
      %v3093 = vpop.f32.mrb[0].mxu0
      %v3094 = vadd.f32 0.0, %v3093
      %v3095 = vpop.f32.mrb[0].mxu0
      %v3096 = vpop.f32.mrb[0].mxu0
      %v3097 = vadd.f32 0.0, %v3096
      %v3098 = vpop.f32.mrb[0].mxu0
      %3099 = vmatprep.mubr.bf16.mxu0 0
      %3100 = vmatmul.mubr.bf16.gmra.mrb[0].mxu0 %v2987
      %v3101 = vpop.f32.mrb[0].mxu0
      %v3102 = vadd.f32 0.0, %v3101
      %v3103 = vpop.f32.mrb[0].mxu0
      %v3104 = vpop.f32.mrb[0].mxu0
      %v3105 = vadd.f32 0.0, %v3104
      %v3106 = vpop.f32.mrb[0].mxu0
      %3107 = vmatprep.mubr.bf16.mxu0 0
      %3108 = vmatmul.mubr.bf16.gmra.mrb[0].mxu0 %v2990
      %v3109 = vpop.f32.mrb[0].mxu0
      %v3110 = vadd.f32 0.0, %v3109
      %v3111 = vpop.f32.mrb[0].mxu0
      %v3112 = vpop.f32.mrb[0].mxu0
      %v3113 = vadd.f32 0.0, %v3112
      %v3114 = vpop.f32.mrb[0].mxu0
      %3115 = vmatprep.mubr.bf16.mxu0 0
      %3116 = vmatmul.mubr.bf16.gmra.mrb[0].mxu0 %v2993
      %v3117 = vpop.f32.mrb[0].mxu0
      %v3118 = vadd.f32 0.0, %v3117
      %v3119 = vpop.f32.mrb[0].mxu0
      %v3120 = vpop.f32.mrb[0].mxu0
      %v3121 = vadd.f32 0.0, %v3120
      %v3122 = vpop.f32.mrb[0].mxu0
      %3123 = vmatprep.mubr.bf16.mxu0 0
      %3124 = vmatmul.mubr.bf16.gmra.mrb[0].mxu0 %v2996
      %v3125 = vpop.f32.mrb[0].mxu0
      %v3126 = vadd.f32 0.0, %v3125
      %v3127 = vpop.f32.mrb[0].mxu0
      %v3128 = vpop.f32.mrb[0].mxu0
      %v3129 = vadd.f32 0.0, %v3128
      %v3130 = vpop.f32.mrb[0].mxu0
      %3131 = vmatprep.mubr.bf16.mxu0 0
      %3132 = vmatmul.mubr.bf16.gmra.mrb[0].mxu0 %v2999
      %v3133 = vpop.f32.mrb[0].mxu0
      %v3134 = vadd.f32 0.0, %v3133
      %v3135 = vpop.f32.mrb[0].mxu0
      %v3136 = vpop.f32.mrb[0].mxu0
      %v3137 = vadd.f32 0.0, %v3136
      %v3138 = vpop.f32.mrb[0].mxu0
      %3139 = vmatprep.mubr.bf16.mxu0 0
      %3140 = vmatmul.mubr.bf16.gmra.mrb[0].mxu0 %v3002
      %v3141 = vpop.f32.mrb[0].mxu0
      %v3142 = vadd.f32 0.0, %v3141
      %v3143 = vpop.f32.mrb[0].mxu0
      %v3144 = vpop.f32.mrb[0].mxu0
      %v3145 = vadd.f32 0.0, %v3144
      %v3146 = vpop.f32.mrb[0].mxu0
      %3147 = vmatprep.mubr.bf16.mxu0 0
      %3148 = vmatmul.mubr.bf16.gmra.mrb[0].mxu0 %v3005
      %v3149 = vpop.f32.mrb[0].mxu0
      %v3150 = vadd.f32 0.0, %v3149
      %v3151 = vpop.f32.mrb[0].mxu0
      %v3152 = vpop.f32.mrb[0].mxu0
      %v3153 = vadd.f32 0.0, %v3152
      %v3154 = vpop.f32.mrb[0].mxu0
      %3155 = vmatprep.mubr.bf16.mxu0 0
      %3156 = vmatmul.mubr.bf16.gmra.mrb[0].mxu0 %v3008
      %v3157 = vpop.f32.mrb[0].mxu0
      %v3158 = vadd.f32 0.0, %v3157
      %v3159 = vpop.f32.mrb[0].mxu0
      %v3160 = vpop.f32.mrb[0].mxu0
      %v3161 = vadd.f32 0.0, %v3160
      %v3162 = vpop.f32.mrb[0].mxu0
      %3163 = vmatprep.mubr.bf16.mxu0 0
      %3164 = vmatmul.mubr.bf16.gmra.mrb[0].mxu0 %v3011
      %v3165 = vpop.f32.mrb[0].mxu0
      %v3166 = vadd.f32 0.0, %v3165
      %v3167 = vpop.f32.mrb[0].mxu0
      %v3168 = vpop.f32.mrb[0].mxu0
      %v3169 = vadd.f32 0.0, %v3168
      %v3170 = vpop.f32.mrb[0].mxu0
      %3171 = vmatprep.mubr.bf16.mxu0 0
      %3172 = vmatmul.mubr.bf16.gmra.mrb[0].mxu0 %v3014
      %v3173 = vpop.f32.mrb[0].mxu0
      %v3174 = vadd.f32 0.0, %v3173
      %v3175 = vpop.f32.mrb[0].mxu0
      %v3176 = vpop.f32.mrb[0].mxu0
      %v3177 = vadd.f32 0.0, %v3176
      %v3178 = vpop.f32.mrb[0].mxu0
      %3179 = vdwg.mxu0
      %v3180 = vadd.f32 %v2710, %v3054
      %v3181 = vadd.f32 %v2711, %v3057
      %v3182 = vadd.f32 %v2712, %v3062
      %v3183 = vadd.f32 %v2713, %v3065
      %v3184 = vadd.f32 %v2714, %v3070
      %v3185 = vadd.f32 %v2715, %v3073
      %v3186 = vadd.f32 %v2716, %v3078
      %v3187 = vadd.f32 %v2717, %v3081
      %v3188 = vadd.f32 %v2718, %v3086
      %v3189 = vadd.f32 %v2719, %v3089
      %v3190 = vadd.f32 %v2720, %v3094
      %v3191 = vadd.f32 %v2721, %v3097
      %v3192 = vadd.f32 %v2722, %v3102
      %v3193 = vadd.f32 %v2723, %v3105
      %v3194 = vadd.f32 %v2724, %v3110
      %v3195 = vadd.f32 %v2725, %v3113
      %v3196 = vadd.f32 %v2726, %v3118
      %v3197 = vadd.f32 %v2727, %v3121
      %v3198 = vadd.f32 %v2728, %v3126
      %v3199 = vadd.f32 %v2729, %v3129
      %v3200 = vadd.f32 %v2730, %v3134
      %v3201 = vadd.f32 %v2731, %v3137
      %v3202 = vadd.f32 %v2732, %v3142
      %v3203 = vadd.f32 %v2733, %v3145
      %v3204 = vadd.f32 %v2734, %v3150
      %v3205 = vadd.f32 %v2735, %v3153
      %v3206 = vadd.f32 %v2736, %v3158
      %v3207 = vadd.f32 %v2737, %v3161
      %v3208 = vadd.f32 %v2738, %v3166
      %v3209 = vadd.f32 %v2739, %v3169
      %v3210 = vadd.f32 %v2740, %v3174
      %v3211 = vadd.f32 %v2741, %v3177
      %s3212 = scalar_lea.vmem %s197, 24
      %v3213 = vld [vmem:[%s3212] sm:$0xf]
      %v3214 = vld [vmem:[%s3212 + $0x4] sm:$0xf]
      %v3215 = vld [vmem:[%s3212 + $0xc] sm:$0xf]
      %v3216 = vld [vmem:[%s3212 + $0x10] sm:$0xf]
      %v3217 = vld [vmem:[%s3212 + $0x18] sm:$0xf]
      %v3218 = vld [vmem:[%s3212 + $0x1c] sm:$0xf]
      %v3219 = vld [vmem:[%s3212 + $0x24] sm:$0xf]
      %v3220 = vld [vmem:[%s3212 + $0x28] sm:$0xf]
      %v3221 = vld [vmem:[%s3212 + $0x30] sm:$0xf]
      %v3222 = vld [vmem:[%s3212 + $0x34] sm:$0xf]
      %v3223 = vld [vmem:[%s3212 + $0x3c] sm:$0xf]
      %v3224 = vld [vmem:[%s3212 + $0x40] sm:$0xf]
      %v3225 = vld [vmem:[%s3212 + $0x48] sm:$0xf]
      %v3226 = vld [vmem:[%s3212 + $0x4c] sm:$0xf]
      %v3227 = vld [vmem:[%s3212 + $0x54] sm:$0xf]
      %v3228 = vld [vmem:[%s3212 + $0x58] sm:$0xf]
      %v3229 = vld [vmem:[%s3212 + $0x60] sm:$0xf]
      %v3230 = vld [vmem:[%s3212 + $0x64] sm:$0xf]
      %v3231 = vld [vmem:[%s3212 + $0x6c] sm:$0xf]
      %v3232 = vld [vmem:[%s3212 + $0x70] sm:$0xf]
      %v3233 = vld [vmem:[%s3212 + $0x78] sm:$0xf]
      %v3234 = vld [vmem:[%s3212 + $0x7c] sm:$0xf]
      %v3235 = vld [vmem:[%s3212 + $0x84] sm:$0xf]
      %v3236 = vld [vmem:[%s3212 + $0x88] sm:$0xf]
      %v3237 = vld [vmem:[%s3212 + $0x90] sm:$0xf]
      %v3238 = vld [vmem:[%s3212 + $0x94] sm:$0xf]
      %v3239 = vld [vmem:[%s3212 + $0x9c] sm:$0xf]
      %v3240 = vld [vmem:[%s3212 + $0xa0] sm:$0xf]
      %v3241 = vld [vmem:[%s3212 + $0xa8] sm:$0xf]
      %v3242 = vld [vmem:[%s3212 + $0xac] sm:$0xf]
      %v3243 = vld [vmem:[%s3212 + $0xb4] sm:$0xf]
      %v3244 = vld [vmem:[%s3212 + $0xb8] sm:$0xf]
      %s3245 = scalar_lea.vmem %s1, 12
      %v3246 = vld [vmem:[%s3245] sm:$0x3]
      %v3279 = vunpack.c.l.b16 %v3213
      %v3280 = vunpack.c.l.b16 %v3214
      %v3281 = vunpack.c.l.b16 %v3215
      %v3282 = vunpack.c.l.b16 %v3216
      %v3283 = vunpack.c.l.b16 %v3217
      %v3284 = vunpack.c.l.b16 %v3218
      %v3285 = vunpack.c.l.b16 %v3219
      %v3286 = vunpack.c.l.b16 %v3220
      %v3287 = vunpack.c.l.b16 %v3221
      %v3288 = vunpack.c.l.b16 %v3222
      %v3289 = vunpack.c.l.b16 %v3223
      %v3290 = vunpack.c.l.b16 %v3224
      %v3291 = vunpack.c.l.b16 %v3225
      %v3292 = vunpack.c.l.b16 %v3226
      %v3293 = vunpack.c.l.b16 %v3227
      %v3294 = vunpack.c.l.b16 %v3228
      %v3295 = vunpack.c.l.b16 %v3229
      %v3296 = vunpack.c.l.b16 %v3230
      %v3297 = vunpack.c.l.b16 %v3231
      %v3298 = vunpack.c.l.b16 %v3232
      %v3299 = vunpack.c.l.b16 %v3233
      %v3300 = vunpack.c.l.b16 %v3234
      %v3301 = vunpack.c.l.b16 %v3235
      %v3302 = vunpack.c.l.b16 %v3236
      %v3303 = vunpack.c.l.b16 %v3237
      %v3304 = vunpack.c.l.b16 %v3238
      %v3305 = vunpack.c.l.b16 %v3239
      %v3306 = vunpack.c.l.b16 %v3240
      %v3307 = vunpack.c.l.b16 %v3241
      %v3308 = vunpack.c.l.b16 %v3242
      %v3309 = vunpack.c.l.b16 %v3243
      %v3310 = vunpack.c.l.b16 %v3244
      %v3311 = vpack.c.b16 %v3280, %v3279
      %v3312 = vpack.c.b16 %v3282, %v3281
      %v3313 = vpack.c.b16 %v3284, %v3283
      %v3314 = vpack.c.b16 %v3286, %v3285
      %v3315 = vpack.c.b16 %v3288, %v3287
      %v3316 = vpack.c.b16 %v3290, %v3289
      %v3317 = vpack.c.b16 %v3292, %v3291
      %v3318 = vpack.c.b16 %v3294, %v3293
      %v3319 = vpack.c.b16 %v3296, %v3295
      %v3320 = vpack.c.b16 %v3298, %v3297
      %v3321 = vpack.c.b16 %v3300, %v3299
      %v3322 = vpack.c.b16 %v3302, %v3301
      %v3323 = vpack.c.b16 %v3304, %v3303
      %v3324 = vpack.c.b16 %v3306, %v3305
      %v3325 = vpack.c.b16 %v3308, %v3307
      %v3326 = vpack.c.b16 %v3310, %v3309
      %v3328 = vsel %vm694, %v3311, 0
      %v3331 = vsel %vm694, %v3312, 0
      %v3334 = vsel %vm694, %v3313, 0
      %v3337 = vsel %vm694, %v3314, 0
      %v3340 = vsel %vm694, %v3315, 0
      %v3343 = vsel %vm694, %v3316, 0
      %v3346 = vsel %vm694, %v3317, 0
      %v3349 = vsel %vm694, %v3318, 0
      %v3352 = vsel %vm694, %v3319, 0
      %v3355 = vsel %vm694, %v3320, 0
      %v3358 = vsel %vm694, %v3321, 0
      %v3361 = vsel %vm694, %v3322, 0
      %v3364 = vsel %vm694, %v3323, 0
      %v3367 = vsel %vm694, %v3324, 0
      %v3370 = vsel %vm694, %v3325, 0
      %v3373 = vsel %vm694, %v3326, 0
      %v3376 = vsel %vm743, %v3246, 0
      %3378 = vmatprep.subr.bf16.mxu0 0
      %3379 = vmatpush1.bf16.msra.mxu0 %v3376
      %3380 = vmatprep.subr.bf16.mxu0 0
      %3381 = vmatpush1.bf16.msra.mxu0 0
      %3382 = vmatprep.subr.bf16.mxu0 0
      %3383 = vmatpush1.bf16.msra.mxu0 0
      %3384 = vmatprep.subr.bf16.mxu0 0
      %3385 = vmatpush1.bf16.msra.mxu0 0
      %3386 = vmatprep.subr.bf16.mxu0 0
      %3387 = vmatpush1.bf16.msra.mxu0 0
      %3388 = vmatprep.subr.bf16.mxu0 0
      %3389 = vmatpush1.bf16.msra.mxu0 0
      %3390 = vmatprep.subr.bf16.mxu0 0
      %3391 = vmatpush1.bf16.msra.mxu0 0
      %3392 = vmatprep.subr.bf16.mxu0 0
      %3393 = vmatpush1.bf16.msra.mxu0 0
      %3394 = vmatprep.subr.bf16.mxu0 0
      %3395 = vmatpush1.bf16.msra.mxu0 0
      %3396 = vmatprep.subr.bf16.mxu0 0
      %3397 = vmatpush1.bf16.msra.mxu0 0
      %3398 = vmatprep.subr.bf16.mxu0 0
      %3399 = vmatpush1.bf16.msra.mxu0 0
      %3400 = vmatprep.subr.bf16.mxu0 0
      %3401 = vmatpush1.bf16.msra.mxu0 0
      %3402 = vmatprep.subr.bf16.mxu0 0
      %3403 = vmatpush1.bf16.msra.mxu0 0
      %3404 = vmatprep.subr.bf16.mxu0 0
      %3405 = vmatpush1.bf16.msra.mxu0 0
      %3406 = vmatprep.subr.bf16.mxu0 0
      %3407 = vmatpush1.bf16.msra.mxu0 0
      %3408 = vmatprep.subr.bf16.mxu0 0
      %3409 = vmatpush1.bf16.msra.mxu0 0
      %3410 = vmatprep.mubr.bf16.mxu0 0
      %3411 = vmatmul.mubr.bf16.gmra.mrb[0].mxu0 %v3328
      %v3412 = vpop.f32.mrb[0].mxu0
      %v3413 = vadd.f32 0.0, %v3412
      %v3414 = vpop.f32.mrb[0].mxu0
      %v3415 = vpop.f32.mrb[0].mxu0
      %v3416 = vadd.f32 0.0, %v3415
      %v3417 = vpop.f32.mrb[0].mxu0
      %3418 = vmatprep.mubr.bf16.mxu0 0
      %3419 = vmatmul.mubr.bf16.gmra.mrb[0].mxu0 %v3331
      %v3420 = vpop.f32.mrb[0].mxu0
      %v3421 = vadd.f32 0.0, %v3420
      %v3422 = vpop.f32.mrb[0].mxu0
      %v3423 = vpop.f32.mrb[0].mxu0
      %v3424 = vadd.f32 0.0, %v3423
      %v3425 = vpop.f32.mrb[0].mxu0
      %3426 = vmatprep.mubr.bf16.mxu0 0
      %3427 = vmatmul.mubr.bf16.gmra.mrb[0].mxu0 %v3334
      %v3428 = vpop.f32.mrb[0].mxu0
      %v3429 = vadd.f32 0.0, %v3428
      %v3430 = vpop.f32.mrb[0].mxu0
      %v3431 = vpop.f32.mrb[0].mxu0
      %v3432 = vadd.f32 0.0, %v3431
      %v3433 = vpop.f32.mrb[0].mxu0
      %3434 = vmatprep.mubr.bf16.mxu0 0
      %3435 = vmatmul.mubr.bf16.gmra.mrb[0].mxu0 %v3337
      %v3436 = vpop.f32.mrb[0].mxu0
      %v3437 = vadd.f32 0.0, %v3436
      %v3438 = vpop.f32.mrb[0].mxu0
      %v3439 = vpop.f32.mrb[0].mxu0
      %v3440 = vadd.f32 0.0, %v3439
      %v3441 = vpop.f32.mrb[0].mxu0
      %3442 = vmatprep.mubr.bf16.mxu0 0
      %3443 = vmatmul.mubr.bf16.gmra.mrb[0].mxu0 %v3340
      %v3444 = vpop.f32.mrb[0].mxu0
      %v3445 = vadd.f32 0.0, %v3444
      %v3446 = vpop.f32.mrb[0].mxu0
      %v3447 = vpop.f32.mrb[0].mxu0
      %v3448 = vadd.f32 0.0, %v3447
      %v3449 = vpop.f32.mrb[0].mxu0
      %3450 = vmatprep.mubr.bf16.mxu0 0
      %3451 = vmatmul.mubr.bf16.gmra.mrb[0].mxu0 %v3343
      %v3452 = vpop.f32.mrb[0].mxu0
      %v3453 = vadd.f32 0.0, %v3452
      %v3454 = vpop.f32.mrb[0].mxu0
      %v3455 = vpop.f32.mrb[0].mxu0
      %v3456 = vadd.f32 0.0, %v3455
      %v3457 = vpop.f32.mrb[0].mxu0
      %3458 = vmatprep.mubr.bf16.mxu0 0
      %3459 = vmatmul.mubr.bf16.gmra.mrb[0].mxu0 %v3346
      %v3460 = vpop.f32.mrb[0].mxu0
      %v3461 = vadd.f32 0.0, %v3460
      %v3462 = vpop.f32.mrb[0].mxu0
      %v3463 = vpop.f32.mrb[0].mxu0
      %v3464 = vadd.f32 0.0, %v3463
      %v3465 = vpop.f32.mrb[0].mxu0
      %3466 = vmatprep.mubr.bf16.mxu0 0
      %3467 = vmatmul.mubr.bf16.gmra.mrb[0].mxu0 %v3349
      %v3468 = vpop.f32.mrb[0].mxu0
      %v3469 = vadd.f32 0.0, %v3468
      %v3470 = vpop.f32.mrb[0].mxu0
      %v3471 = vpop.f32.mrb[0].mxu0
      %v3472 = vadd.f32 0.0, %v3471
      %v3473 = vpop.f32.mrb[0].mxu0
      %3474 = vmatprep.mubr.bf16.mxu0 0
      %3475 = vmatmul.mubr.bf16.gmra.mrb[0].mxu0 %v3352
      %v3476 = vpop.f32.mrb[0].mxu0
      %v3477 = vadd.f32 0.0, %v3476
      %v3478 = vpop.f32.mrb[0].mxu0
      %v3479 = vpop.f32.mrb[0].mxu0
      %v3480 = vadd.f32 0.0, %v3479
      %v3481 = vpop.f32.mrb[0].mxu0
      %3482 = vmatprep.mubr.bf16.mxu0 0
      %3483 = vmatmul.mubr.bf16.gmra.mrb[0].mxu0 %v3355
      %v3484 = vpop.f32.mrb[0].mxu0
      %v3485 = vadd.f32 0.0, %v3484
      %v3486 = vpop.f32.mrb[0].mxu0
      %v3487 = vpop.f32.mrb[0].mxu0
      %v3488 = vadd.f32 0.0, %v3487
      %v3489 = vpop.f32.mrb[0].mxu0
      %3490 = vmatprep.mubr.bf16.mxu0 0
      %3491 = vmatmul.mubr.bf16.gmra.mrb[0].mxu0 %v3358
      %v3492 = vpop.f32.mrb[0].mxu0
      %v3493 = vadd.f32 0.0, %v3492
      %v3494 = vpop.f32.mrb[0].mxu0
      %v3495 = vpop.f32.mrb[0].mxu0
      %v3496 = vadd.f32 0.0, %v3495
      %v3497 = vpop.f32.mrb[0].mxu0
      %3498 = vmatprep.mubr.bf16.mxu0 0
      %3499 = vmatmul.mubr.bf16.gmra.mrb[0].mxu0 %v3361
      %v3500 = vpop.f32.mrb[0].mxu0
      %v3501 = vadd.f32 0.0, %v3500
      %v3502 = vpop.f32.mrb[0].mxu0
      %v3503 = vpop.f32.mrb[0].mxu0
      %v3504 = vadd.f32 0.0, %v3503
      %v3505 = vpop.f32.mrb[0].mxu0
      %3506 = vmatprep.mubr.bf16.mxu0 0
      %3507 = vmatmul.mubr.bf16.gmra.mrb[0].mxu0 %v3364
      %v3508 = vpop.f32.mrb[0].mxu0
      %v3509 = vadd.f32 0.0, %v3508
      %v3510 = vpop.f32.mrb[0].mxu0
      %v3511 = vpop.f32.mrb[0].mxu0
      %v3512 = vadd.f32 0.0, %v3511
      %v3513 = vpop.f32.mrb[0].mxu0
      %3514 = vmatprep.mubr.bf16.mxu0 0
      %3515 = vmatmul.mubr.bf16.gmra.mrb[0].mxu0 %v3367
      %v3516 = vpop.f32.mrb[0].mxu0
      %v3517 = vadd.f32 0.0, %v3516
      %v3518 = vpop.f32.mrb[0].mxu0
      %v3519 = vpop.f32.mrb[0].mxu0
      %v3520 = vadd.f32 0.0, %v3519
      %v3521 = vpop.f32.mrb[0].mxu0
      %3522 = vmatprep.mubr.bf16.mxu0 0
      %3523 = vmatmul.mubr.bf16.gmra.mrb[0].mxu0 %v3370
      %v3524 = vpop.f32.mrb[0].mxu0
      %v3525 = vadd.f32 0.0, %v3524
      %v3526 = vpop.f32.mrb[0].mxu0
      %v3527 = vpop.f32.mrb[0].mxu0
      %v3528 = vadd.f32 0.0, %v3527
      %v3529 = vpop.f32.mrb[0].mxu0
      %3530 = vmatprep.mubr.bf16.mxu0 0
      %3531 = vmatmul.mubr.bf16.gmra.mrb[0].mxu0 %v3373
      %v3532 = vpop.f32.mrb[0].mxu0
      %v3533 = vadd.f32 0.0, %v3532
      %v3534 = vpop.f32.mrb[0].mxu0
      %v3535 = vpop.f32.mrb[0].mxu0
      %v3536 = vadd.f32 0.0, %v3535
      %v3537 = vpop.f32.mrb[0].mxu0
      %3538 = vdwg.mxu0
      %v3539 = vadd.f32 %v3180, %v3413
      %v3540 = vadd.f32 %v3181, %v3416
      %v3541 = vadd.f32 %v3182, %v3421
      %v3542 = vadd.f32 %v3183, %v3424
      %v3543 = vadd.f32 %v3184, %v3429
      %v3544 = vadd.f32 %v3185, %v3432
      %v3545 = vadd.f32 %v3186, %v3437
      %v3546 = vadd.f32 %v3187, %v3440
      %v3547 = vadd.f32 %v3188, %v3445
      %v3548 = vadd.f32 %v3189, %v3448
      %v3549 = vadd.f32 %v3190, %v3453
      %v3550 = vadd.f32 %v3191, %v3456
      %v3551 = vadd.f32 %v3192, %v3461
      %v3552 = vadd.f32 %v3193, %v3464
      %v3553 = vadd.f32 %v3194, %v3469
      %v3554 = vadd.f32 %v3195, %v3472
      %v3555 = vadd.f32 %v3196, %v3477
      %v3556 = vadd.f32 %v3197, %v3480
      %v3557 = vadd.f32 %v3198, %v3485
      %v3558 = vadd.f32 %v3199, %v3488
      %v3559 = vadd.f32 %v3200, %v3493
      %v3560 = vadd.f32 %v3201, %v3496
      %v3561 = vadd.f32 %v3202, %v3501
      %v3562 = vadd.f32 %v3203, %v3504
      %v3563 = vadd.f32 %v3204, %v3509
      %v3564 = vadd.f32 %v3205, %v3512
      %v3565 = vadd.f32 %v3206, %v3517
      %v3566 = vadd.f32 %v3207, %v3520
      %v3567 = vadd.f32 %v3208, %v3525
      %v3568 = vadd.f32 %v3209, %v3528
      %v3569 = vadd.f32 %v3210, %v3533
      %v3570 = vadd.f32 %v3211, %v3536
      %v3571 = vld [vmem:[%s3212] sm:$0xf]
      %v3572 = vld [vmem:[%s3212 + $0x4] sm:$0xf]
      %v3573 = vld [vmem:[%s3212 + $0x8] sm:$0x1]
      %v3574 = vld [vmem:[%s3212 + $0xc] sm:$0xf]
      %v3575 = vld [vmem:[%s3212 + $0x10] sm:$0xf]
      %v3576 = vld [vmem:[%s3212 + $0x14] sm:$0x1]
      %v3577 = vld [vmem:[%s3212 + $0x18] sm:$0xf]
      %v3578 = vld [vmem:[%s3212 + $0x1c] sm:$0xf]
      %v3579 = vld [vmem:[%s3212 + $0x20] sm:$0x1]
      %v3580 = vld [vmem:[%s3212 + $0x24] sm:$0xf]
      %v3581 = vld [vmem:[%s3212 + $0x28] sm:$0xf]
      %v3582 = vld [vmem:[%s3212 + $0x2c] sm:$0x1]
      %v3583 = vld [vmem:[%s3212 + $0x30] sm:$0xf]
      %v3584 = vld [vmem:[%s3212 + $0x34] sm:$0xf]
      %v3585 = vld [vmem:[%s3212 + $0x38] sm:$0x1]
      %v3586 = vld [vmem:[%s3212 + $0x3c] sm:$0xf]
      %v3587 = vld [vmem:[%s3212 + $0x40] sm:$0xf]
      %v3588 = vld [vmem:[%s3212 + $0x44] sm:$0x1]
      %v3589 = vld [vmem:[%s3212 + $0x48] sm:$0xf]
      %v3590 = vld [vmem:[%s3212 + $0x4c] sm:$0xf]
      %v3591 = vld [vmem:[%s3212 + $0x50] sm:$0x1]
      %v3592 = vld [vmem:[%s3212 + $0x54] sm:$0xf]
      %v3593 = vld [vmem:[%s3212 + $0x58] sm:$0xf]
      %v3594 = vld [vmem:[%s3212 + $0x5c] sm:$0x1]
      %v3595 = vld [vmem:[%s3212 + $0x60] sm:$0xf]
      %v3596 = vld [vmem:[%s3212 + $0x64] sm:$0xf]
      %v3597 = vld [vmem:[%s3212 + $0x68] sm:$0x1]
      %v3598 = vld [vmem:[%s3212 + $0x6c] sm:$0xf]
      %v3599 = vld [vmem:[%s3212 + $0x70] sm:$0xf]
      %v3600 = vld [vmem:[%s3212 + $0x74] sm:$0x1]
      %v3601 = vld [vmem:[%s3212 + $0x78] sm:$0xf]
      %v3602 = vld [vmem:[%s3212 + $0x7c] sm:$0xf]
      %v3603 = vld [vmem:[%s3212 + $0x80] sm:$0x1]
      %v3604 = vld [vmem:[%s3212 + $0x84] sm:$0xf]
      %v3605 = vld [vmem:[%s3212 + $0x88] sm:$0xf]
      %v3606 = vld [vmem:[%s3212 + $0x8c] sm:$0x1]
      %v3607 = vld [vmem:[%s3212 + $0x90] sm:$0xf]
      %v3608 = vld [vmem:[%s3212 + $0x94] sm:$0xf]
      %v3609 = vld [vmem:[%s3212 + $0x98] sm:$0x1]
      %v3610 = vld [vmem:[%s3212 + $0x9c] sm:$0xf]
      %v3611 = vld [vmem:[%s3212 + $0xa0] sm:$0xf]
      %v3612 = vld [vmem:[%s3212 + $0xa4] sm:$0x1]
      %v3613 = vld [vmem:[%s3212 + $0xa8] sm:$0xf]
      %v3614 = vld [vmem:[%s3212 + $0xac] sm:$0xf]
      %v3615 = vld [vmem:[%s3212 + $0xb0] sm:$0x1]
      %v3616 = vld [vmem:[%s3212 + $0xb4] sm:$0xf]
      %v3617 = vld [vmem:[%s3212 + $0xb8] sm:$0xf]
      %v3618 = vld [vmem:[%s3212 + $0xbc] sm:$0x1]
      %v3620 = vshrl.u32 %v3571, 16
      %v3622 = vrot.slane %v3620, 4
      %v3623 = vshll.u32 %v3571, 16
      %v3625 = vrot.slane %v3623, 5
      %v3626 = vor.u32 %v3622, %v3625
      %v3627 = vrot.slane %v3626, 4
      %v3629 = vshll.u32 %v3572, 16
      %v3631 = vrot.slane %v3629, 5
      %v3632 = vsel %vm259, %v3627, %v3631
      %v3633 = vshrl.u32 %v3572, 16
      %v3635 = vrot.slane %v3633, 4
      %v3636 = vor.u32 %v3635, %v3631
      %v3637 = vrot.slane %v3636, 4
      %v3639 = vshll.u32 %v3573, 16
      %v3641 = vrot.slane %v3639, 5
      %v3642 = vsel %vm259, %v3637, %v3641
      %v3644 = vshrl.u32 %v3574, 16
      %v3646 = vrot.slane %v3644, 4
      %v3647 = vshll.u32 %v3574, 16
      %v3649 = vrot.slane %v3647, 5
      %v3650 = vor.u32 %v3646, %v3649
      %v3651 = vrot.slane %v3650, 4
      %v3653 = vshll.u32 %v3575, 16
      %v3655 = vrot.slane %v3653, 5
      %v3656 = vsel %vm259, %v3651, %v3655
      %v3657 = vshrl.u32 %v3575, 16
      %v3659 = vrot.slane %v3657, 4
      %v3660 = vor.u32 %v3659, %v3655
      %v3661 = vrot.slane %v3660, 4
      %v3663 = vshll.u32 %v3576, 16
      %v3665 = vrot.slane %v3663, 5
      %v3666 = vsel %vm259, %v3661, %v3665
      %v3668 = vshrl.u32 %v3577, 16
      %v3670 = vrot.slane %v3668, 4
      %v3671 = vshll.u32 %v3577, 16
      %v3673 = vrot.slane %v3671, 5
      %v3674 = vor.u32 %v3670, %v3673
      %v3675 = vrot.slane %v3674, 4
      %v3677 = vshll.u32 %v3578, 16
      %v3679 = vrot.slane %v3677, 5
      %v3680 = vsel %vm259, %v3675, %v3679
      %v3681 = vshrl.u32 %v3578, 16
      %v3683 = vrot.slane %v3681, 4
      %v3684 = vor.u32 %v3683, %v3679
      %v3685 = vrot.slane %v3684, 4
      %v3687 = vshll.u32 %v3579, 16
      %v3689 = vrot.slane %v3687, 5
      %v3690 = vsel %vm259, %v3685, %v3689
      %v3692 = vshrl.u32 %v3580, 16
      %v3694 = vrot.slane %v3692, 4
      %v3695 = vshll.u32 %v3580, 16
      %v3697 = vrot.slane %v3695, 5
      %v3698 = vor.u32 %v3694, %v3697
      %v3699 = vrot.slane %v3698, 4
      %v3701 = vshll.u32 %v3581, 16
      %v3703 = vrot.slane %v3701, 5
      %v3704 = vsel %vm259, %v3699, %v3703
      %v3705 = vshrl.u32 %v3581, 16
      %v3707 = vrot.slane %v3705, 4
      %v3708 = vor.u32 %v3707, %v3703
      %v3709 = vrot.slane %v3708, 4
      %v3711 = vshll.u32 %v3582, 16
      %v3713 = vrot.slane %v3711, 5
      %v3714 = vsel %vm259, %v3709, %v3713
      %v3716 = vshrl.u32 %v3583, 16
      %v3718 = vrot.slane %v3716, 4
      %v3719 = vshll.u32 %v3583, 16
      %v3721 = vrot.slane %v3719, 5
      %v3722 = vor.u32 %v3718, %v3721
      %v3723 = vrot.slane %v3722, 4
      %v3725 = vshll.u32 %v3584, 16
      %v3727 = vrot.slane %v3725, 5
      %v3728 = vsel %vm259, %v3723, %v3727
      %v3729 = vshrl.u32 %v3584, 16
      %v3731 = vrot.slane %v3729, 4
      %v3732 = vor.u32 %v3731, %v3727
      %v3733 = vrot.slane %v3732, 4
      %v3735 = vshll.u32 %v3585, 16
      %v3737 = vrot.slane %v3735, 5
      %v3738 = vsel %vm259, %v3733, %v3737
      %v3740 = vshrl.u32 %v3586, 16
      %v3742 = vrot.slane %v3740, 4
      %v3743 = vshll.u32 %v3586, 16
      %v3745 = vrot.slane %v3743, 5
      %v3746 = vor.u32 %v3742, %v3745
      %v3747 = vrot.slane %v3746, 4
      %v3749 = vshll.u32 %v3587, 16
      %v3751 = vrot.slane %v3749, 5
      %v3752 = vsel %vm259, %v3747, %v3751
      %v3753 = vshrl.u32 %v3587, 16
      %v3755 = vrot.slane %v3753, 4
      %v3756 = vor.u32 %v3755, %v3751
      %v3757 = vrot.slane %v3756, 4
      %v3759 = vshll.u32 %v3588, 16
      %v3761 = vrot.slane %v3759, 5
      %v3762 = vsel %vm259, %v3757, %v3761
      %v3764 = vshrl.u32 %v3589, 16
      %v3766 = vrot.slane %v3764, 4
      %v3767 = vshll.u32 %v3589, 16
      %v3769 = vrot.slane %v3767, 5
      %v3770 = vor.u32 %v3766, %v3769
      %v3771 = vrot.slane %v3770, 4
      %v3773 = vshll.u32 %v3590, 16
      %v3775 = vrot.slane %v3773, 5
      %v3776 = vsel %vm259, %v3771, %v3775
      %v3777 = vshrl.u32 %v3590, 16
      %v3779 = vrot.slane %v3777, 4
      %v3780 = vor.u32 %v3779, %v3775
      %v3781 = vrot.slane %v3780, 4
      %v3783 = vshll.u32 %v3591, 16
      %v3785 = vrot.slane %v3783, 5
      %v3786 = vsel %vm259, %v3781, %v3785
      %v3788 = vshrl.u32 %v3592, 16
      %v3790 = vrot.slane %v3788, 4
      %v3791 = vshll.u32 %v3592, 16
      %v3793 = vrot.slane %v3791, 5
      %v3794 = vor.u32 %v3790, %v3793
      %v3795 = vrot.slane %v3794, 4
      %v3797 = vshll.u32 %v3593, 16
      %v3799 = vrot.slane %v3797, 5
      %v3800 = vsel %vm259, %v3795, %v3799
      %v3801 = vshrl.u32 %v3593, 16
      %v3803 = vrot.slane %v3801, 4
      %v3804 = vor.u32 %v3803, %v3799
      %v3805 = vrot.slane %v3804, 4
      %v3807 = vshll.u32 %v3594, 16
      %v3809 = vrot.slane %v3807, 5
      %v3810 = vsel %vm259, %v3805, %v3809
      %v3812 = vshrl.u32 %v3595, 16
      %v3814 = vrot.slane %v3812, 4
      %v3815 = vshll.u32 %v3595, 16
      %v3817 = vrot.slane %v3815, 5
      %v3818 = vor.u32 %v3814, %v3817
      %v3819 = vrot.slane %v3818, 4
      %v3821 = vshll.u32 %v3596, 16
      %v3823 = vrot.slane %v3821, 5
      %v3824 = vsel %vm259, %v3819, %v3823
      %v3825 = vshrl.u32 %v3596, 16
      %v3827 = vrot.slane %v3825, 4
      %v3828 = vor.u32 %v3827, %v3823
      %v3829 = vrot.slane %v3828, 4
      %v3831 = vshll.u32 %v3597, 16
      %v3833 = vrot.slane %v3831, 5
      %v3834 = vsel %vm259, %v3829, %v3833
      %v3836 = vshrl.u32 %v3598, 16
      %v3838 = vrot.slane %v3836, 4
      %v3839 = vshll.u32 %v3598, 16
      %v3841 = vrot.slane %v3839, 5
      %v3842 = vor.u32 %v3838, %v3841
      %v3843 = vrot.slane %v3842, 4
      %v3845 = vshll.u32 %v3599, 16
      %v3847 = vrot.slane %v3845, 5
      %v3848 = vsel %vm259, %v3843, %v3847
      %v3849 = vshrl.u32 %v3599, 16
      %v3851 = vrot.slane %v3849, 4
      %v3852 = vor.u32 %v3851, %v3847
      %v3853 = vrot.slane %v3852, 4
      %v3855 = vshll.u32 %v3600, 16
      %v3857 = vrot.slane %v3855, 5
      %v3858 = vsel %vm259, %v3853, %v3857
      %v3860 = vshrl.u32 %v3601, 16
      %v3862 = vrot.slane %v3860, 4
      %v3863 = vshll.u32 %v3601, 16
      %v3865 = vrot.slane %v3863, 5
      %v3866 = vor.u32 %v3862, %v3865
      %v3867 = vrot.slane %v3866, 4
      %v3869 = vshll.u32 %v3602, 16
      %v3871 = vrot.slane %v3869, 5
      %v3872 = vsel %vm259, %v3867, %v3871
      %v3873 = vshrl.u32 %v3602, 16
      %v3875 = vrot.slane %v3873, 4
      %v3876 = vor.u32 %v3875, %v3871
      %v3877 = vrot.slane %v3876, 4
      %v3879 = vshll.u32 %v3603, 16
      %v3881 = vrot.slane %v3879, 5
      %v3882 = vsel %vm259, %v3877, %v3881
      %v3884 = vshrl.u32 %v3604, 16
      %v3886 = vrot.slane %v3884, 4
      %v3887 = vshll.u32 %v3604, 16
      %v3889 = vrot.slane %v3887, 5
      %v3890 = vor.u32 %v3886, %v3889
      %v3891 = vrot.slane %v3890, 4
      %v3893 = vshll.u32 %v3605, 16
      %v3895 = vrot.slane %v3893, 5
      %v3896 = vsel %vm259, %v3891, %v3895
      %v3897 = vshrl.u32 %v3605, 16
      %v3899 = vrot.slane %v3897, 4
      %v3900 = vor.u32 %v3899, %v3895
      %v3901 = vrot.slane %v3900, 4
      %v3903 = vshll.u32 %v3606, 16
      %v3905 = vrot.slane %v3903, 5
      %v3906 = vsel %vm259, %v3901, %v3905
      %v3908 = vshrl.u32 %v3607, 16
      %v3910 = vrot.slane %v3908, 4
      %v3911 = vshll.u32 %v3607, 16
      %v3913 = vrot.slane %v3911, 5
      %v3914 = vor.u32 %v3910, %v3913
      %v3915 = vrot.slane %v3914, 4
      %v3917 = vshll.u32 %v3608, 16
      %v3919 = vrot.slane %v3917, 5
      %v3920 = vsel %vm259, %v3915, %v3919
      %v3921 = vshrl.u32 %v3608, 16
      %v3923 = vrot.slane %v3921, 4
      %v3924 = vor.u32 %v3923, %v3919
      %v3925 = vrot.slane %v3924, 4
      %v3927 = vshll.u32 %v3609, 16
      %v3929 = vrot.slane %v3927, 5
      %v3930 = vsel %vm259, %v3925, %v3929
      %v3932 = vshrl.u32 %v3610, 16
      %v3934 = vrot.slane %v3932, 4
      %v3935 = vshll.u32 %v3610, 16
      %v3937 = vrot.slane %v3935, 5
      %v3938 = vor.u32 %v3934, %v3937
      %v3939 = vrot.slane %v3938, 4
      %v3941 = vshll.u32 %v3611, 16
      %v3943 = vrot.slane %v3941, 5
      %v3944 = vsel %vm259, %v3939, %v3943
      %v3945 = vshrl.u32 %v3611, 16
      %v3947 = vrot.slane %v3945, 4
      %v3948 = vor.u32 %v3947, %v3943
      %v3949 = vrot.slane %v3948, 4
      %v3951 = vshll.u32 %v3612, 16
      %v3953 = vrot.slane %v3951, 5
      %v3954 = vsel %vm259, %v3949, %v3953
      %v3956 = vshrl.u32 %v3613, 16
      %v3958 = vrot.slane %v3956, 4
      %v3959 = vshll.u32 %v3613, 16
      %v3961 = vrot.slane %v3959, 5
      %v3962 = vor.u32 %v3958, %v3961
      %v3963 = vrot.slane %v3962, 4
      %v3965 = vshll.u32 %v3614, 16
      %v3967 = vrot.slane %v3965, 5
      %v3968 = vsel %vm259, %v3963, %v3967
      %v3969 = vshrl.u32 %v3614, 16
      %v3971 = vrot.slane %v3969, 4
      %v3972 = vor.u32 %v3971, %v3967
      %v3973 = vrot.slane %v3972, 4
      %v3975 = vshll.u32 %v3615, 16
      %v3977 = vrot.slane %v3975, 5
      %v3978 = vsel %vm259, %v3973, %v3977
      %v3980 = vshrl.u32 %v3616, 16
      %v3982 = vrot.slane %v3980, 4
      %v3983 = vshll.u32 %v3616, 16
      %v3985 = vrot.slane %v3983, 5
      %v3986 = vor.u32 %v3982, %v3985
      %v3987 = vrot.slane %v3986, 4
      %v3989 = vshll.u32 %v3617, 16
      %v3991 = vrot.slane %v3989, 5
      %v3992 = vsel %vm259, %v3987, %v3991
      %v3993 = vshrl.u32 %v3617, 16
      %v3995 = vrot.slane %v3993, 4
      %v3996 = vor.u32 %v3995, %v3991
      %v3997 = vrot.slane %v3996, 4
      %v3999 = vshll.u32 %v3618, 16
      %v4001 = vrot.slane %v3999, 5
      %v4002 = vsel %vm259, %v3997, %v4001
      %s4003 = scalar_lea.vmem %s1, 14
      %v4004 = vld [vmem:[%s4003] sm:$0x3]
      %v4005 = vunpack.c.l.b16 %v3632
      %v4006 = vunpack.c.l.b16 %v3642
      %v4007 = vunpack.c.l.b16 %v3656
      %v4008 = vunpack.c.l.b16 %v3666
      %v4009 = vunpack.c.l.b16 %v3680
      %v4010 = vunpack.c.l.b16 %v3690
      %v4011 = vunpack.c.l.b16 %v3704
      %v4012 = vunpack.c.l.b16 %v3714
      %v4013 = vunpack.c.l.b16 %v3728
      %v4014 = vunpack.c.l.b16 %v3738
      %v4015 = vunpack.c.l.b16 %v3752
      %v4016 = vunpack.c.l.b16 %v3762
      %v4017 = vunpack.c.l.b16 %v3776
      %v4018 = vunpack.c.l.b16 %v3786
      %v4019 = vunpack.c.l.b16 %v3800
      %v4020 = vunpack.c.l.b16 %v3810
      %v4021 = vunpack.c.l.b16 %v3824
      %v4022 = vunpack.c.l.b16 %v3834
      %v4023 = vunpack.c.l.b16 %v3848
      %v4024 = vunpack.c.l.b16 %v3858
      %v4025 = vunpack.c.l.b16 %v3872
      %v4026 = vunpack.c.l.b16 %v3882
      %v4027 = vunpack.c.l.b16 %v3896
      %v4028 = vunpack.c.l.b16 %v3906
      %v4029 = vunpack.c.l.b16 %v3920
      %v4030 = vunpack.c.l.b16 %v3930
      %v4031 = vunpack.c.l.b16 %v3944
      %v4032 = vunpack.c.l.b16 %v3954
      %v4033 = vunpack.c.l.b16 %v3968
      %v4034 = vunpack.c.l.b16 %v3978
      %v4035 = vunpack.c.l.b16 %v3992
      %v4036 = vunpack.c.l.b16 %v4002
      %v4037 = vpack.c.b16 %v4006, %v4005
      %v4038 = vpack.c.b16 %v4008, %v4007
      %v4039 = vpack.c.b16 %v4010, %v4009
      %v4040 = vpack.c.b16 %v4012, %v4011
      %v4041 = vpack.c.b16 %v4014, %v4013
      %v4042 = vpack.c.b16 %v4016, %v4015
      %v4043 = vpack.c.b16 %v4018, %v4017
      %v4044 = vpack.c.b16 %v4020, %v4019
      %v4045 = vpack.c.b16 %v4022, %v4021
      %v4046 = vpack.c.b16 %v4024, %v4023
      %v4047 = vpack.c.b16 %v4026, %v4025
      %v4048 = vpack.c.b16 %v4028, %v4027
      %v4049 = vpack.c.b16 %v4030, %v4029
      %v4050 = vpack.c.b16 %v4032, %v4031
      %v4051 = vpack.c.b16 %v4034, %v4033
      %v4052 = vpack.c.b16 %v4036, %v4035
      %v4054 = vsel %vm694, %v4037, 0
      %v4057 = vsel %vm694, %v4038, 0
      %v4060 = vsel %vm694, %v4039, 0
      %v4063 = vsel %vm694, %v4040, 0
      %v4066 = vsel %vm694, %v4041, 0
      %v4069 = vsel %vm694, %v4042, 0
      %v4072 = vsel %vm694, %v4043, 0
      %v4075 = vsel %vm694, %v4044, 0
      %v4078 = vsel %vm694, %v4045, 0
      %v4081 = vsel %vm694, %v4046, 0
      %v4084 = vsel %vm694, %v4047, 0
      %v4087 = vsel %vm694, %v4048, 0
      %v4090 = vsel %vm694, %v4049, 0
      %v4093 = vsel %vm694, %v4050, 0
      %v4096 = vsel %vm694, %v4051, 0
      %v4099 = vsel %vm694, %v4052, 0
      %v4102 = vsel %vm743, %v4004, 0
      %4104 = vmatprep.subr.bf16.mxu0 0
      %4105 = vmatpush1.bf16.msra.mxu0 %v4102
      %4106 = vmatprep.subr.bf16.mxu0 0
      %4107 = vmatpush1.bf16.msra.mxu0 0
      %4108 = vmatprep.subr.bf16.mxu0 0
      %4109 = vmatpush1.bf16.msra.mxu0 0
      %4110 = vmatprep.subr.bf16.mxu0 0
      %4111 = vmatpush1.bf16.msra.mxu0 0
      %4112 = vmatprep.subr.bf16.mxu0 0
      %4113 = vmatpush1.bf16.msra.mxu0 0
      %4114 = vmatprep.subr.bf16.mxu0 0
      %4115 = vmatpush1.bf16.msra.mxu0 0
      %4116 = vmatprep.subr.bf16.mxu0 0
      %4117 = vmatpush1.bf16.msra.mxu0 0
      %4118 = vmatprep.subr.bf16.mxu0 0
      %4119 = vmatpush1.bf16.msra.mxu0 0
      %4120 = vmatprep.subr.bf16.mxu0 0
      %4121 = vmatpush1.bf16.msra.mxu0 0
      %4122 = vmatprep.subr.bf16.mxu0 0
      %4123 = vmatpush1.bf16.msra.mxu0 0
      %4124 = vmatprep.subr.bf16.mxu0 0
      %4125 = vmatpush1.bf16.msra.mxu0 0
      %4126 = vmatprep.subr.bf16.mxu0 0
      %4127 = vmatpush1.bf16.msra.mxu0 0
      %4128 = vmatprep.subr.bf16.mxu0 0
      %4129 = vmatpush1.bf16.msra.mxu0 0
      %4130 = vmatprep.subr.bf16.mxu0 0
      %4131 = vmatpush1.bf16.msra.mxu0 0
      %4132 = vmatprep.subr.bf16.mxu0 0
      %4133 = vmatpush1.bf16.msra.mxu0 0
      %4134 = vmatprep.subr.bf16.mxu0 0
      %4135 = vmatpush1.bf16.msra.mxu0 0
      %4136 = vmatprep.mubr.bf16.mxu0 0
      %4137 = vmatmul.mubr.bf16.gmra.mrb[0].mxu0 %v4054
      %v4138 = vpop.f32.mrb[0].mxu0
      %v4139 = vadd.f32 0.0, %v4138
      %v4140 = vpop.f32.mrb[0].mxu0
      %v4141 = vpop.f32.mrb[0].mxu0
      %v4142 = vadd.f32 0.0, %v4141
      %v4143 = vpop.f32.mrb[0].mxu0
      %4144 = vmatprep.mubr.bf16.mxu0 0
      %4145 = vmatmul.mubr.bf16.gmra.mrb[0].mxu0 %v4057
      %v4146 = vpop.f32.mrb[0].mxu0
      %v4147 = vadd.f32 0.0, %v4146
      %v4148 = vpop.f32.mrb[0].mxu0
      %v4149 = vpop.f32.mrb[0].mxu0
      %v4150 = vadd.f32 0.0, %v4149
      %v4151 = vpop.f32.mrb[0].mxu0
      %4152 = vmatprep.mubr.bf16.mxu0 0
      %4153 = vmatmul.mubr.bf16.gmra.mrb[0].mxu0 %v4060
      %v4154 = vpop.f32.mrb[0].mxu0
      %v4155 = vadd.f32 0.0, %v4154
      %v4156 = vpop.f32.mrb[0].mxu0
      %v4157 = vpop.f32.mrb[0].mxu0
      %v4158 = vadd.f32 0.0, %v4157
      %v4159 = vpop.f32.mrb[0].mxu0
      %4160 = vmatprep.mubr.bf16.mxu0 0
      %4161 = vmatmul.mubr.bf16.gmra.mrb[0].mxu0 %v4063
      %v4162 = vpop.f32.mrb[0].mxu0
      %v4163 = vadd.f32 0.0, %v4162
      %v4164 = vpop.f32.mrb[0].mxu0
      %v4165 = vpop.f32.mrb[0].mxu0
      %v4166 = vadd.f32 0.0, %v4165
      %v4167 = vpop.f32.mrb[0].mxu0
      %4168 = vmatprep.mubr.bf16.mxu0 0
      %4169 = vmatmul.mubr.bf16.gmra.mrb[0].mxu0 %v4066
      %v4170 = vpop.f32.mrb[0].mxu0
      %v4171 = vadd.f32 0.0, %v4170
      %v4172 = vpop.f32.mrb[0].mxu0
      %v4173 = vpop.f32.mrb[0].mxu0
      %v4174 = vadd.f32 0.0, %v4173
      %v4175 = vpop.f32.mrb[0].mxu0
      %4176 = vmatprep.mubr.bf16.mxu0 0
      %4177 = vmatmul.mubr.bf16.gmra.mrb[0].mxu0 %v4069
      %v4178 = vpop.f32.mrb[0].mxu0
      %v4179 = vadd.f32 0.0, %v4178
      %v4180 = vpop.f32.mrb[0].mxu0
      %v4181 = vpop.f32.mrb[0].mxu0
      %v4182 = vadd.f32 0.0, %v4181
      %v4183 = vpop.f32.mrb[0].mxu0
      %4184 = vmatprep.mubr.bf16.mxu0 0
      %4185 = vmatmul.mubr.bf16.gmra.mrb[0].mxu0 %v4072
      %v4186 = vpop.f32.mrb[0].mxu0
      %v4187 = vadd.f32 0.0, %v4186
      %v4188 = vpop.f32.mrb[0].mxu0
      %v4189 = vpop.f32.mrb[0].mxu0
      %v4190 = vadd.f32 0.0, %v4189
      %v4191 = vpop.f32.mrb[0].mxu0
      %4192 = vmatprep.mubr.bf16.mxu0 0
      %4193 = vmatmul.mubr.bf16.gmra.mrb[0].mxu0 %v4075
      %v4194 = vpop.f32.mrb[0].mxu0
      %v4195 = vadd.f32 0.0, %v4194
      %v4196 = vpop.f32.mrb[0].mxu0
      %v4197 = vpop.f32.mrb[0].mxu0
      %v4198 = vadd.f32 0.0, %v4197
      %v4199 = vpop.f32.mrb[0].mxu0
      %4200 = vmatprep.mubr.bf16.mxu0 0
      %4201 = vmatmul.mubr.bf16.gmra.mrb[0].mxu0 %v4078
      %v4202 = vpop.f32.mrb[0].mxu0
      %v4203 = vadd.f32 0.0, %v4202
      %v4204 = vpop.f32.mrb[0].mxu0
      %v4205 = vpop.f32.mrb[0].mxu0
      %v4206 = vadd.f32 0.0, %v4205
      %v4207 = vpop.f32.mrb[0].mxu0
      %4208 = vmatprep.mubr.bf16.mxu0 0
      %4209 = vmatmul.mubr.bf16.gmra.mrb[0].mxu0 %v4081
      %v4210 = vpop.f32.mrb[0].mxu0
      %v4211 = vadd.f32 0.0, %v4210
      %v4212 = vpop.f32.mrb[0].mxu0
      %v4213 = vpop.f32.mrb[0].mxu0
      %v4214 = vadd.f32 0.0, %v4213
      %v4215 = vpop.f32.mrb[0].mxu0
      %4216 = vmatprep.mubr.bf16.mxu0 0
      %4217 = vmatmul.mubr.bf16.gmra.mrb[0].mxu0 %v4084
      %v4218 = vpop.f32.mrb[0].mxu0
      %v4219 = vadd.f32 0.0, %v4218
      %v4220 = vpop.f32.mrb[0].mxu0
      %v4221 = vpop.f32.mrb[0].mxu0
      %v4222 = vadd.f32 0.0, %v4221
      %v4223 = vpop.f32.mrb[0].mxu0
      %4224 = vmatprep.mubr.bf16.mxu0 0
      %4225 = vmatmul.mubr.bf16.gmra.mrb[0].mxu0 %v4087
      %v4226 = vpop.f32.mrb[0].mxu0
      %v4227 = vadd.f32 0.0, %v4226
      %v4228 = vpop.f32.mrb[0].mxu0
      %v4229 = vpop.f32.mrb[0].mxu0
      %v4230 = vadd.f32 0.0, %v4229
      %v4231 = vpop.f32.mrb[0].mxu0
      %4232 = vmatprep.mubr.bf16.mxu0 0
      %4233 = vmatmul.mubr.bf16.gmra.mrb[0].mxu0 %v4090
      %v4234 = vpop.f32.mrb[0].mxu0
      %v4235 = vadd.f32 0.0, %v4234
      %v4236 = vpop.f32.mrb[0].mxu0
      %v4237 = vpop.f32.mrb[0].mxu0
      %v4238 = vadd.f32 0.0, %v4237
      %v4239 = vpop.f32.mrb[0].mxu0
      %4240 = vmatprep.mubr.bf16.mxu0 0
      %4241 = vmatmul.mubr.bf16.gmra.mrb[0].mxu0 %v4093
      %v4242 = vpop.f32.mrb[0].mxu0
      %v4243 = vadd.f32 0.0, %v4242
      %v4244 = vpop.f32.mrb[0].mxu0
      %v4245 = vpop.f32.mrb[0].mxu0
      %v4246 = vadd.f32 0.0, %v4245
      %v4247 = vpop.f32.mrb[0].mxu0
      %4248 = vmatprep.mubr.bf16.mxu0 0
      %4249 = vmatmul.mubr.bf16.gmra.mrb[0].mxu0 %v4096
      %v4250 = vpop.f32.mrb[0].mxu0
      %v4251 = vadd.f32 0.0, %v4250
      %v4252 = vpop.f32.mrb[0].mxu0
      %v4253 = vpop.f32.mrb[0].mxu0
      %v4254 = vadd.f32 0.0, %v4253
      %v4255 = vpop.f32.mrb[0].mxu0
      %4256 = vmatprep.mubr.bf16.mxu0 0
      %4257 = vmatmul.mubr.bf16.gmra.mrb[0].mxu0 %v4099
      %v4258 = vpop.f32.mrb[0].mxu0
      %v4259 = vadd.f32 0.0, %v4258
      %v4260 = vpop.f32.mrb[0].mxu0
      %v4261 = vpop.f32.mrb[0].mxu0
      %v4262 = vadd.f32 0.0, %v4261
      %v4263 = vpop.f32.mrb[0].mxu0
      %4264 = vdwg.mxu0
      %v4265 = vadd.f32 %v3539, %v4139
      %v4266 = vadd.f32 %v3540, %v4142
      %v4267 = vadd.f32 %v3541, %v4147
      %v4268 = vadd.f32 %v3542, %v4150
      %v4269 = vadd.f32 %v3543, %v4155
      %v4270 = vadd.f32 %v3544, %v4158
      %v4271 = vadd.f32 %v3545, %v4163
      %v4272 = vadd.f32 %v3546, %v4166
      %v4273 = vadd.f32 %v3547, %v4171
      %v4274 = vadd.f32 %v3548, %v4174
      %v4275 = vadd.f32 %v3549, %v4179
      %v4276 = vadd.f32 %v3550, %v4182
      %v4277 = vadd.f32 %v3551, %v4187
      %v4278 = vadd.f32 %v3552, %v4190
      %v4279 = vadd.f32 %v3553, %v4195
      %v4280 = vadd.f32 %v3554, %v4198
      %v4281 = vadd.f32 %v3555, %v4203
      %v4282 = vadd.f32 %v3556, %v4206
      %v4283 = vadd.f32 %v3557, %v4211
      %v4284 = vadd.f32 %v3558, %v4214
      %v4285 = vadd.f32 %v3559, %v4219
      %v4286 = vadd.f32 %v3560, %v4222
      %v4287 = vadd.f32 %v3561, %v4227
      %v4288 = vadd.f32 %v3562, %v4230
      %v4289 = vadd.f32 %v3563, %v4235
      %v4290 = vadd.f32 %v3564, %v4238
      %v4291 = vadd.f32 %v3565, %v4243
      %v4292 = vadd.f32 %v3566, %v4246
      %v4293 = vadd.f32 %v3567, %v4251
      %v4294 = vadd.f32 %v3568, %v4254
      %v4295 = vadd.f32 %v3569, %v4259
      %v4296 = vadd.f32 %v3570, %v4262
      %v4297 = vld [vmem:[%s3212] sm:$0xe]
      %v4298 = vld [vmem:[%s3212 + $0xc] sm:$0xe]
      %v4299 = vld [vmem:[%s3212 + $0x18] sm:$0xe]
      %v4300 = vld [vmem:[%s3212 + $0x24] sm:$0xe]
      %v4301 = vld [vmem:[%s3212 + $0x30] sm:$0xe]
      %v4302 = vld [vmem:[%s3212 + $0x3c] sm:$0xe]
      %v4303 = vld [vmem:[%s3212 + $0x48] sm:$0xe]
      %v4304 = vld [vmem:[%s3212 + $0x54] sm:$0xe]
      %v4305 = vld [vmem:[%s3212 + $0x60] sm:$0xe]
      %v4306 = vld [vmem:[%s3212 + $0x6c] sm:$0xe]
      %v4307 = vld [vmem:[%s3212 + $0x78] sm:$0xe]
      %v4308 = vld [vmem:[%s3212 + $0x84] sm:$0xe]
      %v4309 = vld [vmem:[%s3212 + $0x90] sm:$0xe]
      %v4310 = vld [vmem:[%s3212 + $0x9c] sm:$0xe]
      %v4311 = vld [vmem:[%s3212 + $0xa8] sm:$0xe]
      %v4312 = vld [vmem:[%s3212 + $0xb4] sm:$0xe]
      %v4361 = vrot.slane %v4297, 5
      %v4362 = vrot.slane %v4361, 4
      %v4363 = vrot.slane %v3572, 5
      %v4364 = vsel %vm1250, %v4362, %v4363
      %v4365 = vrot.slane %v4363, 4
      %v4366 = vrot.slane %v3573, 5
      %v4367 = vsel %vm1250, %v4365, %v4366
      %v4368 = vrot.slane %v4298, 5
      %v4369 = vrot.slane %v4368, 4
      %v4370 = vrot.slane %v3575, 5
      %v4371 = vsel %vm1250, %v4369, %v4370
      %v4372 = vrot.slane %v4370, 4
      %v4373 = vrot.slane %v3576, 5
      %v4374 = vsel %vm1250, %v4372, %v4373
      %v4375 = vrot.slane %v4299, 5
      %v4376 = vrot.slane %v4375, 4
      %v4377 = vrot.slane %v3578, 5
      %v4378 = vsel %vm1250, %v4376, %v4377
      %v4379 = vrot.slane %v4377, 4
      %v4380 = vrot.slane %v3579, 5
      %v4381 = vsel %vm1250, %v4379, %v4380
      %v4382 = vrot.slane %v4300, 5
      %v4383 = vrot.slane %v4382, 4
      %v4384 = vrot.slane %v3581, 5
      %v4385 = vsel %vm1250, %v4383, %v4384
      %v4386 = vrot.slane %v4384, 4
      %v4387 = vrot.slane %v3582, 5
      %v4388 = vsel %vm1250, %v4386, %v4387
      %v4389 = vrot.slane %v4301, 5
      %v4390 = vrot.slane %v4389, 4
      %v4391 = vrot.slane %v3584, 5
      %v4392 = vsel %vm1250, %v4390, %v4391
      %v4393 = vrot.slane %v4391, 4
      %v4394 = vrot.slane %v3585, 5
      %v4395 = vsel %vm1250, %v4393, %v4394
      %v4396 = vrot.slane %v4302, 5
      %v4397 = vrot.slane %v4396, 4
      %v4398 = vrot.slane %v3587, 5
      %v4399 = vsel %vm1250, %v4397, %v4398
      %v4400 = vrot.slane %v4398, 4
      %v4401 = vrot.slane %v3588, 5
      %v4402 = vsel %vm1250, %v4400, %v4401
      %v4403 = vrot.slane %v4303, 5
      %v4404 = vrot.slane %v4403, 4
      %v4405 = vrot.slane %v3590, 5
      %v4406 = vsel %vm1250, %v4404, %v4405
      %v4407 = vrot.slane %v4405, 4
      %v4408 = vrot.slane %v3591, 5
      %v4409 = vsel %vm1250, %v4407, %v4408
      %v4410 = vrot.slane %v4304, 5
      %v4411 = vrot.slane %v4410, 4
      %v4412 = vrot.slane %v3593, 5
      %v4413 = vsel %vm1250, %v4411, %v4412
      %v4414 = vrot.slane %v4412, 4
      %v4415 = vrot.slane %v3594, 5
      %v4416 = vsel %vm1250, %v4414, %v4415
      %v4417 = vrot.slane %v4305, 5
      %v4418 = vrot.slane %v4417, 4
      %v4419 = vrot.slane %v3596, 5
      %v4420 = vsel %vm1250, %v4418, %v4419
      %v4421 = vrot.slane %v4419, 4
      %v4422 = vrot.slane %v3597, 5
      %v4423 = vsel %vm1250, %v4421, %v4422
      %v4424 = vrot.slane %v4306, 5
      %v4425 = vrot.slane %v4424, 4
      %v4426 = vrot.slane %v3599, 5
      %v4427 = vsel %vm1250, %v4425, %v4426
      %v4428 = vrot.slane %v4426, 4
      %v4429 = vrot.slane %v3600, 5
      %v4430 = vsel %vm1250, %v4428, %v4429
      %v4431 = vrot.slane %v4307, 5
      %v4432 = vrot.slane %v4431, 4
      %v4433 = vrot.slane %v3602, 5
      %v4434 = vsel %vm1250, %v4432, %v4433
      %v4435 = vrot.slane %v4433, 4
      %v4436 = vrot.slane %v3603, 5
      %v4437 = vsel %vm1250, %v4435, %v4436
      %v4438 = vrot.slane %v4308, 5
      %v4439 = vrot.slane %v4438, 4
      %v4440 = vrot.slane %v3605, 5
      %v4441 = vsel %vm1250, %v4439, %v4440
      %v4442 = vrot.slane %v4440, 4
      %v4443 = vrot.slane %v3606, 5
      %v4444 = vsel %vm1250, %v4442, %v4443
      %v4445 = vrot.slane %v4309, 5
      %v4446 = vrot.slane %v4445, 4
      %v4447 = vrot.slane %v3608, 5
      %v4448 = vsel %vm1250, %v4446, %v4447
      %v4449 = vrot.slane %v4447, 4
      %v4450 = vrot.slane %v3609, 5
      %v4451 = vsel %vm1250, %v4449, %v4450
      %v4452 = vrot.slane %v4310, 5
      %v4453 = vrot.slane %v4452, 4
      %v4454 = vrot.slane %v3611, 5
      %v4455 = vsel %vm1250, %v4453, %v4454
      %v4456 = vrot.slane %v4454, 4
      %v4457 = vrot.slane %v3612, 5
      %v4458 = vsel %vm1250, %v4456, %v4457
      %v4459 = vrot.slane %v4311, 5
      %v4460 = vrot.slane %v4459, 4
      %v4461 = vrot.slane %v3614, 5
      %v4462 = vsel %vm1250, %v4460, %v4461
      %v4463 = vrot.slane %v4461, 4
      %v4464 = vrot.slane %v3615, 5
      %v4465 = vsel %vm1250, %v4463, %v4464
      %v4466 = vrot.slane %v4312, 5
      %v4467 = vrot.slane %v4466, 4
      %v4468 = vrot.slane %v3617, 5
      %v4469 = vsel %vm1250, %v4467, %v4468
      %v4470 = vrot.slane %v4468, 4
      %v4471 = vrot.slane %v3618, 5
      %v4472 = vsel %vm1250, %v4470, %v4471
      %s4473 = scalar_lea.vmem %s1, 16
      %v4474 = vld [vmem:[%s4473] sm:$0x3]
      %v4475 = vunpack.c.l.b16 %v4364
      %v4476 = vunpack.c.l.b16 %v4367
      %v4477 = vunpack.c.l.b16 %v4371
      %v4478 = vunpack.c.l.b16 %v4374
      %v4479 = vunpack.c.l.b16 %v4378
      %v4480 = vunpack.c.l.b16 %v4381
      %v4481 = vunpack.c.l.b16 %v4385
      %v4482 = vunpack.c.l.b16 %v4388
      %v4483 = vunpack.c.l.b16 %v4392
      %v4484 = vunpack.c.l.b16 %v4395
      %v4485 = vunpack.c.l.b16 %v4399
      %v4486 = vunpack.c.l.b16 %v4402
      %v4487 = vunpack.c.l.b16 %v4406
      %v4488 = vunpack.c.l.b16 %v4409
      %v4489 = vunpack.c.l.b16 %v4413
      %v4490 = vunpack.c.l.b16 %v4416
      %v4491 = vunpack.c.l.b16 %v4420
      %v4492 = vunpack.c.l.b16 %v4423
      %v4493 = vunpack.c.l.b16 %v4427
      %v4494 = vunpack.c.l.b16 %v4430
      %v4495 = vunpack.c.l.b16 %v4434
      %v4496 = vunpack.c.l.b16 %v4437
      %v4497 = vunpack.c.l.b16 %v4441
      %v4498 = vunpack.c.l.b16 %v4444
      %v4499 = vunpack.c.l.b16 %v4448
      %v4500 = vunpack.c.l.b16 %v4451
      %v4501 = vunpack.c.l.b16 %v4455
      %v4502 = vunpack.c.l.b16 %v4458
      %v4503 = vunpack.c.l.b16 %v4462
      %v4504 = vunpack.c.l.b16 %v4465
      %v4505 = vunpack.c.l.b16 %v4469
      %v4506 = vunpack.c.l.b16 %v4472
      %v4507 = vpack.c.b16 %v4476, %v4475
      %v4508 = vpack.c.b16 %v4478, %v4477
      %v4509 = vpack.c.b16 %v4480, %v4479
      %v4510 = vpack.c.b16 %v4482, %v4481
      %v4511 = vpack.c.b16 %v4484, %v4483
      %v4512 = vpack.c.b16 %v4486, %v4485
      %v4513 = vpack.c.b16 %v4488, %v4487
      %v4514 = vpack.c.b16 %v4490, %v4489
      %v4515 = vpack.c.b16 %v4492, %v4491
      %v4516 = vpack.c.b16 %v4494, %v4493
      %v4517 = vpack.c.b16 %v4496, %v4495
      %v4518 = vpack.c.b16 %v4498, %v4497
      %v4519 = vpack.c.b16 %v4500, %v4499
      %v4520 = vpack.c.b16 %v4502, %v4501
      %v4521 = vpack.c.b16 %v4504, %v4503
      %v4522 = vpack.c.b16 %v4506, %v4505
      %v4524 = vsel %vm694, %v4507, 0
      %v4527 = vsel %vm694, %v4508, 0
      %v4530 = vsel %vm694, %v4509, 0
      %v4533 = vsel %vm694, %v4510, 0
      %v4536 = vsel %vm694, %v4511, 0
      %v4539 = vsel %vm694, %v4512, 0
      %v4542 = vsel %vm694, %v4513, 0
      %v4545 = vsel %vm694, %v4514, 0
      %v4548 = vsel %vm694, %v4515, 0
      %v4551 = vsel %vm694, %v4516, 0
      %v4554 = vsel %vm694, %v4517, 0
      %v4557 = vsel %vm694, %v4518, 0
      %v4560 = vsel %vm694, %v4519, 0
      %v4563 = vsel %vm694, %v4520, 0
      %v4566 = vsel %vm694, %v4521, 0
      %v4569 = vsel %vm694, %v4522, 0
      %v4572 = vsel %vm743, %v4474, 0
      %4574 = vmatprep.subr.bf16.mxu0 0
      %4575 = vmatpush1.bf16.msra.mxu0 %v4572
      %4576 = vmatprep.subr.bf16.mxu0 0
      %4577 = vmatpush1.bf16.msra.mxu0 0
      %4578 = vmatprep.subr.bf16.mxu0 0
      %4579 = vmatpush1.bf16.msra.mxu0 0
      %4580 = vmatprep.subr.bf16.mxu0 0
      %4581 = vmatpush1.bf16.msra.mxu0 0
      %4582 = vmatprep.subr.bf16.mxu0 0
      %4583 = vmatpush1.bf16.msra.mxu0 0
      %4584 = vmatprep.subr.bf16.mxu0 0
      %4585 = vmatpush1.bf16.msra.mxu0 0
      %4586 = vmatprep.subr.bf16.mxu0 0
      %4587 = vmatpush1.bf16.msra.mxu0 0
      %4588 = vmatprep.subr.bf16.mxu0 0
      %4589 = vmatpush1.bf16.msra.mxu0 0
      %4590 = vmatprep.subr.bf16.mxu0 0
      %4591 = vmatpush1.bf16.msra.mxu0 0
      %4592 = vmatprep.subr.bf16.mxu0 0
      %4593 = vmatpush1.bf16.msra.mxu0 0
      %4594 = vmatprep.subr.bf16.mxu0 0
      %4595 = vmatpush1.bf16.msra.mxu0 0
      %4596 = vmatprep.subr.bf16.mxu0 0
      %4597 = vmatpush1.bf16.msra.mxu0 0
      %4598 = vmatprep.subr.bf16.mxu0 0
      %4599 = vmatpush1.bf16.msra.mxu0 0
      %4600 = vmatprep.subr.bf16.mxu0 0
      %4601 = vmatpush1.bf16.msra.mxu0 0
      %4602 = vmatprep.subr.bf16.mxu0 0
      %4603 = vmatpush1.bf16.msra.mxu0 0
      %4604 = vmatprep.subr.bf16.mxu0 0
      %4605 = vmatpush1.bf16.msra.mxu0 0
      %4606 = vmatprep.mubr.bf16.mxu0 0
      %4607 = vmatmul.mubr.bf16.gmra.mrb[0].mxu0 %v4524
      %v4608 = vpop.f32.mrb[0].mxu0
      %v4609 = vadd.f32 0.0, %v4608
      %v4610 = vpop.f32.mrb[0].mxu0
      %v4611 = vpop.f32.mrb[0].mxu0
      %v4612 = vadd.f32 0.0, %v4611
      %v4613 = vpop.f32.mrb[0].mxu0
      %4614 = vmatprep.mubr.bf16.mxu0 0
      %4615 = vmatmul.mubr.bf16.gmra.mrb[0].mxu0 %v4527
      %v4616 = vpop.f32.mrb[0].mxu0
      %v4617 = vadd.f32 0.0, %v4616
      %v4618 = vpop.f32.mrb[0].mxu0
      %v4619 = vpop.f32.mrb[0].mxu0
      %v4620 = vadd.f32 0.0, %v4619
      %v4621 = vpop.f32.mrb[0].mxu0
      %4622 = vmatprep.mubr.bf16.mxu0 0
      %4623 = vmatmul.mubr.bf16.gmra.mrb[0].mxu0 %v4530
      %v4624 = vpop.f32.mrb[0].mxu0
      %v4625 = vadd.f32 0.0, %v4624
      %v4626 = vpop.f32.mrb[0].mxu0
      %v4627 = vpop.f32.mrb[0].mxu0
      %v4628 = vadd.f32 0.0, %v4627
      %v4629 = vpop.f32.mrb[0].mxu0
      %4630 = vmatprep.mubr.bf16.mxu0 0
      %4631 = vmatmul.mubr.bf16.gmra.mrb[0].mxu0 %v4533
      %v4632 = vpop.f32.mrb[0].mxu0
      %v4633 = vadd.f32 0.0, %v4632
      %v4634 = vpop.f32.mrb[0].mxu0
      %v4635 = vpop.f32.mrb[0].mxu0
      %v4636 = vadd.f32 0.0, %v4635
      %v4637 = vpop.f32.mrb[0].mxu0
      %4638 = vmatprep.mubr.bf16.mxu0 0
      %4639 = vmatmul.mubr.bf16.gmra.mrb[0].mxu0 %v4536
      %v4640 = vpop.f32.mrb[0].mxu0
      %v4641 = vadd.f32 0.0, %v4640
      %v4642 = vpop.f32.mrb[0].mxu0
      %v4643 = vpop.f32.mrb[0].mxu0
      %v4644 = vadd.f32 0.0, %v4643
      %v4645 = vpop.f32.mrb[0].mxu0
      %4646 = vmatprep.mubr.bf16.mxu0 0
      %4647 = vmatmul.mubr.bf16.gmra.mrb[0].mxu0 %v4539
      %v4648 = vpop.f32.mrb[0].mxu0
      %v4649 = vadd.f32 0.0, %v4648
      %v4650 = vpop.f32.mrb[0].mxu0
      %v4651 = vpop.f32.mrb[0].mxu0
      %v4652 = vadd.f32 0.0, %v4651
      %v4653 = vpop.f32.mrb[0].mxu0
      %4654 = vmatprep.mubr.bf16.mxu0 0
      %4655 = vmatmul.mubr.bf16.gmra.mrb[0].mxu0 %v4542
      %v4656 = vpop.f32.mrb[0].mxu0
      %v4657 = vadd.f32 0.0, %v4656
      %v4658 = vpop.f32.mrb[0].mxu0
      %v4659 = vpop.f32.mrb[0].mxu0
      %v4660 = vadd.f32 0.0, %v4659
      %v4661 = vpop.f32.mrb[0].mxu0
      %4662 = vmatprep.mubr.bf16.mxu0 0
      %4663 = vmatmul.mubr.bf16.gmra.mrb[0].mxu0 %v4545
      %v4664 = vpop.f32.mrb[0].mxu0
      %v4665 = vadd.f32 0.0, %v4664
      %v4666 = vpop.f32.mrb[0].mxu0
      %v4667 = vpop.f32.mrb[0].mxu0
      %v4668 = vadd.f32 0.0, %v4667
      %v4669 = vpop.f32.mrb[0].mxu0
      %4670 = vmatprep.mubr.bf16.mxu0 0
      %4671 = vmatmul.mubr.bf16.gmra.mrb[0].mxu0 %v4548
      %v4672 = vpop.f32.mrb[0].mxu0
      %v4673 = vadd.f32 0.0, %v4672
      %v4674 = vpop.f32.mrb[0].mxu0
      %v4675 = vpop.f32.mrb[0].mxu0
      %v4676 = vadd.f32 0.0, %v4675
      %v4677 = vpop.f32.mrb[0].mxu0
      %4678 = vmatprep.mubr.bf16.mxu0 0
      %4679 = vmatmul.mubr.bf16.gmra.mrb[0].mxu0 %v4551
      %v4680 = vpop.f32.mrb[0].mxu0
      %v4681 = vadd.f32 0.0, %v4680
      %v4682 = vpop.f32.mrb[0].mxu0
      %v4683 = vpop.f32.mrb[0].mxu0
      %v4684 = vadd.f32 0.0, %v4683
      %v4685 = vpop.f32.mrb[0].mxu0
      %4686 = vmatprep.mubr.bf16.mxu0 0
      %4687 = vmatmul.mubr.bf16.gmra.mrb[0].mxu0 %v4554
      %v4688 = vpop.f32.mrb[0].mxu0
      %v4689 = vadd.f32 0.0, %v4688
      %v4690 = vpop.f32.mrb[0].mxu0
      %v4691 = vpop.f32.mrb[0].mxu0
      %v4692 = vadd.f32 0.0, %v4691
      %v4693 = vpop.f32.mrb[0].mxu0
      %4694 = vmatprep.mubr.bf16.mxu0 0
      %4695 = vmatmul.mubr.bf16.gmra.mrb[0].mxu0 %v4557
      %v4696 = vpop.f32.mrb[0].mxu0
      %v4697 = vadd.f32 0.0, %v4696
      %v4698 = vpop.f32.mrb[0].mxu0
      %v4699 = vpop.f32.mrb[0].mxu0
      %v4700 = vadd.f32 0.0, %v4699
      %v4701 = vpop.f32.mrb[0].mxu0
      %4702 = vmatprep.mubr.bf16.mxu0 0
      %4703 = vmatmul.mubr.bf16.gmra.mrb[0].mxu0 %v4560
      %v4704 = vpop.f32.mrb[0].mxu0
      %v4705 = vadd.f32 0.0, %v4704
      %v4706 = vpop.f32.mrb[0].mxu0
      %v4707 = vpop.f32.mrb[0].mxu0
      %v4708 = vadd.f32 0.0, %v4707
      %v4709 = vpop.f32.mrb[0].mxu0
      %4710 = vmatprep.mubr.bf16.mxu0 0
      %4711 = vmatmul.mubr.bf16.gmra.mrb[0].mxu0 %v4563
      %v4712 = vpop.f32.mrb[0].mxu0
      %v4713 = vadd.f32 0.0, %v4712
      %v4714 = vpop.f32.mrb[0].mxu0
      %v4715 = vpop.f32.mrb[0].mxu0
      %v4716 = vadd.f32 0.0, %v4715
      %v4717 = vpop.f32.mrb[0].mxu0
      %4718 = vmatprep.mubr.bf16.mxu0 0
      %4719 = vmatmul.mubr.bf16.gmra.mrb[0].mxu0 %v4566
      %v4720 = vpop.f32.mrb[0].mxu0
      %v4721 = vadd.f32 0.0, %v4720
      %v4722 = vpop.f32.mrb[0].mxu0
      %v4723 = vpop.f32.mrb[0].mxu0
      %v4724 = vadd.f32 0.0, %v4723
      %v4725 = vpop.f32.mrb[0].mxu0
      %4726 = vmatprep.mubr.bf16.mxu0 0
      %4727 = vmatmul.mubr.bf16.gmra.mrb[0].mxu0 %v4569
      %v4728 = vpop.f32.mrb[0].mxu0
      %v4729 = vadd.f32 0.0, %v4728
      %v4730 = vpop.f32.mrb[0].mxu0
      %v4731 = vpop.f32.mrb[0].mxu0
      %v4732 = vadd.f32 0.0, %v4731
      %v4733 = vpop.f32.mrb[0].mxu0
      %4734 = vdwg.mxu0
      %v4735 = vadd.f32 %v4265, %v4609
      %v4736 = vadd.f32 %v4266, %v4612
      %v4737 = vadd.f32 %v4267, %v4617
      %v4738 = vadd.f32 %v4268, %v4620
      %v4739 = vadd.f32 %v4269, %v4625
      %v4740 = vadd.f32 %v4270, %v4628
      %v4741 = vadd.f32 %v4271, %v4633
      %v4742 = vadd.f32 %v4272, %v4636
      %v4743 = vadd.f32 %v4273, %v4641
      %v4744 = vadd.f32 %v4274, %v4644
      %v4745 = vadd.f32 %v4275, %v4649
      %v4746 = vadd.f32 %v4276, %v4652
      %v4747 = vadd.f32 %v4277, %v4657
      %v4748 = vadd.f32 %v4278, %v4660
      %v4749 = vadd.f32 %v4279, %v4665
      %v4750 = vadd.f32 %v4280, %v4668
      %v4751 = vadd.f32 %v4281, %v4673
      %v4752 = vadd.f32 %v4282, %v4676
      %v4753 = vadd.f32 %v4283, %v4681
      %v4754 = vadd.f32 %v4284, %v4684
      %v4755 = vadd.f32 %v4285, %v4689
      %v4756 = vadd.f32 %v4286, %v4692
      %v4757 = vadd.f32 %v4287, %v4697
      %v4758 = vadd.f32 %v4288, %v4700
      %v4759 = vadd.f32 %v4289, %v4705
      %v4760 = vadd.f32 %v4290, %v4708
      %v4761 = vadd.f32 %v4291, %v4713
      %v4762 = vadd.f32 %v4292, %v4716
      %v4763 = vadd.f32 %v4293, %v4721
      %v4764 = vadd.f32 %v4294, %v4724
      %v4765 = vadd.f32 %v4295, %v4729
      %v4766 = vadd.f32 %v4296, %v4732
      %v4767 = vld [vmem:[%s2] sm:$0x1]
      %v4769 = vlaneseq
      %v4770 = vshrl.u32 %v4769, 7
      %v4771 = vsub.s32 0, %v4770
      %v4772 = vrot.slane %v4767, %v4771
      %v4774 = vadd.f32 %v4735, %v4772
      %v4775 = vadd.f32 %v4736, %v4772
      %v4776 = vadd.f32 %v4737, %v4772
      %v4777 = vadd.f32 %v4738, %v4772
      %v4778 = vadd.f32 %v4739, %v4772
      %v4779 = vadd.f32 %v4740, %v4772
      %v4780 = vadd.f32 %v4741, %v4772
      %v4781 = vadd.f32 %v4742, %v4772
      %v4782 = vadd.f32 %v4743, %v4772
      %v4783 = vadd.f32 %v4744, %v4772
      %v4784 = vadd.f32 %v4745, %v4772
      %v4785 = vadd.f32 %v4746, %v4772
      %v4786 = vadd.f32 %v4747, %v4772
      %v4787 = vadd.f32 %v4748, %v4772
      %v4788 = vadd.f32 %v4749, %v4772
      %v4789 = vadd.f32 %v4750, %v4772
      %v4790 = vadd.f32 %v4751, %v4772
      %v4791 = vadd.f32 %v4752, %v4772
      %v4792 = vadd.f32 %v4753, %v4772
      %v4793 = vadd.f32 %v4754, %v4772
      %v4794 = vadd.f32 %v4755, %v4772
      %v4795 = vadd.f32 %v4756, %v4772
      %v4796 = vadd.f32 %v4757, %v4772
      %v4797 = vadd.f32 %v4758, %v4772
      %v4798 = vadd.f32 %v4759, %v4772
      %v4799 = vadd.f32 %v4760, %v4772
      %v4800 = vadd.f32 %v4761, %v4772
      %v4801 = vadd.f32 %v4762, %v4772
      %v4802 = vadd.f32 %v4763, %v4772
      %v4803 = vadd.f32 %v4764, %v4772
      %v4804 = vadd.f32 %v4765, %v4772
      %v4805 = vadd.f32 %v4766, %v4772
      %v4806 = vmul.f32 %v4774, 0.2
      %v4807 = vmul.f32 %v4775, 0.2
      %v4808 = vmul.f32 %v4776, 0.2
      %v4809 = vmul.f32 %v4777, 0.2
      %v4810 = vmul.f32 %v4778, 0.2
      %v4811 = vmul.f32 %v4779, 0.2
      %v4812 = vmul.f32 %v4780, 0.2
      %v4813 = vmul.f32 %v4781, 0.2
      %v4814 = vmul.f32 %v4782, 0.2
      %v4815 = vmul.f32 %v4783, 0.2
      %v4816 = vmul.f32 %v4784, 0.2
      %v4817 = vmul.f32 %v4785, 0.2
      %v4818 = vmul.f32 %v4786, 0.2
      %v4819 = vmul.f32 %v4787, 0.2
      %v4820 = vmul.f32 %v4788, 0.2
      %v4821 = vmul.f32 %v4789, 0.2
      %v4822 = vmul.f32 %v4790, 0.2
      %v4823 = vmul.f32 %v4791, 0.2
      %v4824 = vmul.f32 %v4792, 0.2
      %v4825 = vmul.f32 %v4793, 0.2
      %v4826 = vmul.f32 %v4794, 0.2
      %v4827 = vmul.f32 %v4795, 0.2
      %v4828 = vmul.f32 %v4796, 0.2
      %v4829 = vmul.f32 %v4797, 0.2
      %v4830 = vmul.f32 %v4798, 0.2
      %v4831 = vmul.f32 %v4799, 0.2
      %v4832 = vmul.f32 %v4800, 0.2
      %v4833 = vmul.f32 %v4801, 0.2
      %v4834 = vmul.f32 %v4802, 0.2
      %v4835 = vmul.f32 %v4803, 0.2
      %v4836 = vmul.f32 %v4804, 0.2
      %v4837 = vmul.f32 %v4805, 0.2
      %v4838 = vmax.f32 %v4774, %v4806
      %v4839 = vmax.f32 %v4775, %v4807
      %v4840 = vmax.f32 %v4776, %v4808
      %v4841 = vmax.f32 %v4777, %v4809
      %v4842 = vmax.f32 %v4778, %v4810
      %v4843 = vmax.f32 %v4779, %v4811
      %v4844 = vmax.f32 %v4780, %v4812
      %v4845 = vmax.f32 %v4781, %v4813
      %v4846 = vmax.f32 %v4782, %v4814
      %v4847 = vmax.f32 %v4783, %v4815
      %v4848 = vmax.f32 %v4784, %v4816
      %v4849 = vmax.f32 %v4785, %v4817
      %v4850 = vmax.f32 %v4786, %v4818
      %v4851 = vmax.f32 %v4787, %v4819
      %v4852 = vmax.f32 %v4788, %v4820
      %v4853 = vmax.f32 %v4789, %v4821
      %v4854 = vmax.f32 %v4790, %v4822
      %v4855 = vmax.f32 %v4791, %v4823
      %v4856 = vmax.f32 %v4792, %v4824
      %v4857 = vmax.f32 %v4793, %v4825
      %v4858 = vmax.f32 %v4794, %v4826
      %v4859 = vmax.f32 %v4795, %v4827
      %v4860 = vmax.f32 %v4796, %v4828
      %v4861 = vmax.f32 %v4797, %v4829
      %v4862 = vmax.f32 %v4798, %v4830
      %v4863 = vmax.f32 %v4799, %v4831
      %v4864 = vmax.f32 %v4800, %v4832
      %v4865 = vmax.f32 %v4801, %v4833
      %v4866 = vmax.f32 %v4802, %v4834
      %v4867 = vmax.f32 %v4803, %v4835
      %v4868 = vmax.f32 %v4804, %v4836
      %v4869 = vmax.f32 %v4805, %v4837
      %4870 = vst [vmem:[%s206] sm:$0xff] %v4838
      %4871 = vst [vmem:[%s206 + $0x8] sm:$0xff] %v4839
      %4872 = vst [vmem:[%s206 + $0x10] sm:$0xff] %v4840
      %4873 = vst [vmem:[%s206 + $0x18] sm:$0xff] %v4841
      %4874 = vst [vmem:[%s206 + $0x20] sm:$0xff] %v4842
      %4875 = vst [vmem:[%s206 + $0x28] sm:$0xff] %v4843
      %4876 = vst [vmem:[%s206 + $0x30] sm:$0xff] %v4844
      %4877 = vst [vmem:[%s206 + $0x38] sm:$0xff] %v4845
      %4878 = vst [vmem:[%s206 + $0x40] sm:$0xff] %v4846
      %4879 = vst [vmem:[%s206 + $0x48] sm:$0xff] %v4847
      %4880 = vst [vmem:[%s206 + $0x50] sm:$0xff] %v4848
      %4881 = vst [vmem:[%s206 + $0x58] sm:$0xff] %v4849
      %4882 = vst [vmem:[%s206 + $0x60] sm:$0xff] %v4850
      %4883 = vst [vmem:[%s206 + $0x68] sm:$0xff] %v4851
      %4884 = vst [vmem:[%s206 + $0x70] sm:$0xff] %v4852
      %4885 = vst [vmem:[%s206 + $0x78] sm:$0xff] %v4853
      %4886 = vst [vmem:[%s206 + $0x80] sm:$0xff] %v4854
      %4887 = vst [vmem:[%s206 + $0x88] sm:$0xff] %v4855
      %4888 = vst [vmem:[%s206 + $0x90] sm:$0xff] %v4856
      %4889 = vst [vmem:[%s206 + $0x98] sm:$0xff] %v4857
      %4890 = vst [vmem:[%s206 + $0xa0] sm:$0xff] %v4858
      %4891 = vst [vmem:[%s206 + $0xa8] sm:$0xff] %v4859
      %4892 = vst [vmem:[%s206 + $0xb0] sm:$0xff] %v4860
      %4893 = vst [vmem:[%s206 + $0xb8] sm:$0xff] %v4861
      %4894 = vst [vmem:[%s206 + $0xc0] sm:$0xff] %v4862
      %4895 = vst [vmem:[%s206 + $0xc8] sm:$0xff] %v4863
      %4896 = vst [vmem:[%s206 + $0xd0] sm:$0xff] %v4864
      %4897 = vst [vmem:[%s206 + $0xd8] sm:$0xff] %v4865
      %4898 = vst [vmem:[%s206 + $0xe0] sm:$0xff] %v4866
      %4899 = vst [vmem:[%s206 + $0xe8] sm:$0xff] %v4867
      %4900 = vst [vmem:[%s206 + $0xf0] sm:$0xff] %v4868
      %4901 = vst [vmem:[%s206 + $0xf8] sm:$0xff] %v4869
      %p4902 = scmp.lt.s32.totalorder %s18, 1
      %s4903 = scalar_select %p4902, %s18, 1
      %p4904 = scmp.lt.s32.totalorder %s19, 0
      %s4905 = scalar_select %p4904, %s19, 0
      %s4906 = smul.addr %s4905, 32
      %s4907 = smul.addr %s4903, 32
      %s4908 = sadd.s32 %s4906, %s4907
      %s4909 = smul.addr %s4908, 8
      %s4910 = scalar_lea.vmem %s3, %s4909
      // Predicated region
      $region33: #{conv_block_forward.1} parent=31 // pred_check
        %p4911 = pneg %p116
      $region34: #{conv_block_forward.1} parent=31 // pred_check_branch
        %4913 = sbr.rel (%p4911) target = $region36
      $region35: #{conv_block_forward.1} parent=31 // pred_region
        _
      $region36: #{conv_block_forward.1} parent=31 // pred_fallthru
        _
    $region32: #{conv_block_forward.1} parent=5 // pred_fallthru
      _
    %p4914 = scmp.le.s32.totalorder 2, %s9
    // Predicated region
    $region37: #{conv_block_forward.1} parent=5 // pred_check
      %p4915 = pneg %p4914
    $region38: #{conv_block_forward.1} parent=5 // pred_check_branch
      %4917 = sbr.rel (%p4915) target = $region40
    $region39: #{conv_block_forward.1} parent=5 // pred_region
      %s4918 = ssub.s32 %s9, 2
      // Predicated region
      $region41: #{conv_block_forward.1} parent=39 // pred_check
        %p4919 = pneg %p122
      $region42: #{conv_block_forward.1} parent=39 // pred_check_branch
        %4921 = sbr.rel (%p4919) target = $region44
      $region43: #{conv_block_forward.1} parent=39 // pred_region
        %p4922 = scmp.lt.s32.totalorder %s20, 1
        %s4923 = scalar_select %p4922, %s20, 1
        %p4924 = scmp.lt.s32.totalorder %s21, 0
        %s4925 = scalar_select %p4924, %s21, 0
        %s4926 = smul.addr %s4925, 32
        %s4927 = smul.addr %s4923, 32
        %s4928 = sadd.s32 %s4926, %s4927
        %s4929 = smul.addr %s4928, 8
        %s4930 = scalar_lea.vmem %s3, %s4929
      $region44: #{conv_block_forward.1} parent=39 // pred_fallthru
        _
    $region40: #{conv_block_forward.1} parent=5 // pred_fallthru
      _
  $region6: #{conv_block_forward.1} parent=0 // loop_footer
    %s13 = sadd.s32 1, %s9
  $region7: #{conv_block_forward.1} parent=0 // loop_footer_branch
    %8 = sbr.rel target = $region3
  $region8: #{conv_block_forward.1} parent=0 // loop_exit
    _

</llo_original>
